<compile_context>
chip_gen: v7x
topology: tpu7x:2x2x1
jax: 0.10.0
libtpu: 0.0.40
codegen_flags: <defaults>
</compile_context>

<pallas_src>
import jax
import jax.numpy as jnp
import numpy as np
from jax.experimental import pallas as pl
from jax.experimental.pallas import tpu as pltpu


# ------------------------- shape bookkeeping helpers ------------------------ #

def _layer_dims(H, W):
    """3x3 VALID conv on a (C, H*W) flat layout (row stride = W)."""
    Ho, Wo = H - 2, W - 2
    L = (Ho - 1) * W + Wo          # dense conv-output length needed (max tap offset fits exactly)
    return Ho, Wo, L


def _pool_dims(Ho, Wo, W, L):
    """MaxPool2d(kernel=2, stride=2), floor mode, on the dense flat conv output."""
    Hp, Wp = Ho // 2, Wo // 2
    Lm = L - (W + 1)               # length after the dense pairwise 2x2 max
    return Hp, Wp, Lm


def _select_matrix(n_rows, W_in, Hs, Ws, stride):
    """0/1 matrix S (n_rows, Hs*Ws): column (i*Ws+j) selects flat row stride*(i*W_in + j)."""
    S = np.zeros((n_rows, Hs * Ws), np.float32)
    for i in range(Hs):
        for j in range(Ws):
            S[stride * i * W_in + stride * j, i * Ws + j] = 1.0
    return jnp.asarray(S)


def _pack_w(w_oihw):
    """PyTorch (Co, Ci, 3, 3) -> (9, Co, Ci), tap index = dy*3 + dx."""
    Co, Ci = w_oihw.shape[0], w_oihw.shape[1]
    return jnp.transpose(w_oihw, (2, 3, 0, 1)).reshape(9, Co, Ci)


# ------------------------------- fused kernel ------------------------------- #

def _make_fused_kernel(C, Co, W1, L1, Lm1, W2, L2, Lm2, W3, L3):

    def conv(x, w_ref, b_ref, W_in, L_out):
        # 9 per-tap MXU matmuls on shifted flat slices; f32 accumulation (few vregs).
        acc = None
        for dy in range(3):
            for dx in range(3):
                off = dy * W_in + dx
                xs = x[:, off:off + L_out]                       # (Ci, L_out)
                wt = w_ref[dy * 3 + dx]                          # (Co, Ci)
                p = jnp.dot(wt, xs, preferred_element_type=jnp.float32)
                acc = p if acc is None else acc + p
        return acc + b_ref[...]                                  # (Co, L_out), bias (Co,1) broadcast

    def pool_relu_select(a, s_ref, W_in, Lm):
        # Dense pairwise 2x2 max on the flat layout (neighbors at +1, +W, +W+1),
        # then ReLU, then stride-2 subsample via a 0/1 selection matmul (MXU).
        m = jnp.maximum(jnp.maximum(a[:, 0:Lm], a[:, 1:Lm + 1]),
                        jnp.maximum(a[:, W_in:W_in + Lm], a[:, W_in + 1:W_in + 1 + Lm]))
        m = jnp.maximum(m, 0.0)
        return jnp.dot(m, s_ref[...], preferred_element_type=jnp.float32)

    def kernel(x_ref, w1_ref, b1_ref, s1_ref, w2_ref, b2_ref, s2_ref,
               w3_ref, b3_ref, s3_ref, o_ref):
        x = x_ref[0]                                             # (C, H*W) for this batch element
        y1 = pool_relu_select(conv(x, w1_ref, b1_ref, W1, L1), s1_ref, W1, Lm1)   # (Co, Hp1*Wp1)
        y2 = pool_relu_select(conv(y1, w2_ref, b2_ref, W2, L2), s2_ref, W2, Lm2)  # (Co, Hp2*Wp2)
        a3 = jnp.maximum(conv(y2, w3_ref, b3_ref, W3, L3), 0.0)                   # (Co, L3)
        # extract the valid conv positions -> (Co, H3o*W3o); row-major == NCHW flatten order
        o_ref[0] = jnp.dot(a3, s3_ref[...], preferred_element_type=jnp.float32)

    return kernel


# ------------------------------ public wrapper ------------------------------ #

def local_map_cnn_forward(x_nchw, params, flatten=True):
    """Pallas implementation of LocalMapCNN.forward. Input is NCHW like PyTorch."""
    w1, b1, w2, b2, w3, b3 = params
    N, C, H1, W1 = x_nchw.shape
    Co = w1.shape[0]

    H1o, W1o, L1 = _layer_dims(H1, W1)
    Hp1, Wp1, Lm1 = _pool_dims(H1o, W1o, W1, L1)
    H2, W2 = Hp1, Wp1
    H2o, W2o, L2 = _layer_dims(H2, W2)
    Hp2, Wp2, Lm2 = _pool_dims(H2o, W2o, W2, L2)
    H3, W3 = Hp2, Wp2
    H3o, W3o, L3 = _layer_dims(H3, W3)
    P1, P2, P3 = Hp1 * Wp1, Hp2 * Wp2, H3o * W3o

    # NCHW -> (N, C, H*W): contiguous reshape, no transpose needed.
    x_flat = x_nchw.reshape(N, C, H1 * W1).astype(jnp.float32)

    # Host-built 0/1 selection matrices for pool-subsample / valid-position extraction.
    S1 = _select_matrix(Lm1, W1, Hp1, Wp1, 2)
    S2 = _select_matrix(Lm2, W2, Hp2, Wp2, 2)
    S3 = _select_matrix(L3, W3, H3o, W3o, 1)

    kernel = _make_fused_kernel(C, Co, W1, L1, Lm1, W2, L2, Lm2, W3, L3)

    def full(shape):
        return pl.BlockSpec(shape, lambda n, _r=len(shape): (0,) * _r)

    out = pl.pallas_call(
        kernel,
        out_shape=jax.ShapeDtypeStruct((N, Co, P3), jnp.float32),
        grid=(N,),
        in_specs=[
            pl.BlockSpec((1, C, H1 * W1), lambda n: (n, 0, 0)),
            full((9, Co, C)), full((Co, 1)), full((Lm1, P1)),
            full((9, Co, Co)), full((Co, 1)), full((Lm2, P2)),
            full((9, Co, Co)), full((Co, 1)), full((L3, P3)),
        ],
        out_specs=pl.BlockSpec((1, Co, P3), lambda n: (n, 0, 0)),
        compiler_params=pltpu.CompilerParams(dimension_semantics=("parallel",)),
    )(x_flat, _pack_w(w1), b1.reshape(Co, 1), S1,
      _pack_w(w2), b2.reshape(Co, 1), S2,
      _pack_w(w3), b3.reshape(Co, 1), S3)

    if flatten:
        return out.reshape(N, Co * P3)          # identical to PyTorch Flatten of NCHW
    return out.reshape(N, Co, H3o, W3o)


# ------------------------------ params / reference ------------------------- #

def init_params(key, in_channels, out_channels):
    """Deterministic init mimicking nn.Conv2d default (uniform +/- 1/sqrt(fan_in))."""
    ks = jax.random.split(key, 6)

    def conv_init(kw, kb, ci, co):
        bound = (ci * 9) ** -0.5
        w = jax.random.uniform(kw, (co, ci, 3, 3), jnp.float32, -bound, bound)
        b = jax.random.uniform(kb, (co,), jnp.float32, -bound, bound)
        return w, b

    w1, b1 = conv_init(ks[0], ks[1], in_channels, out_channels)
    w2, b2 = conv_init(ks[2], ks[3], out_channels, out_channels)
    w3, b3 = conv_init(ks[4], ks[5], out_channels, out_channels)
    return (w1, b1, w2, b2, w3, b3)


def _ref_forward(x_nchw, params, flatten=True):
    """Pure-JAX (XLA) reference in NHWC with highest-precision convs."""
    w1, b1, w2, b2, w3, b3 = params
    x = jnp.transpose(x_nchw, (0, 2, 3, 1)).astype(jnp.float32)

    def conv(x, w_oihw, b):
        w = jnp.transpose(w_oihw, (2, 3, 1, 0))  # HWIO
        y = jax.lax.conv_general_dilated(
            x, w, window_strides=(1, 1), padding="VALID",
            dimension_numbers=("NHWC", "HWIO", "NHWC"),
            precision=jax.lax.Precision.HIGHEST)
        return y + b

    def pool(x):
        return jax.lax.reduce_window(
            x, -jnp.inf, jax.lax.max, (1, 2, 2, 1), (1, 2, 2, 1), "VALID")

    y = jax.nn.relu(pool(conv(x, w1, b1)))
    y = jax.nn.relu(pool(conv(y, w2, b2)))
    y = jax.nn.relu(conv(y, w3, b3))
    y = jnp.transpose(y, (0, 3, 1, 2))
    if flatten:
        return y.reshape(y.shape[0], -1)
    return y


# ---------------------------------- main ----------------------------------- #

if __name__ == "__main__":
    # in_shape = (H, W, C) = (24, 24, 4), out_channels = 8, batch = 2.
    # Spatial trace: 24 -conv-> 22 -pool-> 11 -conv-> 9 -pool-> 4 -conv-> 2
    # => flattened output size = 8 * 2 * 2 = 32.
    N, C, H, W = 2, 4, 24, 24
    out_channels = 8

    key = jax.random.PRNGKey(0)
    kx, kp = jax.random.split(key)
    x = jax.random.normal(kx, (N, C, H, W), dtype=jnp.float32)
    params = init_params(kp, C, out_channels)

    out = jax.block_until_ready(local_map_cnn_forward(x, params, flatten=True))
    ref = jax.block_until_ready(_ref_forward(x, params, flatten=True))

    assert out.shape == (N, out_channels * 2 * 2), out.shape
    # Tolerance allows for MXU matmul rounding inside the kernel; structural errors are O(1).
    np.testing.assert_allclose(np.asarray(out), np.asarray(ref), rtol=2e-2, atol=2e-2)

    print("KERNEL_OK")
</pallas_src>

<mosaic_0001>
module attributes {stable_mosaic.version = 11 : i64} {
  func.func @kernel(%arg0: i32, %arg1: memref<1x4x576xf32, #tpu.memory_space<vmem>>, %arg2: memref<9x8x4xf32, #tpu.memory_space<vmem>>, %arg3: memref<8x1xf32, #tpu.memory_space<vmem>>, %arg4: memref<501x121xf32, #tpu.memory_space<vmem>>, %arg5: memref<9x8x8xf32, #tpu.memory_space<vmem>>, %arg6: memref<8x1xf32, #tpu.memory_space<vmem>>, %arg7: memref<85x16xf32, #tpu.memory_space<vmem>>, %arg8: memref<9x8x8xf32, #tpu.memory_space<vmem>>, %arg9: memref<8x1xf32, #tpu.memory_space<vmem>>, %arg10: memref<6x4xf32, #tpu.memory_space<vmem>>, %arg11: memref<1x8x4xf32, #tpu.memory_space<vmem>>) attributes {dimension_semantics = [#tpu.dimension_semantics<parallel>], iteration_bounds = array<i64: 2>, scalar_prefetch = 0 : i64, scratch_operands = 0 : i64, tpu.core_type = #tpu.core_type<tc>, window_params = [{transform_indices = @transform_0, window_bounds = array<i64: 1, 4, 576>}, {pipeline_mode = #tpu.pipeline_mode<synchronous>, transform_indices = @transform_1, window_bounds = array<i64: 9, 8, 4>}, {pipeline_mode = #tpu.pipeline_mode<synchronous>, transform_indices = @transform_2, window_bounds = array<i64: 8, 1>}, {pipeline_mode = #tpu.pipeline_mode<synchronous>, transform_indices = @transform_3, window_bounds = array<i64: 501, 121>}, {pipeline_mode = #tpu.pipeline_mode<synchronous>, transform_indices = @transform_4, window_bounds = array<i64: 9, 8, 8>}, {pipeline_mode = #tpu.pipeline_mode<synchronous>, transform_indices = @transform_5, window_bounds = array<i64: 8, 1>}, {pipeline_mode = #tpu.pipeline_mode<synchronous>, transform_indices = @transform_6, window_bounds = array<i64: 85, 16>}, {pipeline_mode = #tpu.pipeline_mode<synchronous>, transform_indices = @transform_7, window_bounds = array<i64: 9, 8, 8>}, {pipeline_mode = #tpu.pipeline_mode<synchronous>, transform_indices = @transform_8, window_bounds = array<i64: 8, 1>}, {pipeline_mode = #tpu.pipeline_mode<synchronous>, transform_indices = @transform_9, window_bounds = array<i64: 6, 4>}, {transform_indices = @transform_10, window_bounds = array<i64: 1, 8, 4>}]} {
    %c0 = arith.constant 0 : index
    %c0_0 = arith.constant 0 : index
    %c0_1 = arith.constant 0 : index
    %0 = vector.load %arg1[%c0, %c0_0, %c0_1] : memref<1x4x576xf32, #tpu.memory_space<vmem>>, vector<1x4x576xf32>
    %1 = vector.shape_cast %0 : vector<1x4x576xf32> to vector<4x576xf32>
    %2 = vector.extract_strided_slice %1 {offsets = [0, 0], sizes = [4, 526], strides = [1, 1]} : vector<4x576xf32> to vector<4x526xf32>
    %c0_2 = arith.constant 0 : index
    %c0_3 = arith.constant 0 : index
    %c0_4 = arith.constant 0 : index
    %3 = vector.load %arg2[%c0_2, %c0_3, %c0_4] : memref<9x8x4xf32, #tpu.memory_space<vmem>>, vector<1x8x4xf32>
    %4 = vector.shape_cast %3 : vector<1x8x4xf32> to vector<8x4xf32>
    %cst = arith.constant dense<0.000000e+00> : vector<8x526xf32>
    %5 = tpu.matmul %4, %2, %cst {dimension_numbers = #tpu.dot_dimension_numbers<[1], [0], [0], [1], [0, 0, 1, 1], [], []>} : vector<8x4xf32>, vector<4x526xf32>, vector<8x526xf32> -> vector<8x526xf32>
    %6 = vector.extract_strided_slice %1 {offsets = [0, 1], sizes = [4, 526], strides = [1, 1]} : vector<4x576xf32> to vector<4x526xf32>
    %c1 = arith.constant 1 : index
    %c0_5 = arith.constant 0 : index
    %c0_6 = arith.constant 0 : index
    %7 = vector.load %arg2[%c1, %c0_5, %c0_6] : memref<9x8x4xf32, #tpu.memory_space<vmem>>, vector<1x8x4xf32>
    %8 = vector.shape_cast %7 : vector<1x8x4xf32> to vector<8x4xf32>
    %cst_7 = arith.constant dense<0.000000e+00> : vector<8x526xf32>
    %9 = tpu.matmul %8, %6, %cst_7 {dimension_numbers = #tpu.dot_dimension_numbers<[1], [0], [0], [1], [0, 0, 1, 1], [], []>} : vector<8x4xf32>, vector<4x526xf32>, vector<8x526xf32> -> vector<8x526xf32>
    %10 = arith.addf %5, %9 : vector<8x526xf32>
    %11 = vector.extract_strided_slice %1 {offsets = [0, 2], sizes = [4, 526], strides = [1, 1]} : vector<4x576xf32> to vector<4x526xf32>
    %c2 = arith.constant 2 : index
    %c0_8 = arith.constant 0 : index
    %c0_9 = arith.constant 0 : index
    %12 = vector.load %arg2[%c2, %c0_8, %c0_9] : memref<9x8x4xf32, #tpu.memory_space<vmem>>, vector<1x8x4xf32>
    %13 = vector.shape_cast %12 : vector<1x8x4xf32> to vector<8x4xf32>
    %cst_10 = arith.constant dense<0.000000e+00> : vector<8x526xf32>
    %14 = tpu.matmul %13, %11, %cst_10 {dimension_numbers = #tpu.dot_dimension_numbers<[1], [0], [0], [1], [0, 0, 1, 1], [], []>} : vector<8x4xf32>, vector<4x526xf32>, vector<8x526xf32> -> vector<8x526xf32>
    %15 = arith.addf %10, %14 : vector<8x526xf32>
    %16 = vector.extract_strided_slice %1 {offsets = [0, 24], sizes = [4, 526], strides = [1, 1]} : vector<4x576xf32> to vector<4x526xf32>
    %c3 = arith.constant 3 : index
    %c0_11 = arith.constant 0 : index
    %c0_12 = arith.constant 0 : index
    %17 = vector.load %arg2[%c3, %c0_11, %c0_12] : memref<9x8x4xf32, #tpu.memory_space<vmem>>, vector<1x8x4xf32>
    %18 = vector.shape_cast %17 : vector<1x8x4xf32> to vector<8x4xf32>
    %cst_13 = arith.constant dense<0.000000e+00> : vector<8x526xf32>
    %19 = tpu.matmul %18, %16, %cst_13 {dimension_numbers = #tpu.dot_dimension_numbers<[1], [0], [0], [1], [0, 0, 1, 1], [], []>} : vector<8x4xf32>, vector<4x526xf32>, vector<8x526xf32> -> vector<8x526xf32>
    %20 = arith.addf %15, %19 : vector<8x526xf32>
    %21 = vector.extract_strided_slice %1 {offsets = [0, 25], sizes = [4, 526], strides = [1, 1]} : vector<4x576xf32> to vector<4x526xf32>
    %c4 = arith.constant 4 : index
    %c0_14 = arith.constant 0 : index
    %c0_15 = arith.constant 0 : index
    %22 = vector.load %arg2[%c4, %c0_14, %c0_15] : memref<9x8x4xf32, #tpu.memory_space<vmem>>, vector<1x8x4xf32>
    %23 = vector.shape_cast %22 : vector<1x8x4xf32> to vector<8x4xf32>
    %cst_16 = arith.constant dense<0.000000e+00> : vector<8x526xf32>
    %24 = tpu.matmul %23, %21, %cst_16 {dimension_numbers = #tpu.dot_dimension_numbers<[1], [0], [0], [1], [0, 0, 1, 1], [], []>} : vector<8x4xf32>, vector<4x526xf32>, vector<8x526xf32> -> vector<8x526xf32>
    %25 = arith.addf %20, %24 : vector<8x526xf32>
    %26 = vector.extract_strided_slice %1 {offsets = [0, 26], sizes = [4, 526], strides = [1, 1]} : vector<4x576xf32> to vector<4x526xf32>
    %c5 = arith.constant 5 : index
    %c0_17 = arith.constant 0 : index
    %c0_18 = arith.constant 0 : index
    %27 = vector.load %arg2[%c5, %c0_17, %c0_18] : memref<9x8x4xf32, #tpu.memory_space<vmem>>, vector<1x8x4xf32>
    %28 = vector.shape_cast %27 : vector<1x8x4xf32> to vector<8x4xf32>
    %cst_19 = arith.constant dense<0.000000e+00> : vector<8x526xf32>
    %29 = tpu.matmul %28, %26, %cst_19 {dimension_numbers = #tpu.dot_dimension_numbers<[1], [0], [0], [1], [0, 0, 1, 1], [], []>} : vector<8x4xf32>, vector<4x526xf32>, vector<8x526xf32> -> vector<8x526xf32>
    %30 = arith.addf %25, %29 : vector<8x526xf32>
    %31 = vector.extract_strided_slice %1 {offsets = [0, 48], sizes = [4, 526], strides = [1, 1]} : vector<4x576xf32> to vector<4x526xf32>
    %c6 = arith.constant 6 : index
    %c0_20 = arith.constant 0 : index
    %c0_21 = arith.constant 0 : index
    %32 = vector.load %arg2[%c6, %c0_20, %c0_21] : memref<9x8x4xf32, #tpu.memory_space<vmem>>, vector<1x8x4xf32>
    %33 = vector.shape_cast %32 : vector<1x8x4xf32> to vector<8x4xf32>
    %cst_22 = arith.constant dense<0.000000e+00> : vector<8x526xf32>
    %34 = tpu.matmul %33, %31, %cst_22 {dimension_numbers = #tpu.dot_dimension_numbers<[1], [0], [0], [1], [0, 0, 1, 1], [], []>} : vector<8x4xf32>, vector<4x526xf32>, vector<8x526xf32> -> vector<8x526xf32>
    %35 = arith.addf %30, %34 : vector<8x526xf32>
    %36 = vector.extract_strided_slice %1 {offsets = [0, 49], sizes = [4, 526], strides = [1, 1]} : vector<4x576xf32> to vector<4x526xf32>
    %c7 = arith.constant 7 : index
    %c0_23 = arith.constant 0 : index
    %c0_24 = arith.constant 0 : index
    %37 = vector.load %arg2[%c7, %c0_23, %c0_24] : memref<9x8x4xf32, #tpu.memory_space<vmem>>, vector<1x8x4xf32>
    %38 = vector.shape_cast %37 : vector<1x8x4xf32> to vector<8x4xf32>
    %cst_25 = arith.constant dense<0.000000e+00> : vector<8x526xf32>
    %39 = tpu.matmul %38, %36, %cst_25 {dimension_numbers = #tpu.dot_dimension_numbers<[1], [0], [0], [1], [0, 0, 1, 1], [], []>} : vector<8x4xf32>, vector<4x526xf32>, vector<8x526xf32> -> vector<8x526xf32>
    %40 = arith.addf %35, %39 : vector<8x526xf32>
    %41 = vector.extract_strided_slice %1 {offsets = [0, 50], sizes = [4, 526], strides = [1, 1]} : vector<4x576xf32> to vector<4x526xf32>
    %c8 = arith.constant 8 : index
    %c0_26 = arith.constant 0 : index
    %c0_27 = arith.constant 0 : index
    %42 = vector.load %arg2[%c8, %c0_26, %c0_27] : memref<9x8x4xf32, #tpu.memory_space<vmem>>, vector<1x8x4xf32>
    %43 = vector.shape_cast %42 : vector<1x8x4xf32> to vector<8x4xf32>
    %cst_28 = arith.constant dense<0.000000e+00> : vector<8x526xf32>
    %44 = tpu.matmul %43, %41, %cst_28 {dimension_numbers = #tpu.dot_dimension_numbers<[1], [0], [0], [1], [0, 0, 1, 1], [], []>} : vector<8x4xf32>, vector<4x526xf32>, vector<8x526xf32> -> vector<8x526xf32>
    %45 = arith.addf %40, %44 : vector<8x526xf32>
    %c0_29 = arith.constant 0 : index
    %c0_30 = arith.constant 0 : index
    %46 = vector.load %arg3[%c0_29, %c0_30] : memref<8x1xf32, #tpu.memory_space<vmem>>, vector<8x1xf32>
    %47 = vector.broadcast %46 : vector<8x1xf32> to vector<8x526xf32>
    %48 = arith.addf %45, %47 : vector<8x526xf32>
    %49 = vector.extract_strided_slice %48 {offsets = [0, 0], sizes = [8, 501], strides = [1, 1]} : vector<8x526xf32> to vector<8x501xf32>
    %50 = vector.extract_strided_slice %48 {offsets = [0, 1], sizes = [8, 501], strides = [1, 1]} : vector<8x526xf32> to vector<8x501xf32>
    %51 = arith.maximumf %49, %50 : vector<8x501xf32>
    %52 = vector.extract_strided_slice %48 {offsets = [0, 24], sizes = [8, 501], strides = [1, 1]} : vector<8x526xf32> to vector<8x501xf32>
    %53 = vector.extract_strided_slice %48 {offsets = [0, 25], sizes = [8, 501], strides = [1, 1]} : vector<8x526xf32> to vector<8x501xf32>
    %54 = arith.maximumf %52, %53 : vector<8x501xf32>
    %55 = arith.maximumf %51, %54 : vector<8x501xf32>
    %cst_31 = arith.constant 0.000000e+00 : f32
    %56 = vector.broadcast %cst_31 : f32 to vector<8x501xf32>
    %57 = arith.maximumf %55, %56 : vector<8x501xf32>
    %c0_32 = arith.constant 0 : index
    %c0_33 = arith.constant 0 : index
    %58 = vector.load %arg4[%c0_32, %c0_33] : memref<501x121xf32, #tpu.memory_space<vmem>>, vector<501x121xf32>
    %cst_34 = arith.constant dense<0.000000e+00> : vector<8x121xf32>
    %59 = tpu.matmul %57, %58, %cst_34 {dimension_numbers = #tpu.dot_dimension_numbers<[1], [0], [0], [1], [0, 0, 1, 1], [], []>} : vector<8x501xf32>, vector<501x121xf32>, vector<8x121xf32> -> vector<8x121xf32>
    %60 = vector.extract_strided_slice %59 {offsets = [0, 0], sizes = [8, 97], strides = [1, 1]} : vector<8x121xf32> to vector<8x97xf32>
    %c0_35 = arith.constant 0 : index
    %c0_36 = arith.constant 0 : index
    %c0_37 = arith.constant 0 : index
    %61 = vector.load %arg5[%c0_35, %c0_36, %c0_37] : memref<9x8x8xf32, #tpu.memory_space<vmem>>, vector<1x8x8xf32>
    %62 = vector.shape_cast %61 : vector<1x8x8xf32> to vector<8x8xf32>
    %cst_38 = arith.constant dense<0.000000e+00> : vector<8x97xf32>
    %63 = tpu.matmul %62, %60, %cst_38 {dimension_numbers = #tpu.dot_dimension_numbers<[1], [0], [0], [1], [0, 0, 1, 1], [], []>} : vector<8x8xf32>, vector<8x97xf32>, vector<8x97xf32> -> vector<8x97xf32>
    %64 = vector.extract_strided_slice %59 {offsets = [0, 1], sizes = [8, 97], strides = [1, 1]} : vector<8x121xf32> to vector<8x97xf32>
    %c1_39 = arith.constant 1 : index
    %c0_40 = arith.constant 0 : index
    %c0_41 = arith.constant 0 : index
    %65 = vector.load %arg5[%c1_39, %c0_40, %c0_41] : memref<9x8x8xf32, #tpu.memory_space<vmem>>, vector<1x8x8xf32>
    %66 = vector.shape_cast %65 : vector<1x8x8xf32> to vector<8x8xf32>
    %cst_42 = arith.constant dense<0.000000e+00> : vector<8x97xf32>
    %67 = tpu.matmul %66, %64, %cst_42 {dimension_numbers = #tpu.dot_dimension_numbers<[1], [0], [0], [1], [0, 0, 1, 1], [], []>} : vector<8x8xf32>, vector<8x97xf32>, vector<8x97xf32> -> vector<8x97xf32>
    %68 = arith.addf %63, %67 : vector<8x97xf32>
    %69 = vector.extract_strided_slice %59 {offsets = [0, 2], sizes = [8, 97], strides = [1, 1]} : vector<8x121xf32> to vector<8x97xf32>
    %c2_43 = arith.constant 2 : index
    %c0_44 = arith.constant 0 : index
    %c0_45 = arith.constant 0 : index
    %70 = vector.load %arg5[%c2_43, %c0_44, %c0_45] : memref<9x8x8xf32, #tpu.memory_space<vmem>>, vector<1x8x8xf32>
    %71 = vector.shape_cast %70 : vector<1x8x8xf32> to vector<8x8xf32>
    %cst_46 = arith.constant dense<0.000000e+00> : vector<8x97xf32>
    %72 = tpu.matmul %71, %69, %cst_46 {dimension_numbers = #tpu.dot_dimension_numbers<[1], [0], [0], [1], [0, 0, 1, 1], [], []>} : vector<8x8xf32>, vector<8x97xf32>, vector<8x97xf32> -> vector<8x97xf32>
    %73 = arith.addf %68, %72 : vector<8x97xf32>
    %74 = vector.extract_strided_slice %59 {offsets = [0, 11], sizes = [8, 97], strides = [1, 1]} : vector<8x121xf32> to vector<8x97xf32>
    %c3_47 = arith.constant 3 : index
    %c0_48 = arith.constant 0 : index
    %c0_49 = arith.constant 0 : index
    %75 = vector.load %arg5[%c3_47, %c0_48, %c0_49] : memref<9x8x8xf32, #tpu.memory_space<vmem>>, vector<1x8x8xf32>
    %76 = vector.shape_cast %75 : vector<1x8x8xf32> to vector<8x8xf32>
    %cst_50 = arith.constant dense<0.000000e+00> : vector<8x97xf32>
    %77 = tpu.matmul %76, %74, %cst_50 {dimension_numbers = #tpu.dot_dimension_numbers<[1], [0], [0], [1], [0, 0, 1, 1], [], []>} : vector<8x8xf32>, vector<8x97xf32>, vector<8x97xf32> -> vector<8x97xf32>
    %78 = arith.addf %73, %77 : vector<8x97xf32>
    %79 = vector.extract_strided_slice %59 {offsets = [0, 12], sizes = [8, 97], strides = [1, 1]} : vector<8x121xf32> to vector<8x97xf32>
    %c4_51 = arith.constant 4 : index
    %c0_52 = arith.constant 0 : index
    %c0_53 = arith.constant 0 : index
    %80 = vector.load %arg5[%c4_51, %c0_52, %c0_53] : memref<9x8x8xf32, #tpu.memory_space<vmem>>, vector<1x8x8xf32>
    %81 = vector.shape_cast %80 : vector<1x8x8xf32> to vector<8x8xf32>
    %cst_54 = arith.constant dense<0.000000e+00> : vector<8x97xf32>
    %82 = tpu.matmul %81, %79, %cst_54 {dimension_numbers = #tpu.dot_dimension_numbers<[1], [0], [0], [1], [0, 0, 1, 1], [], []>} : vector<8x8xf32>, vector<8x97xf32>, vector<8x97xf32> -> vector<8x97xf32>
    %83 = arith.addf %78, %82 : vector<8x97xf32>
    %84 = vector.extract_strided_slice %59 {offsets = [0, 13], sizes = [8, 97], strides = [1, 1]} : vector<8x121xf32> to vector<8x97xf32>
    %c5_55 = arith.constant 5 : index
    %c0_56 = arith.constant 0 : index
    %c0_57 = arith.constant 0 : index
    %85 = vector.load %arg5[%c5_55, %c0_56, %c0_57] : memref<9x8x8xf32, #tpu.memory_space<vmem>>, vector<1x8x8xf32>
    %86 = vector.shape_cast %85 : vector<1x8x8xf32> to vector<8x8xf32>
    %cst_58 = arith.constant dense<0.000000e+00> : vector<8x97xf32>
    %87 = tpu.matmul %86, %84, %cst_58 {dimension_numbers = #tpu.dot_dimension_numbers<[1], [0], [0], [1], [0, 0, 1, 1], [], []>} : vector<8x8xf32>, vector<8x97xf32>, vector<8x97xf32> -> vector<8x97xf32>
    %88 = arith.addf %83, %87 : vector<8x97xf32>
    %89 = vector.extract_strided_slice %59 {offsets = [0, 22], sizes = [8, 97], strides = [1, 1]} : vector<8x121xf32> to vector<8x97xf32>
    %c6_59 = arith.constant 6 : index
    %c0_60 = arith.constant 0 : index
    %c0_61 = arith.constant 0 : index
    %90 = vector.load %arg5[%c6_59, %c0_60, %c0_61] : memref<9x8x8xf32, #tpu.memory_space<vmem>>, vector<1x8x8xf32>
    %91 = vector.shape_cast %90 : vector<1x8x8xf32> to vector<8x8xf32>
    %cst_62 = arith.constant dense<0.000000e+00> : vector<8x97xf32>
    %92 = tpu.matmul %91, %89, %cst_62 {dimension_numbers = #tpu.dot_dimension_numbers<[1], [0], [0], [1], [0, 0, 1, 1], [], []>} : vector<8x8xf32>, vector<8x97xf32>, vector<8x97xf32> -> vector<8x97xf32>
    %93 = arith.addf %88, %92 : vector<8x97xf32>
    %94 = vector.extract_strided_slice %59 {offsets = [0, 23], sizes = [8, 97], strides = [1, 1]} : vector<8x121xf32> to vector<8x97xf32>
    %c7_63 = arith.constant 7 : index
    %c0_64 = arith.constant 0 : index
    %c0_65 = arith.constant 0 : index
    %95 = vector.load %arg5[%c7_63, %c0_64, %c0_65] : memref<9x8x8xf32, #tpu.memory_space<vmem>>, vector<1x8x8xf32>
    %96 = vector.shape_cast %95 : vector<1x8x8xf32> to vector<8x8xf32>
    %cst_66 = arith.constant dense<0.000000e+00> : vector<8x97xf32>
    %97 = tpu.matmul %96, %94, %cst_66 {dimension_numbers = #tpu.dot_dimension_numbers<[1], [0], [0], [1], [0, 0, 1, 1], [], []>} : vector<8x8xf32>, vector<8x97xf32>, vector<8x97xf32> -> vector<8x97xf32>
    %98 = arith.addf %93, %97 : vector<8x97xf32>
    %99 = vector.extract_strided_slice %59 {offsets = [0, 24], sizes = [8, 97], strides = [1, 1]} : vector<8x121xf32> to vector<8x97xf32>
    %c8_67 = arith.constant 8 : index
    %c0_68 = arith.constant 0 : index
    %c0_69 = arith.constant 0 : index
    %100 = vector.load %arg5[%c8_67, %c0_68, %c0_69] : memref<9x8x8xf32, #tpu.memory_space<vmem>>, vector<1x8x8xf32>
    %101 = vector.shape_cast %100 : vector<1x8x8xf32> to vector<8x8xf32>
    %cst_70 = arith.constant dense<0.000000e+00> : vector<8x97xf32>
    %102 = tpu.matmul %101, %99, %cst_70 {dimension_numbers = #tpu.dot_dimension_numbers<[1], [0], [0], [1], [0, 0, 1, 1], [], []>} : vector<8x8xf32>, vector<8x97xf32>, vector<8x97xf32> -> vector<8x97xf32>
    %103 = arith.addf %98, %102 : vector<8x97xf32>
    %c0_71 = arith.constant 0 : index
    %c0_72 = arith.constant 0 : index
    %104 = vector.load %arg6[%c0_71, %c0_72] : memref<8x1xf32, #tpu.memory_space<vmem>>, vector<8x1xf32>
    %105 = vector.broadcast %104 : vector<8x1xf32> to vector<8x97xf32>
    %106 = arith.addf %103, %105 : vector<8x97xf32>
    %107 = vector.extract_strided_slice %106 {offsets = [0, 0], sizes = [8, 85], strides = [1, 1]} : vector<8x97xf32> to vector<8x85xf32>
    %108 = vector.extract_strided_slice %106 {offsets = [0, 1], sizes = [8, 85], strides = [1, 1]} : vector<8x97xf32> to vector<8x85xf32>
    %109 = arith.maximumf %107, %108 : vector<8x85xf32>
    %110 = vector.extract_strided_slice %106 {offsets = [0, 11], sizes = [8, 85], strides = [1, 1]} : vector<8x97xf32> to vector<8x85xf32>
    %111 = vector.extract_strided_slice %106 {offsets = [0, 12], sizes = [8, 85], strides = [1, 1]} : vector<8x97xf32> to vector<8x85xf32>
    %112 = arith.maximumf %110, %111 : vector<8x85xf32>
    %113 = arith.maximumf %109, %112 : vector<8x85xf32>
    %cst_73 = arith.constant 0.000000e+00 : f32
    %114 = vector.broadcast %cst_73 : f32 to vector<8x85xf32>
    %115 = arith.maximumf %113, %114 : vector<8x85xf32>
    %c0_74 = arith.constant 0 : index
    %c0_75 = arith.constant 0 : index
    %116 = vector.load %arg7[%c0_74, %c0_75] : memref<85x16xf32, #tpu.memory_space<vmem>>, vector<85x16xf32>
    %cst_76 = arith.constant dense<0.000000e+00> : vector<8x16xf32>
    %117 = tpu.matmul %115, %116, %cst_76 {dimension_numbers = #tpu.dot_dimension_numbers<[1], [0], [0], [1], [0, 0, 1, 1], [], []>} : vector<8x85xf32>, vector<85x16xf32>, vector<8x16xf32> -> vector<8x16xf32>
    %118 = vector.extract_strided_slice %117 {offsets = [0, 0], sizes = [8, 6], strides = [1, 1]} : vector<8x16xf32> to vector<8x6xf32>
    %c0_77 = arith.constant 0 : index
    %c0_78 = arith.constant 0 : index
    %c0_79 = arith.constant 0 : index
    %119 = vector.load %arg8[%c0_77, %c0_78, %c0_79] : memref<9x8x8xf32, #tpu.memory_space<vmem>>, vector<1x8x8xf32>
    %120 = vector.shape_cast %119 : vector<1x8x8xf32> to vector<8x8xf32>
    %cst_80 = arith.constant dense<0.000000e+00> : vector<8x6xf32>
    %121 = tpu.matmul %120, %118, %cst_80 {dimension_numbers = #tpu.dot_dimension_numbers<[1], [0], [0], [1], [0, 0, 1, 1], [], []>} : vector<8x8xf32>, vector<8x6xf32>, vector<8x6xf32> -> vector<8x6xf32>
    %122 = vector.extract_strided_slice %117 {offsets = [0, 1], sizes = [8, 6], strides = [1, 1]} : vector<8x16xf32> to vector<8x6xf32>
    %c1_81 = arith.constant 1 : index
    %c0_82 = arith.constant 0 : index
    %c0_83 = arith.constant 0 : index
    %123 = vector.load %arg8[%c1_81, %c0_82, %c0_83] : memref<9x8x8xf32, #tpu.memory_space<vmem>>, vector<1x8x8xf32>
    %124 = vector.shape_cast %123 : vector<1x8x8xf32> to vector<8x8xf32>
    %cst_84 = arith.constant dense<0.000000e+00> : vector<8x6xf32>
    %125 = tpu.matmul %124, %122, %cst_84 {dimension_numbers = #tpu.dot_dimension_numbers<[1], [0], [0], [1], [0, 0, 1, 1], [], []>} : vector<8x8xf32>, vector<8x6xf32>, vector<8x6xf32> -> vector<8x6xf32>
    %126 = arith.addf %121, %125 : vector<8x6xf32>
    %127 = vector.extract_strided_slice %117 {offsets = [0, 2], sizes = [8, 6], strides = [1, 1]} : vector<8x16xf32> to vector<8x6xf32>
    %c2_85 = arith.constant 2 : index
    %c0_86 = arith.constant 0 : index
    %c0_87 = arith.constant 0 : index
    %128 = vector.load %arg8[%c2_85, %c0_86, %c0_87] : memref<9x8x8xf32, #tpu.memory_space<vmem>>, vector<1x8x8xf32>
    %129 = vector.shape_cast %128 : vector<1x8x8xf32> to vector<8x8xf32>
    %cst_88 = arith.constant dense<0.000000e+00> : vector<8x6xf32>
    %130 = tpu.matmul %129, %127, %cst_88 {dimension_numbers = #tpu.dot_dimension_numbers<[1], [0], [0], [1], [0, 0, 1, 1], [], []>} : vector<8x8xf32>, vector<8x6xf32>, vector<8x6xf32> -> vector<8x6xf32>
    %131 = arith.addf %126, %130 : vector<8x6xf32>
    %132 = vector.extract_strided_slice %117 {offsets = [0, 4], sizes = [8, 6], strides = [1, 1]} : vector<8x16xf32> to vector<8x6xf32>
    %c3_89 = arith.constant 3 : index
    %c0_90 = arith.constant 0 : index
    %c0_91 = arith.constant 0 : index
    %133 = vector.load %arg8[%c3_89, %c0_90, %c0_91] : memref<9x8x8xf32, #tpu.memory_space<vmem>>, vector<1x8x8xf32>
    %134 = vector.shape_cast %133 : vector<1x8x8xf32> to vector<8x8xf32>
    %cst_92 = arith.constant dense<0.000000e+00> : vector<8x6xf32>
    %135 = tpu.matmul %134, %132, %cst_92 {dimension_numbers = #tpu.dot_dimension_numbers<[1], [0], [0], [1], [0, 0, 1, 1], [], []>} : vector<8x8xf32>, vector<8x6xf32>, vector<8x6xf32> -> vector<8x6xf32>
    %136 = arith.addf %131, %135 : vector<8x6xf32>
    %137 = vector.extract_strided_slice %117 {offsets = [0, 5], sizes = [8, 6], strides = [1, 1]} : vector<8x16xf32> to vector<8x6xf32>
    %c4_93 = arith.constant 4 : index
    %c0_94 = arith.constant 0 : index
    %c0_95 = arith.constant 0 : index
    %138 = vector.load %arg8[%c4_93, %c0_94, %c0_95] : memref<9x8x8xf32, #tpu.memory_space<vmem>>, vector<1x8x8xf32>
    %139 = vector.shape_cast %138 : vector<1x8x8xf32> to vector<8x8xf32>
    %cst_96 = arith.constant dense<0.000000e+00> : vector<8x6xf32>
    %140 = tpu.matmul %139, %137, %cst_96 {dimension_numbers = #tpu.dot_dimension_numbers<[1], [0], [0], [1], [0, 0, 1, 1], [], []>} : vector<8x8xf32>, vector<8x6xf32>, vector<8x6xf32> -> vector<8x6xf32>
    %141 = arith.addf %136, %140 : vector<8x6xf32>
    %142 = vector.extract_strided_slice %117 {offsets = [0, 6], sizes = [8, 6], strides = [1, 1]} : vector<8x16xf32> to vector<8x6xf32>
    %c5_97 = arith.constant 5 : index
    %c0_98 = arith.constant 0 : index
    %c0_99 = arith.constant 0 : index
    %143 = vector.load %arg8[%c5_97, %c0_98, %c0_99] : memref<9x8x8xf32, #tpu.memory_space<vmem>>, vector<1x8x8xf32>
    %144 = vector.shape_cast %143 : vector<1x8x8xf32> to vector<8x8xf32>
    %cst_100 = arith.constant dense<0.000000e+00> : vector<8x6xf32>
    %145 = tpu.matmul %144, %142, %cst_100 {dimension_numbers = #tpu.dot_dimension_numbers<[1], [0], [0], [1], [0, 0, 1, 1], [], []>} : vector<8x8xf32>, vector<8x6xf32>, vector<8x6xf32> -> vector<8x6xf32>
    %146 = arith.addf %141, %145 : vector<8x6xf32>
    %147 = vector.extract_strided_slice %117 {offsets = [0, 8], sizes = [8, 6], strides = [1, 1]} : vector<8x16xf32> to vector<8x6xf32>
    %c6_101 = arith.constant 6 : index
    %c0_102 = arith.constant 0 : index
    %c0_103 = arith.constant 0 : index
    %148 = vector.load %arg8[%c6_101, %c0_102, %c0_103] : memref<9x8x8xf32, #tpu.memory_space<vmem>>, vector<1x8x8xf32>
    %149 = vector.shape_cast %148 : vector<1x8x8xf32> to vector<8x8xf32>
    %cst_104 = arith.constant dense<0.000000e+00> : vector<8x6xf32>
    %150 = tpu.matmul %149, %147, %cst_104 {dimension_numbers = #tpu.dot_dimension_numbers<[1], [0], [0], [1], [0, 0, 1, 1], [], []>} : vector<8x8xf32>, vector<8x6xf32>, vector<8x6xf32> -> vector<8x6xf32>
    %151 = arith.addf %146, %150 : vector<8x6xf32>
    %152 = vector.extract_strided_slice %117 {offsets = [0, 9], sizes = [8, 6], strides = [1, 1]} : vector<8x16xf32> to vector<8x6xf32>
    %c7_105 = arith.constant 7 : index
    %c0_106 = arith.constant 0 : index
    %c0_107 = arith.constant 0 : index
    %153 = vector.load %arg8[%c7_105, %c0_106, %c0_107] : memref<9x8x8xf32, #tpu.memory_space<vmem>>, vector<1x8x8xf32>
    %154 = vector.shape_cast %153 : vector<1x8x8xf32> to vector<8x8xf32>
    %cst_108 = arith.constant dense<0.000000e+00> : vector<8x6xf32>
    %155 = tpu.matmul %154, %152, %cst_108 {dimension_numbers = #tpu.dot_dimension_numbers<[1], [0], [0], [1], [0, 0, 1, 1], [], []>} : vector<8x8xf32>, vector<8x6xf32>, vector<8x6xf32> -> vector<8x6xf32>
    %156 = arith.addf %151, %155 : vector<8x6xf32>
    %157 = vector.extract_strided_slice %117 {offsets = [0, 10], sizes = [8, 6], strides = [1, 1]} : vector<8x16xf32> to vector<8x6xf32>
    %c8_109 = arith.constant 8 : index
    %c0_110 = arith.constant 0 : index
    %c0_111 = arith.constant 0 : index
    %158 = vector.load %arg8[%c8_109, %c0_110, %c0_111] : memref<9x8x8xf32, #tpu.memory_space<vmem>>, vector<1x8x8xf32>
    %159 = vector.shape_cast %158 : vector<1x8x8xf32> to vector<8x8xf32>
    %cst_112 = arith.constant dense<0.000000e+00> : vector<8x6xf32>
    %160 = tpu.matmul %159, %157, %cst_112 {dimension_numbers = #tpu.dot_dimension_numbers<[1], [0], [0], [1], [0, 0, 1, 1], [], []>} : vector<8x8xf32>, vector<8x6xf32>, vector<8x6xf32> -> vector<8x6xf32>
    %161 = arith.addf %156, %160 : vector<8x6xf32>
    %c0_113 = arith.constant 0 : index
    %c0_114 = arith.constant 0 : index
    %162 = vector.load %arg9[%c0_113, %c0_114] : memref<8x1xf32, #tpu.memory_space<vmem>>, vector<8x1xf32>
    %163 = vector.broadcast %162 : vector<8x1xf32> to vector<8x6xf32>
    %164 = arith.addf %161, %163 : vector<8x6xf32>
    %cst_115 = arith.constant 0.000000e+00 : f32
    %165 = vector.broadcast %cst_115 : f32 to vector<8x6xf32>
    %166 = arith.maximumf %164, %165 : vector<8x6xf32>
    %c0_116 = arith.constant 0 : index
    %c0_117 = arith.constant 0 : index
    %167 = vector.load %arg10[%c0_116, %c0_117] : memref<6x4xf32, #tpu.memory_space<vmem>>, vector<6x4xf32>
    %cst_118 = arith.constant dense<0.000000e+00> : vector<8x4xf32>
    %168 = tpu.matmul %166, %167, %cst_118 {dimension_numbers = #tpu.dot_dimension_numbers<[1], [0], [0], [1], [0, 0, 1, 1], [], []>} : vector<8x6xf32>, vector<6x4xf32>, vector<8x4xf32> -> vector<8x4xf32>
    %c0_119 = arith.constant 0 : index
    %c0_120 = arith.constant 0 : index
    %c0_121 = arith.constant 0 : index
    %169 = vector.load %arg11[%c0_119, %c0_120, %c0_121] : memref<1x8x4xf32, #tpu.memory_space<vmem>>, vector<1x8x4xf32>
    %170 = vector.shape_cast %169 : vector<1x8x4xf32> to vector<8x4xf32>
    %171 = vector.shape_cast %168 : vector<8x4xf32> to vector<1x8x4xf32>
    tpu.vector_store %arg11[%c0_119, %c0_120, %c0_121], %171 {strides = array<i32>} : memref<1x8x4xf32, #tpu.memory_space<vmem>>, vector<1x8x4xf32>,
    return
  }
  func.func @transform_0(%arg0: i32) -> (i32, i32, i32) {
    %c0_i32 = arith.constant 0 : i32
    %c0_i32_0 = arith.constant 0 : i32
    %c0_i32_1 = arith.constant 0 : i32
    return %arg0, %c0_i32, %c0_i32_0 : i32, i32, i32
  }
  func.func @transform_1(%arg0: i32) -> (i32, i32, i32) {
    %c0_i32 = arith.constant 0 : i32
    %c0_i32_0 = arith.constant 0 : i32
    %c0_i32_1 = arith.constant 0 : i32
    %c0_i32_2 = arith.constant 0 : i32
    return %c0_i32, %c0_i32_0, %c0_i32_1 : i32, i32, i32
  }
  func.func @transform_2(%arg0: i32) -> (i32, i32) {
    %c0_i32 = arith.constant 0 : i32
    %c0_i32_0 = arith.constant 0 : i32
    %c0_i32_1 = arith.constant 0 : i32
    return %c0_i32, %c0_i32_0 : i32, i32
  }
  func.func @transform_3(%arg0: i32) -> (i32, i32) {
    %c0_i32 = arith.constant 0 : i32
    %c0_i32_0 = arith.constant 0 : i32
    %c0_i32_1 = arith.constant 0 : i32
    return %c0_i32, %c0_i32_0 : i32, i32
  }
  func.func @transform_4(%arg0: i32) -> (i32, i32, i32) {
    %c0_i32 = arith.constant 0 : i32
    %c0_i32_0 = arith.constant 0 : i32
    %c0_i32_1 = arith.constant 0 : i32
    %c0_i32_2 = arith.constant 0 : i32
    return %c0_i32, %c0_i32_0, %c0_i32_1 : i32, i32, i32
  }
  func.func @transform_5(%arg0: i32) -> (i32, i32) {
    %c0_i32 = arith.constant 0 : i32
    %c0_i32_0 = arith.constant 0 : i32
    %c0_i32_1 = arith.constant 0 : i32
    return %c0_i32, %c0_i32_0 : i32, i32
  }
  func.func @transform_6(%arg0: i32) -> (i32, i32) {
    %c0_i32 = arith.constant 0 : i32
    %c0_i32_0 = arith.constant 0 : i32
    %c0_i32_1 = arith.constant 0 : i32
    return %c0_i32, %c0_i32_0 : i32, i32
  }
  func.func @transform_7(%arg0: i32) -> (i32, i32, i32) {
    %c0_i32 = arith.constant 0 : i32
    %c0_i32_0 = arith.constant 0 : i32
    %c0_i32_1 = arith.constant 0 : i32
    %c0_i32_2 = arith.constant 0 : i32
    return %c0_i32, %c0_i32_0, %c0_i32_1 : i32, i32, i32
  }
  func.func @transform_8(%arg0: i32) -> (i32, i32) {
    %c0_i32 = arith.constant 0 : i32
    %c0_i32_0 = arith.constant 0 : i32
    %c0_i32_1 = arith.constant 0 : i32
    return %c0_i32, %c0_i32_0 : i32, i32
  }
  func.func @transform_9(%arg0: i32) -> (i32, i32) {
    %c0_i32 = arith.constant 0 : i32
    %c0_i32_0 = arith.constant 0 : i32
    %c0_i32_1 = arith.constant 0 : i32
    return %c0_i32, %c0_i32_0 : i32, i32
  }
  func.func @transform_10(%arg0: i32) -> (i32, i32, i32) {
    %c0_i32 = arith.constant 0 : i32
    %c0_i32_0 = arith.constant 0 : i32
    %c0_i32_1 = arith.constant 0 : i32
    return %arg0, %c0_i32, %c0_i32_0 : i32, i32, i32
  }
}

</mosaic_0001>

<llo_original>
// kernel: tpu_custom_call.1
$region0: #{tpu_custom_call.1}
  #allocation0 [shape = 'u32[]', space=smem, size = 0x4, offset = 0x4, fixed_abs, tag = 'smem constant byte address 0x4 - core index']
  #allocation1 [shape = 'u32[144,128]{1,0:T(1,128)}', space=vmem, size = 0x12000, scoped, tag = 'internal scratch']
  %s0 = inlined_call_operand.hbm [shape: f32[2,4,576], index: 0, kind: input, shape index: {}]
  %s1 = inlined_call_operand.vmem [shape: f32[9,8,4], index: 1, kind: input, shape index: {}]
  %s2 = inlined_call_operand.vmem [shape: f32[8,1], index: 2, kind: input, shape index: {}]
  %s3 = inlined_call_operand.vmem [shape: f32[501,121], index: 3, kind: input, shape index: {}]
  %s4 = inlined_call_operand.vmem [shape: f32[9,8,8], index: 4, kind: input, shape index: {}]
  %s5 = inlined_call_operand.vmem [shape: f32[8,1], index: 5, kind: input, shape index: {}]
  %s6 = inlined_call_operand.vmem [shape: f32[85,16], index: 6, kind: input, shape index: {}]
  %s7 = inlined_call_operand.vmem [shape: f32[9,8,8], index: 7, kind: input, shape index: {}]
  %s8 = inlined_call_operand.vmem [shape: f32[8,1], index: 8, kind: input, shape index: {}]
  %s9 = inlined_call_operand.vmem [shape: f32[6,4], index: 9, kind: input, shape index: {}]
  %s10 = inlined_call_operand.vmem [shape: f32[2,8,4], index: 10, kind: output, shape index: {}]
  %s11 = sld [smem:[#allocation0]]
  $region77: #{tpu_custom_call.1} parent=0
    _
  %s13 = ssub.s32 1, %s11
  %s14 = scalar_select 0, %s13, %s11
  $region1: #{tpu_custom_call.1} parent=0
    #allocation2 [shape = 'u8[20480]{0}', space=vmem, size = 0x5000, scoped, tag = 'input window, operand 0']
    #allocation3 [shape = 's32[2]{0}', space=sflag, size = 0x8, scoped, tag = 'scoped memory for tpu_custom_call.1']
    %15 = vsyncpa [#allocation3], 0
    %s16 = scalar_lea.sflag [#allocation3], 1
    %17 = vsyncpa %s16, 0
    loop: start=0, step=1, limit=4
    $region2: #{tpu_custom_call.1} parent=1 // loop_pre_header
      _
    $region3: #{tpu_custom_call.1} parent=1 // loop_header
      %s19 = sphi 0, %s23
      %p20 = scmp.ge.s32.totalorder %s19, 4
      %s29 = sphi 0, %s31
      %s32 = sphi 0, %s29
      %s33 = sphi 0, %s32
      %s49 = sphi 0, %s33
      %s53 = sphi 0, %s53
      %s55 = sphi 0, %s53
      %s56 = sphi 0, %s55
      %s70 = sphi 0, %s56
      %s74 = sphi 0, %s74
      %s76 = sphi 0, %s74
      %s77 = sphi 0, %s76
      %s91 = sphi 0, %s77
      %s95 = sphi 0, %s95
      %s97 = sphi 0, %s95
      %s98 = sphi 0, %s97
      %s112 = sphi 0, %s98
      %s116 = sphi 0, %s116
      %s118 = sphi 0, %s116
      %s119 = sphi 0, %s118
      %s133 = sphi 0, %s119
      %s137 = sphi 0, %s137
      %s139 = sphi 0, %s137
      %s140 = sphi 0, %s139
      %s154 = sphi 0, %s140
      %s158 = sphi 0, %s158
      %s160 = sphi 0, %s158
      %s161 = sphi 0, %s160
      %s175 = sphi 0, %s161
      %s179 = sphi 0, %s179
      %s181 = sphi 0, %s179
      %s182 = sphi 0, %s181
      %s196 = sphi 0, %s182
      %s200 = sphi 0, %s200
      %s202 = sphi 0, %s200
      %s203 = sphi 0, %s202
      %s217 = sphi 0, %s203
      %s221 = sphi 0, %s221
      %s223 = sphi 0, %s221
      %s224 = sphi 0, %s223
      %s238 = sphi 0, %s224
      %s244 = sphi 0, %s246
      %s247 = sphi 0, %s244
      %s248 = sphi 0, %s247
      %s264 = sphi 0, %s248
    $region4: #{tpu_custom_call.1} parent=1 // loop_header_branch
      %22 = sbr.rel (%p20) target = $region8
    $region5: #{tpu_custom_call.1} parent=1 // loop_body
      %s24 = ssub.s32 %s19, 1
      %s25 = ssub.s32 %s19, 2
      %s26 = sadd.s32 %s19, 1
      %s27 = ssub.s32 %s19, %s26
      %p28 = scmp.eq.s32.totalorder %s27, 0
      %s30 = sadd.s32 %s29, 1
      %s31 = scalar_select %p28, %s29, %s30
      %p34 = pneg %p28
      %p35 = scmp.eq.s32.totalorder %s19, 1
      %p36 = por %p34, %p35
      %p37 = scmp.ne.s32.totalorder %s29, %s32
      %p38 = scmp.eq.s32.totalorder %s19, 0
      %p39 = por %p37, %p38
      %p40 = scmp.ne.s32.totalorder %s29, %s32
      %p41 = scmp.eq.s32.totalorder %s24, 1
      %p42 = por %p40, %p41
      %p43 = scmp.ne.s32.totalorder %s32, %s33
      %p44 = scmp.eq.s32.totalorder %s24, 0
      %p45 = por %p43, %p44
      %p46 = scmp.ne.s32.totalorder %s32, %s33
      %p47 = scmp.eq.s32.totalorder %s25, 1
      %p48 = por %p46, %p47
      %p50 = scmp.ne.s32.totalorder %s33, %s49
      %p51 = scmp.eq.s32.totalorder %s25, 0
      %p52 = por %p50, %p51
      %s54 = sadd.s32 %s53, 1
      %p57 = scmp.eq.s32.totalorder %s19, 1
      %p58 = scmp.ne.s32.totalorder %s53, %s55
      %p59 = scmp.eq.s32.totalorder %s19, 0
      %p60 = por %p58, %p59
      %p61 = scmp.ne.s32.totalorder %s53, %s55
      %p62 = scmp.eq.s32.totalorder %s24, 1
      %p63 = por %p61, %p62
      %p64 = scmp.ne.s32.totalorder %s55, %s56
      %p65 = scmp.eq.s32.totalorder %s24, 0
      %p66 = por %p64, %p65
      %p67 = scmp.ne.s32.totalorder %s55, %s56
      %p68 = scmp.eq.s32.totalorder %s25, 1
      %p69 = por %p67, %p68
      %p71 = scmp.ne.s32.totalorder %s56, %s70
      %p72 = scmp.eq.s32.totalorder %s25, 0
      %p73 = por %p71, %p72
      %s75 = sadd.s32 %s74, 1
      %p78 = scmp.eq.s32.totalorder %s19, 1
      %p79 = scmp.ne.s32.totalorder %s74, %s76
      %p80 = scmp.eq.s32.totalorder %s19, 0
      %p81 = por %p79, %p80
      %p82 = scmp.ne.s32.totalorder %s74, %s76
      %p83 = scmp.eq.s32.totalorder %s24, 1
      %p84 = por %p82, %p83
      %p85 = scmp.ne.s32.totalorder %s76, %s77
      %p86 = scmp.eq.s32.totalorder %s24, 0
      %p87 = por %p85, %p86
      %p88 = scmp.ne.s32.totalorder %s76, %s77
      %p89 = scmp.eq.s32.totalorder %s25, 1
      %p90 = por %p88, %p89
      %p92 = scmp.ne.s32.totalorder %s77, %s91
      %p93 = scmp.eq.s32.totalorder %s25, 0
      %p94 = por %p92, %p93
      %s96 = sadd.s32 %s95, 1
      %p99 = scmp.eq.s32.totalorder %s19, 1
      %p100 = scmp.ne.s32.totalorder %s95, %s97
      %p101 = scmp.eq.s32.totalorder %s19, 0
      %p102 = por %p100, %p101
      %p103 = scmp.ne.s32.totalorder %s95, %s97
      %p104 = scmp.eq.s32.totalorder %s24, 1
      %p105 = por %p103, %p104
      %p106 = scmp.ne.s32.totalorder %s97, %s98
      %p107 = scmp.eq.s32.totalorder %s24, 0
      %p108 = por %p106, %p107
      %p109 = scmp.ne.s32.totalorder %s97, %s98
      %p110 = scmp.eq.s32.totalorder %s25, 1
      %p111 = por %p109, %p110
      %p113 = scmp.ne.s32.totalorder %s98, %s112
      %p114 = scmp.eq.s32.totalorder %s25, 0
      %p115 = por %p113, %p114
      %s117 = sadd.s32 %s116, 1
      %p120 = scmp.eq.s32.totalorder %s19, 1
      %p121 = scmp.ne.s32.totalorder %s116, %s118
      %p122 = scmp.eq.s32.totalorder %s19, 0
      %p123 = por %p121, %p122
      %p124 = scmp.ne.s32.totalorder %s116, %s118
      %p125 = scmp.eq.s32.totalorder %s24, 1
      %p126 = por %p124, %p125
      %p127 = scmp.ne.s32.totalorder %s118, %s119
      %p128 = scmp.eq.s32.totalorder %s24, 0
      %p129 = por %p127, %p128
      %p130 = scmp.ne.s32.totalorder %s118, %s119
      %p131 = scmp.eq.s32.totalorder %s25, 1
      %p132 = por %p130, %p131
      %p134 = scmp.ne.s32.totalorder %s119, %s133
      %p135 = scmp.eq.s32.totalorder %s25, 0
      %p136 = por %p134, %p135
      %s138 = sadd.s32 %s137, 1
      %p141 = scmp.eq.s32.totalorder %s19, 1
      %p142 = scmp.ne.s32.totalorder %s137, %s139
      %p143 = scmp.eq.s32.totalorder %s19, 0
      %p144 = por %p142, %p143
      %p145 = scmp.ne.s32.totalorder %s137, %s139
      %p146 = scmp.eq.s32.totalorder %s24, 1
      %p147 = por %p145, %p146
      %p148 = scmp.ne.s32.totalorder %s139, %s140
      %p149 = scmp.eq.s32.totalorder %s24, 0
      %p150 = por %p148, %p149
      %p151 = scmp.ne.s32.totalorder %s139, %s140
      %p152 = scmp.eq.s32.totalorder %s25, 1
      %p153 = por %p151, %p152
      %p155 = scmp.ne.s32.totalorder %s140, %s154
      %p156 = scmp.eq.s32.totalorder %s25, 0
      %p157 = por %p155, %p156
      %s159 = sadd.s32 %s158, 1
      %p162 = scmp.eq.s32.totalorder %s19, 1
      %p163 = scmp.ne.s32.totalorder %s158, %s160
      %p164 = scmp.eq.s32.totalorder %s19, 0
      %p165 = por %p163, %p164
      %p166 = scmp.ne.s32.totalorder %s158, %s160
      %p167 = scmp.eq.s32.totalorder %s24, 1
      %p168 = por %p166, %p167
      %p169 = scmp.ne.s32.totalorder %s160, %s161
      %p170 = scmp.eq.s32.totalorder %s24, 0
      %p171 = por %p169, %p170
      %p172 = scmp.ne.s32.totalorder %s160, %s161
      %p173 = scmp.eq.s32.totalorder %s25, 1
      %p174 = por %p172, %p173
      %p176 = scmp.ne.s32.totalorder %s161, %s175
      %p177 = scmp.eq.s32.totalorder %s25, 0
      %p178 = por %p176, %p177
      %s180 = sadd.s32 %s179, 1
      %p183 = scmp.eq.s32.totalorder %s19, 1
      %p184 = scmp.ne.s32.totalorder %s179, %s181
      %p185 = scmp.eq.s32.totalorder %s19, 0
      %p186 = por %p184, %p185
      %p187 = scmp.ne.s32.totalorder %s179, %s181
      %p188 = scmp.eq.s32.totalorder %s24, 1
      %p189 = por %p187, %p188
      %p190 = scmp.ne.s32.totalorder %s181, %s182
      %p191 = scmp.eq.s32.totalorder %s24, 0
      %p192 = por %p190, %p191
      %p193 = scmp.ne.s32.totalorder %s181, %s182
      %p194 = scmp.eq.s32.totalorder %s25, 1
      %p195 = por %p193, %p194
      %p197 = scmp.ne.s32.totalorder %s182, %s196
      %p198 = scmp.eq.s32.totalorder %s25, 0
      %p199 = por %p197, %p198
      %s201 = sadd.s32 %s200, 1
      %p204 = scmp.eq.s32.totalorder %s19, 1
      %p205 = scmp.ne.s32.totalorder %s200, %s202
      %p206 = scmp.eq.s32.totalorder %s19, 0
      %p207 = por %p205, %p206
      %p208 = scmp.ne.s32.totalorder %s200, %s202
      %p209 = scmp.eq.s32.totalorder %s24, 1
      %p210 = por %p208, %p209
      %p211 = scmp.ne.s32.totalorder %s202, %s203
      %p212 = scmp.eq.s32.totalorder %s24, 0
      %p213 = por %p211, %p212
      %p214 = scmp.ne.s32.totalorder %s202, %s203
      %p215 = scmp.eq.s32.totalorder %s25, 1
      %p216 = por %p214, %p215
      %p218 = scmp.ne.s32.totalorder %s203, %s217
      %p219 = scmp.eq.s32.totalorder %s25, 0
      %p220 = por %p218, %p219
      %s222 = sadd.s32 %s221, 1
      %p225 = scmp.eq.s32.totalorder %s19, 1
      %p226 = scmp.ne.s32.totalorder %s221, %s223
      %p227 = scmp.eq.s32.totalorder %s19, 0
      %p228 = por %p226, %p227
      %p229 = scmp.ne.s32.totalorder %s221, %s223
      %p230 = scmp.eq.s32.totalorder %s24, 1
      %p231 = por %p229, %p230
      %p232 = scmp.ne.s32.totalorder %s223, %s224
      %p233 = scmp.eq.s32.totalorder %s24, 0
      %p234 = por %p232, %p233
      %p235 = scmp.ne.s32.totalorder %s223, %s224
      %p236 = scmp.eq.s32.totalorder %s25, 1
      %p237 = por %p235, %p236
      %p239 = scmp.ne.s32.totalorder %s224, %s238
      %p240 = scmp.eq.s32.totalorder %s25, 0
      %p241 = por %p239, %p240
      %s242 = ssub.s32 %s19, %s26
      %p243 = scmp.eq.s32.totalorder %s242, 0
      %s245 = sadd.s32 %s244, 1
      %s246 = scalar_select %p243, %s244, %s245
      %p249 = pneg %p243
      %p250 = scmp.eq.s32.totalorder %s19, 1
      %p251 = por %p249, %p250
      %p252 = scmp.ne.s32.totalorder %s244, %s247
      %p253 = scmp.eq.s32.totalorder %s19, 0
      %p254 = por %p252, %p253
      %p255 = scmp.ne.s32.totalorder %s244, %s247
      %p256 = scmp.eq.s32.totalorder %s24, 1
      %p257 = por %p255, %p256
      %p258 = scmp.ne.s32.totalorder %s247, %s248
      %p259 = scmp.eq.s32.totalorder %s24, 0
      %p260 = por %p258, %p259
      %p261 = scmp.ne.s32.totalorder %s247, %s248
      %p262 = scmp.eq.s32.totalorder %s25, 1
      %p263 = por %p261, %p262
      %p265 = scmp.ne.s32.totalorder %s248, %s264
      %p266 = scmp.eq.s32.totalorder %s25, 0
      %p267 = por %p265, %p266
      %p268 = scmp.le.s32.totalorder 1, %s19
      %p269 = scmp.lt.s32.totalorder %s19, 3
      %p270 = pnand %p268, %p269
      %p271 = pneg %p270
      // Predicated region
      $region9: #{tpu_custom_call.1} parent=5 // pred_check
        _
      $region10: #{tpu_custom_call.1} parent=5 // pred_check_branch
        %273 = sbr.rel (%p270) target = $region12
      $region11: #{tpu_custom_call.1} parent=5 // pred_region
        %s274 = ssub.s32 %s19, 1
        // Predicated region
        $region13: #{tpu_custom_call.1} parent=11 // pred_check
          %p275 = pneg %p66
        $region14: #{tpu_custom_call.1} parent=11 // pred_check_branch
          %277 = sbr.rel (%p275) target = $region16
        $region15: #{tpu_custom_call.1} parent=11 // pred_region
          _
        $region16: #{tpu_custom_call.1} parent=11 // pred_fallthru
          _
        // Predicated region
        $region17: #{tpu_custom_call.1} parent=11 // pred_check
          %p278 = pneg %p87
        $region18: #{tpu_custom_call.1} parent=11 // pred_check_branch
          %280 = sbr.rel (%p278) target = $region20
        $region19: #{tpu_custom_call.1} parent=11 // pred_region
          _
        $region20: #{tpu_custom_call.1} parent=11 // pred_fallthru
          _
        // Predicated region
        $region21: #{tpu_custom_call.1} parent=11 // pred_check
          %p281 = pneg %p108
        $region22: #{tpu_custom_call.1} parent=11 // pred_check_branch
          %283 = sbr.rel (%p281) target = $region24
        $region23: #{tpu_custom_call.1} parent=11 // pred_region
          _
        $region24: #{tpu_custom_call.1} parent=11 // pred_fallthru
          _
        // Predicated region
        $region25: #{tpu_custom_call.1} parent=11 // pred_check
          %p284 = pneg %p129
        $region26: #{tpu_custom_call.1} parent=11 // pred_check_branch
          %286 = sbr.rel (%p284) target = $region28
        $region27: #{tpu_custom_call.1} parent=11 // pred_region
          _
        $region28: #{tpu_custom_call.1} parent=11 // pred_fallthru
          _
        // Predicated region
        $region29: #{tpu_custom_call.1} parent=11 // pred_check
          %p287 = pneg %p150
        $region30: #{tpu_custom_call.1} parent=11 // pred_check_branch
          %289 = sbr.rel (%p287) target = $region32
        $region31: #{tpu_custom_call.1} parent=11 // pred_region
          _
        $region32: #{tpu_custom_call.1} parent=11 // pred_fallthru
          _
        // Predicated region
        $region33: #{tpu_custom_call.1} parent=11 // pred_check
          %p290 = pneg %p171
        $region34: #{tpu_custom_call.1} parent=11 // pred_check_branch
          %292 = sbr.rel (%p290) target = $region36
        $region35: #{tpu_custom_call.1} parent=11 // pred_region
          _
        $region36: #{tpu_custom_call.1} parent=11 // pred_fallthru
          _
        // Predicated region
        $region37: #{tpu_custom_call.1} parent=11 // pred_check
          %p293 = pneg %p192
        $region38: #{tpu_custom_call.1} parent=11 // pred_check_branch
          %295 = sbr.rel (%p293) target = $region40
        $region39: #{tpu_custom_call.1} parent=11 // pred_region
          _
        $region40: #{tpu_custom_call.1} parent=11 // pred_fallthru
          _
        // Predicated region
        $region41: #{tpu_custom_call.1} parent=11 // pred_check
          %p296 = pneg %p213
        $region42: #{tpu_custom_call.1} parent=11 // pred_check_branch
          %298 = sbr.rel (%p296) target = $region44
        $region43: #{tpu_custom_call.1} parent=11 // pred_region
          _
        $region44: #{tpu_custom_call.1} parent=11 // pred_fallthru
          _
        // Predicated region
        $region45: #{tpu_custom_call.1} parent=11 // pred_check
          %p299 = pneg %p234
        $region46: #{tpu_custom_call.1} parent=11 // pred_check_branch
          %301 = sbr.rel (%p299) target = $region48
        $region47: #{tpu_custom_call.1} parent=11 // pred_region
          _
        $region48: #{tpu_custom_call.1} parent=11 // pred_fallthru
          _
      $region12: #{tpu_custom_call.1} parent=5 // pred_fallthru
        _
      %p302 = scmp.lt.s32.totalorder %s19, 2
      // Predicated region
      $region49: #{tpu_custom_call.1} parent=5 // pred_check
        %p303 = pneg %p302
      $region50: #{tpu_custom_call.1} parent=5 // pred_check_branch
        %305 = sbr.rel (%p303) target = $region52
      $region51: #{tpu_custom_call.1} parent=5 // pred_region
        // Predicated region
        $region53: #{tpu_custom_call.1} parent=51 // pred_check
          %p306 = pneg %p39
        $region54: #{tpu_custom_call.1} parent=51 // pred_check_branch
          %308 = sbr.rel (%p306) target = $region56
        $region55: #{tpu_custom_call.1} parent=51 // pred_region
          %s309 = sand.u32 %s29, 1
          %s310 = scalar_lea.sflag [#allocation3], %s309
          %s311 = sand.u32 %s29, 1
          %s312 = smul.addr %s311, 20
          %s313 = scalar_lea.vmem [#allocation2], %s312
          %s315 = ssub.s32 320, 320
          %316 = vsyncadd %s310, %s315
          %s317 = smul.addr %s19, 5
          %s318 = smul.addr %s317, 64
          %s319 = scalar_lea.hbm %s0, %s318
          %s321 = sshll.u32 %s313, 4
          %s322 = int_to_ptr.vmem [resolvable:$true] %s321
          %324 = dma.hbm_to_vmem [thread:$0]  %s319, 320, %s322, %s310
        $region56: #{tpu_custom_call.1} parent=51 // pred_fallthru
          _
      $region52: #{tpu_custom_call.1} parent=5 // pred_fallthru
        _
      %p325 = scmp.le.s32.totalorder 1, %s19
      %p326 = scmp.lt.s32.totalorder %s19, 3
      %p327 = pnand %p325, %p326
      %p328 = pneg %p327
      // Predicated region
      $region57: #{tpu_custom_call.1} parent=5 // pred_check
        _
      $region58: #{tpu_custom_call.1} parent=5 // pred_check_branch
        %330 = sbr.rel (%p327) target = $region60
      $region59: #{tpu_custom_call.1} parent=5 // pred_region
        %s331 = ssub.s32 %s19, 1
        %s332 = sand.u32 %s32, 1
        %s333 = scalar_lea.sflag [#allocation3], %s332
        %s334 = sand.u32 %s32, 1
        %s335 = smul.addr %s334, 20
        %s336 = scalar_lea.vmem [#allocation2], %s335
        // Predicated region
        $region61: #{tpu_custom_call.1} parent=59 // pred_check
          %p337 = pneg %p45
        $region62: #{tpu_custom_call.1} parent=59 // pred_check_branch
          %339 = sbr.rel (%p337) target = $region64
        $region63: #{tpu_custom_call.1} parent=59 // pred_region
          %340 = dma.done %s333, 320
        $region64: #{tpu_custom_call.1} parent=59 // pred_fallthru
          _
        %s341 = sand.u32 %s32, 1
        %s342 = scalar_lea.sflag [#allocation3], %s341
        %s343 = sand.u32 %s32, 1
        %s344 = smul.addr %s343, 20
        %s345 = scalar_lea.vmem [#allocation2], %s344
        %p346 = pneg %p45
        %p347 = pneg %p42
        %p348 = pneg %p66
        %p349 = pneg %p63
        %p350 = pneg %p87
        %p351 = pneg %p84
        %p352 = pneg %p108
        %p353 = pneg %p105
        %p354 = pneg %p129
        %p355 = pneg %p126
        %p356 = pneg %p150
        %p357 = pneg %p147
        %p358 = pneg %p171
        %p359 = pneg %p168
        %p360 = pneg %p192
        %p361 = pneg %p189
        %p362 = pneg %p213
        %p363 = pneg %p210
        %p364 = pneg %p234
        %p365 = pneg %p231
        %p366 = pneg %p260
        %p367 = pneg %p257
        %p368 = scmp.lt.s32.totalorder %s24, 1
        %s369 = scalar_select %p368, %s24, 1
        %s370 = smul.addr %s369, 8
        %s371 = scalar_lea.vmem %s10, %s370
        %p372 = scmp.lt.s32.totalorder %s24, 1
        %s373 = scalar_select %p372, %s24, 1
        %s374 = smul.addr %s373, 8
        %s375 = scalar_lea.vmem %s10, %s374
        %v376 = vld [vmem:[%s336] sm:$0xff]
        %v377 = vld [vmem:[%s336 + $0x8] sm:$0xff]
        %v378 = vld [vmem:[%s336 + $0x10] sm:$0xf]
        %v379 = vld [vmem:[%s1] sm:$0xff]
        %s380 = scalar_lea.vmem %s1, 8
        %v381 = vld [vmem:[%s380] sm:$0xff]
        %v385 = vcombine.high %v376, %v376
        %v386 = vcombine.high %v377, %v377
        %387 = vrot.lane.b32.xlu0 %v376, 127
        %v388 = vpop.permute.xlu0 %387
        %389 = vrot.lane.b32.xlu0 %v385, 127
        %v390 = vpop.permute.xlu0 %389
        %391 = vrot.lane.b32.xlu0 %v377, 127
        %v392 = vpop.permute.xlu0 %391
        %393 = vrot.lane.b32.xlu0 %v386, 127
        %v394 = vpop.permute.xlu0 %393
        %395 = vrot.lane.b32.xlu0 %v378, 127
        %v396 = vpop.permute.xlu0 %395
        %vm397 = vcmask 1039360
        %v398 = vsel %vm397, %v388, %v390
        %v399 = vsel %vm397, %v390, %v392
        %v400 = vsel %vm397, %v392, %v394
        %v401 = vsel %vm397, %v394, %v396
        %vm402 = vcmask 31744
        %v404 = vsel %vm402, %v381, 0
        %vm406 = vcmask 1043456
        %v407 = vsel %vm406, %v398, 0
        %v409 = vsel %vm406, %v399, 0
        %v411 = vsel %vm406, %v400, 0
        %v413 = vsel %vm406, %v401, 0
        %v415 = vsel %vm406, %v396, 0
        %417 = vmatprep.subr.mxu0 %v409
        %418 = vmatpush1.msra.mxu0 %v407
        %419 = vmatprep.subr.mxu0 0.0
        %420 = vmatpush1.msra.mxu0 0.0
        %421 = vmatprep.subr.mxu0 0.0
        %422 = vmatpush1.msra.mxu0 0.0
        %423 = vmatprep.subr.mxu0 0.0
        %424 = vmatpush1.msra.mxu0 0.0
        %425 = vmatprep.subr.mxu0 0.0
        %426 = vmatpush1.msra.mxu0 0.0
        %427 = vmatprep.subr.mxu0 0.0
        %428 = vmatpush1.msra.mxu0 0.0
        %429 = vmatprep.subr.mxu0 0.0
        %430 = vmatpush1.msra.mxu0 0.0
        %431 = vmatprep.subr.mxu0 0.0
        %432 = vmatpush1.msra.mxu0 0.0
        %433 = vmatprep.subr.mxu0 0.0
        %434 = vmatpush1.msra.mxu0 0.0
        %435 = vmatprep.subr.mxu0 0.0
        %436 = vmatpush1.msra.mxu0 0.0
        %437 = vmatprep.subr.mxu0 0.0
        %438 = vmatpush1.msra.mxu0 0.0
        %439 = vmatprep.subr.mxu0 0.0
        %440 = vmatpush1.msra.mxu0 0.0
        %441 = vmatprep.subr.mxu0 0.0
        %442 = vmatpush1.msra.mxu0 0.0
        %443 = vmatprep.subr.mxu0 0.0
        %444 = vmatpush1.msra.mxu0 0.0
        %445 = vmatprep.subr.mxu0 0.0
        %446 = vmatpush1.msra.mxu0 0.0
        %447 = vmatprep.subr.mxu0 0.0
        %448 = vmatpush1.msra.mxu0 0.0
        %449 = vmatprep.subr.mxu0 0.0
        %450 = vmatpush1.msra.mxu0 0.0
        %451 = vmatprep.subr.mxu0 0.0
        %452 = vmatpush1.msra.mxu0 0.0
        %453 = vmatprep.subr.mxu0 0.0
        %454 = vmatpush1.msra.mxu0 0.0
        %455 = vmatprep.subr.mxu0 0.0
        %456 = vmatpush1.msra.mxu0 0.0
        %457 = vmatprep.subr.mxu0 0.0
        %458 = vmatpush1.msra.mxu0 0.0
        %459 = vmatprep.subr.mxu0 0.0
        %460 = vmatpush1.msra.mxu0 0.0
        %461 = vmatprep.subr.mxu0 0.0
        %462 = vmatpush1.msra.mxu0 0.0
        %463 = vmatprep.subr.mxu0 0.0
        %464 = vmatpush1.msra.mxu0 0.0
        %465 = vmatprep.subr.mxu0 0.0
        %466 = vmatpush1.msra.mxu0 0.0
        %467 = vmatprep.subr.mxu0 0.0
        %468 = vmatpush1.msra.mxu0 0.0
        %469 = vmatprep.subr.mxu0 0.0
        %470 = vmatpush1.msra.mxu0 0.0
        %471 = vmatprep.subr.mxu0 0.0
        %472 = vmatpush1.msra.mxu0 0.0
        %473 = vmatprep.subr.mxu0 0.0
        %474 = vmatpush1.msra.mxu0 0.0
        %475 = vmatprep.subr.mxu0 0.0
        %476 = vmatpush1.msra.mxu0 0.0
        %477 = vmatprep.subr.mxu0 0.0
        %478 = vmatpush1.msra.mxu0 0.0
        %479 = vmatprep.subr.mxu0 0.0
        %480 = vmatpush1.msra.mxu0 0.0
        %481 = vmatprep.mubr.f32.mxu0 0.0
        %482 = vmatmul.mubr.f32.gmra.mrb[0].mxu0 %v404
        %v483 = vpop.f32.mrb[0].mxu0
        %v484 = vadd.f32 0.0, %v483
        %v485 = vpop.f32.mrb[0].mxu0
        %v486 = vadd.f32 0.0, %v485
        %487 = vdwg.mxu0
        %488 = vmatprep.subr.mxu0 %v413
        %489 = vmatpush1.msra.mxu0 %v411
        %490 = vmatprep.subr.mxu0 0.0
        %491 = vmatpush1.msra.mxu0 0.0
        %492 = vmatprep.subr.mxu0 0.0
        %493 = vmatpush1.msra.mxu0 0.0
        %494 = vmatprep.subr.mxu0 0.0
        %495 = vmatpush1.msra.mxu0 0.0
        %496 = vmatprep.subr.mxu0 0.0
        %497 = vmatpush1.msra.mxu0 0.0
        %498 = vmatprep.subr.mxu0 0.0
        %499 = vmatpush1.msra.mxu0 0.0
        %500 = vmatprep.subr.mxu0 0.0
        %501 = vmatpush1.msra.mxu0 0.0
        %502 = vmatprep.subr.mxu0 0.0
        %503 = vmatpush1.msra.mxu0 0.0
        %504 = vmatprep.subr.mxu0 0.0
        %505 = vmatpush1.msra.mxu0 0.0
        %506 = vmatprep.subr.mxu0 0.0
        %507 = vmatpush1.msra.mxu0 0.0
        %508 = vmatprep.subr.mxu0 0.0
        %509 = vmatpush1.msra.mxu0 0.0
        %510 = vmatprep.subr.mxu0 0.0
        %511 = vmatpush1.msra.mxu0 0.0
        %512 = vmatprep.subr.mxu0 0.0
        %513 = vmatpush1.msra.mxu0 0.0
        %514 = vmatprep.subr.mxu0 0.0
        %515 = vmatpush1.msra.mxu0 0.0
        %516 = vmatprep.subr.mxu0 0.0
        %517 = vmatpush1.msra.mxu0 0.0
        %518 = vmatprep.subr.mxu0 0.0
        %519 = vmatpush1.msra.mxu0 0.0
        %520 = vmatprep.subr.mxu0 0.0
        %521 = vmatpush1.msra.mxu0 0.0
        %522 = vmatprep.subr.mxu0 0.0
        %523 = vmatpush1.msra.mxu0 0.0
        %524 = vmatprep.subr.mxu0 0.0
        %525 = vmatpush1.msra.mxu0 0.0
        %526 = vmatprep.subr.mxu0 0.0
        %527 = vmatpush1.msra.mxu0 0.0
        %528 = vmatprep.subr.mxu0 0.0
        %529 = vmatpush1.msra.mxu0 0.0
        %530 = vmatprep.subr.mxu0 0.0
        %531 = vmatpush1.msra.mxu0 0.0
        %532 = vmatprep.subr.mxu0 0.0
        %533 = vmatpush1.msra.mxu0 0.0
        %534 = vmatprep.subr.mxu0 0.0
        %535 = vmatpush1.msra.mxu0 0.0
        %536 = vmatprep.subr.mxu0 0.0
        %537 = vmatpush1.msra.mxu0 0.0
        %538 = vmatprep.subr.mxu0 0.0
        %539 = vmatpush1.msra.mxu0 0.0
        %540 = vmatprep.subr.mxu0 0.0
        %541 = vmatpush1.msra.mxu0 0.0
        %542 = vmatprep.subr.mxu0 0.0
        %543 = vmatpush1.msra.mxu0 0.0
        %544 = vmatprep.subr.mxu0 0.0
        %545 = vmatpush1.msra.mxu0 0.0
        %546 = vmatprep.subr.mxu0 0.0
        %547 = vmatpush1.msra.mxu0 0.0
        %548 = vmatprep.subr.mxu0 0.0
        %549 = vmatpush1.msra.mxu0 0.0
        %550 = vmatprep.subr.mxu0 0.0
        %551 = vmatpush1.msra.mxu0 0.0
        %552 = vmatprep.mubr.f32.mxu0 0.0
        %553 = vmatmul.mubr.f32.gmra.mrb[0].mxu0 %v404
        %v554 = vpop.f32.mrb[0].mxu0
        %v555 = vadd.f32 0.0, %v554
        %v556 = vpop.f32.mrb[0].mxu0
        %v557 = vadd.f32 0.0, %v556
        %558 = vdwg.mxu0
        %559 = vmatprep.subr.mxu0 0.0
        %560 = vmatpush1.msra.mxu0 %v415
        %561 = vmatprep.subr.mxu0 0.0
        %562 = vmatpush1.msra.mxu0 0.0
        %563 = vmatprep.subr.mxu0 0.0
        %564 = vmatpush1.msra.mxu0 0.0
        %565 = vmatprep.subr.mxu0 0.0
        %566 = vmatpush1.msra.mxu0 0.0
        %567 = vmatprep.subr.mxu0 0.0
        %568 = vmatpush1.msra.mxu0 0.0
        %569 = vmatprep.subr.mxu0 0.0
        %570 = vmatpush1.msra.mxu0 0.0
        %571 = vmatprep.subr.mxu0 0.0
        %572 = vmatpush1.msra.mxu0 0.0
        %573 = vmatprep.subr.mxu0 0.0
        %574 = vmatpush1.msra.mxu0 0.0
        %575 = vmatprep.subr.mxu0 0.0
        %576 = vmatpush1.msra.mxu0 0.0
        %577 = vmatprep.subr.mxu0 0.0
        %578 = vmatpush1.msra.mxu0 0.0
        %579 = vmatprep.subr.mxu0 0.0
        %580 = vmatpush1.msra.mxu0 0.0
        %581 = vmatprep.subr.mxu0 0.0
        %582 = vmatpush1.msra.mxu0 0.0
        %583 = vmatprep.subr.mxu0 0.0
        %584 = vmatpush1.msra.mxu0 0.0
        %585 = vmatprep.subr.mxu0 0.0
        %586 = vmatpush1.msra.mxu0 0.0
        %587 = vmatprep.subr.mxu0 0.0
        %588 = vmatpush1.msra.mxu0 0.0
        %589 = vmatprep.subr.mxu0 0.0
        %590 = vmatpush1.msra.mxu0 0.0
        %591 = vmatprep.subr.mxu0 0.0
        %592 = vmatpush1.msra.mxu0 0.0
        %593 = vmatprep.subr.mxu0 0.0
        %594 = vmatpush1.msra.mxu0 0.0
        %595 = vmatprep.subr.mxu0 0.0
        %596 = vmatpush1.msra.mxu0 0.0
        %597 = vmatprep.subr.mxu0 0.0
        %598 = vmatpush1.msra.mxu0 0.0
        %599 = vmatprep.subr.mxu0 0.0
        %600 = vmatpush1.msra.mxu0 0.0
        %601 = vmatprep.subr.mxu0 0.0
        %602 = vmatpush1.msra.mxu0 0.0
        %603 = vmatprep.subr.mxu0 0.0
        %604 = vmatpush1.msra.mxu0 0.0
        %605 = vmatprep.subr.mxu0 0.0
        %606 = vmatpush1.msra.mxu0 0.0
        %607 = vmatprep.subr.mxu0 0.0
        %608 = vmatpush1.msra.mxu0 0.0
        %609 = vmatprep.subr.mxu0 0.0
        %610 = vmatpush1.msra.mxu0 0.0
        %611 = vmatprep.subr.mxu0 0.0
        %612 = vmatpush1.msra.mxu0 0.0
        %613 = vmatprep.subr.mxu0 0.0
        %614 = vmatpush1.msra.mxu0 0.0
        %615 = vmatprep.subr.mxu0 0.0
        %616 = vmatpush1.msra.mxu0 0.0
        %617 = vmatprep.subr.mxu0 0.0
        %618 = vmatpush1.msra.mxu0 0.0
        %619 = vmatprep.subr.mxu0 0.0
        %620 = vmatpush1.msra.mxu0 0.0
        %621 = vmatprep.subr.mxu0 0.0
        %622 = vmatpush1.msra.mxu0 0.0
        %623 = vmatprep.mubr.f32.mxu0 0.0
        %624 = vmatmul.mubr.f32.gmra.mrb[0].mxu0 %v404
        %v625 = vpop.f32.mrb[0].mxu0
        %v626 = vadd.f32 0.0, %v625
        %v627 = vpop.f32.mrb[0].mxu0
        %628 = vdwg.mxu0
        %v630 = vsel %vm402, %v379, 0
        %v632 = vsel %vm406, %v376, 0
        %v634 = vsel %vm406, %v385, 0
        %v636 = vsel %vm406, %v377, 0
        %v638 = vsel %vm406, %v386, 0
        %v640 = vsel %vm406, %v378, 0
        %642 = vmatprep.subr.mxu0 %v634
        %643 = vmatpush1.msra.mxu0 %v632
        %644 = vmatprep.subr.mxu0 0.0
        %645 = vmatpush1.msra.mxu0 0.0
        %646 = vmatprep.subr.mxu0 0.0
        %647 = vmatpush1.msra.mxu0 0.0
        %648 = vmatprep.subr.mxu0 0.0
        %649 = vmatpush1.msra.mxu0 0.0
        %650 = vmatprep.subr.mxu0 0.0
        %651 = vmatpush1.msra.mxu0 0.0
        %652 = vmatprep.subr.mxu0 0.0
        %653 = vmatpush1.msra.mxu0 0.0
        %654 = vmatprep.subr.mxu0 0.0
        %655 = vmatpush1.msra.mxu0 0.0
        %656 = vmatprep.subr.mxu0 0.0
        %657 = vmatpush1.msra.mxu0 0.0
        %658 = vmatprep.subr.mxu0 0.0
        %659 = vmatpush1.msra.mxu0 0.0
        %660 = vmatprep.subr.mxu0 0.0
        %661 = vmatpush1.msra.mxu0 0.0
        %662 = vmatprep.subr.mxu0 0.0
        %663 = vmatpush1.msra.mxu0 0.0
        %664 = vmatprep.subr.mxu0 0.0
        %665 = vmatpush1.msra.mxu0 0.0
        %666 = vmatprep.subr.mxu0 0.0
        %667 = vmatpush1.msra.mxu0 0.0
        %668 = vmatprep.subr.mxu0 0.0
        %669 = vmatpush1.msra.mxu0 0.0
        %670 = vmatprep.subr.mxu0 0.0
        %671 = vmatpush1.msra.mxu0 0.0
        %672 = vmatprep.subr.mxu0 0.0
        %673 = vmatpush1.msra.mxu0 0.0
        %674 = vmatprep.subr.mxu0 0.0
        %675 = vmatpush1.msra.mxu0 0.0
        %676 = vmatprep.subr.mxu0 0.0
        %677 = vmatpush1.msra.mxu0 0.0
        %678 = vmatprep.subr.mxu0 0.0
        %679 = vmatpush1.msra.mxu0 0.0
        %680 = vmatprep.subr.mxu0 0.0
        %681 = vmatpush1.msra.mxu0 0.0
        %682 = vmatprep.subr.mxu0 0.0
        %683 = vmatpush1.msra.mxu0 0.0
        %684 = vmatprep.subr.mxu0 0.0
        %685 = vmatpush1.msra.mxu0 0.0
        %686 = vmatprep.subr.mxu0 0.0
        %687 = vmatpush1.msra.mxu0 0.0
        %688 = vmatprep.subr.mxu0 0.0
        %689 = vmatpush1.msra.mxu0 0.0
        %690 = vmatprep.subr.mxu0 0.0
        %691 = vmatpush1.msra.mxu0 0.0
        %692 = vmatprep.subr.mxu0 0.0
        %693 = vmatpush1.msra.mxu0 0.0
        %694 = vmatprep.subr.mxu0 0.0
        %695 = vmatpush1.msra.mxu0 0.0
        %696 = vmatprep.subr.mxu0 0.0
        %697 = vmatpush1.msra.mxu0 0.0
        %698 = vmatprep.subr.mxu0 0.0
        %699 = vmatpush1.msra.mxu0 0.0
        %700 = vmatprep.subr.mxu0 0.0
        %701 = vmatpush1.msra.mxu0 0.0
        %702 = vmatprep.subr.mxu0 0.0
        %703 = vmatpush1.msra.mxu0 0.0
        %704 = vmatprep.subr.mxu0 0.0
        %705 = vmatpush1.msra.mxu0 0.0
        %706 = vmatprep.mubr.f32.mxu0 0.0
        %707 = vmatmul.mubr.f32.gmra.mrb[0].mxu0 %v630
        %v708 = vpop.f32.mrb[0].mxu0
        %v709 = vadd.f32 %v484, %v708
        %v710 = vpop.f32.mrb[0].mxu0
        %v711 = vadd.f32 %v486, %v710
        %712 = vdwg.mxu0
        %713 = vmatprep.subr.mxu0 %v638
        %714 = vmatpush1.msra.mxu0 %v636
        %715 = vmatprep.subr.mxu0 0.0
        %716 = vmatpush1.msra.mxu0 0.0
        %717 = vmatprep.subr.mxu0 0.0
        %718 = vmatpush1.msra.mxu0 0.0
        %719 = vmatprep.subr.mxu0 0.0
        %720 = vmatpush1.msra.mxu0 0.0
        %721 = vmatprep.subr.mxu0 0.0
        %722 = vmatpush1.msra.mxu0 0.0
        %723 = vmatprep.subr.mxu0 0.0
        %724 = vmatpush1.msra.mxu0 0.0
        %725 = vmatprep.subr.mxu0 0.0
        %726 = vmatpush1.msra.mxu0 0.0
        %727 = vmatprep.subr.mxu0 0.0
        %728 = vmatpush1.msra.mxu0 0.0
        %729 = vmatprep.subr.mxu0 0.0
        %730 = vmatpush1.msra.mxu0 0.0
        %731 = vmatprep.subr.mxu0 0.0
        %732 = vmatpush1.msra.mxu0 0.0
        %733 = vmatprep.subr.mxu0 0.0
        %734 = vmatpush1.msra.mxu0 0.0
        %735 = vmatprep.subr.mxu0 0.0
        %736 = vmatpush1.msra.mxu0 0.0
        %737 = vmatprep.subr.mxu0 0.0
        %738 = vmatpush1.msra.mxu0 0.0
        %739 = vmatprep.subr.mxu0 0.0
        %740 = vmatpush1.msra.mxu0 0.0
        %741 = vmatprep.subr.mxu0 0.0
        %742 = vmatpush1.msra.mxu0 0.0
        %743 = vmatprep.subr.mxu0 0.0
        %744 = vmatpush1.msra.mxu0 0.0
        %745 = vmatprep.subr.mxu0 0.0
        %746 = vmatpush1.msra.mxu0 0.0
        %747 = vmatprep.subr.mxu0 0.0
        %748 = vmatpush1.msra.mxu0 0.0
        %749 = vmatprep.subr.mxu0 0.0
        %750 = vmatpush1.msra.mxu0 0.0
        %751 = vmatprep.subr.mxu0 0.0
        %752 = vmatpush1.msra.mxu0 0.0
        %753 = vmatprep.subr.mxu0 0.0
        %754 = vmatpush1.msra.mxu0 0.0
        %755 = vmatprep.subr.mxu0 0.0
        %756 = vmatpush1.msra.mxu0 0.0
        %757 = vmatprep.subr.mxu0 0.0
        %758 = vmatpush1.msra.mxu0 0.0
        %759 = vmatprep.subr.mxu0 0.0
        %760 = vmatpush1.msra.mxu0 0.0
        %761 = vmatprep.subr.mxu0 0.0
        %762 = vmatpush1.msra.mxu0 0.0
        %763 = vmatprep.subr.mxu0 0.0
        %764 = vmatpush1.msra.mxu0 0.0
        %765 = vmatprep.subr.mxu0 0.0
        %766 = vmatpush1.msra.mxu0 0.0
        %767 = vmatprep.subr.mxu0 0.0
        %768 = vmatpush1.msra.mxu0 0.0
        %769 = vmatprep.subr.mxu0 0.0
        %770 = vmatpush1.msra.mxu0 0.0
        %771 = vmatprep.subr.mxu0 0.0
        %772 = vmatpush1.msra.mxu0 0.0
        %773 = vmatprep.subr.mxu0 0.0
        %774 = vmatpush1.msra.mxu0 0.0
        %775 = vmatprep.subr.mxu0 0.0
        %776 = vmatpush1.msra.mxu0 0.0
        %777 = vmatprep.mubr.f32.mxu0 0.0
        %778 = vmatmul.mubr.f32.gmra.mrb[0].mxu0 %v630
        %v779 = vpop.f32.mrb[0].mxu0
        %v780 = vadd.f32 %v555, %v779
        %v781 = vpop.f32.mrb[0].mxu0
        %v782 = vadd.f32 %v557, %v781
        %783 = vdwg.mxu0
        %784 = vmatprep.subr.mxu0 0.0
        %785 = vmatpush1.msra.mxu0 %v640
        %786 = vmatprep.subr.mxu0 0.0
        %787 = vmatpush1.msra.mxu0 0.0
        %788 = vmatprep.subr.mxu0 0.0
        %789 = vmatpush1.msra.mxu0 0.0
        %790 = vmatprep.subr.mxu0 0.0
        %791 = vmatpush1.msra.mxu0 0.0
        %792 = vmatprep.subr.mxu0 0.0
        %793 = vmatpush1.msra.mxu0 0.0
        %794 = vmatprep.subr.mxu0 0.0
        %795 = vmatpush1.msra.mxu0 0.0
        %796 = vmatprep.subr.mxu0 0.0
        %797 = vmatpush1.msra.mxu0 0.0
        %798 = vmatprep.subr.mxu0 0.0
        %799 = vmatpush1.msra.mxu0 0.0
        %800 = vmatprep.subr.mxu0 0.0
        %801 = vmatpush1.msra.mxu0 0.0
        %802 = vmatprep.subr.mxu0 0.0
        %803 = vmatpush1.msra.mxu0 0.0
        %804 = vmatprep.subr.mxu0 0.0
        %805 = vmatpush1.msra.mxu0 0.0
        %806 = vmatprep.subr.mxu0 0.0
        %807 = vmatpush1.msra.mxu0 0.0
        %808 = vmatprep.subr.mxu0 0.0
        %809 = vmatpush1.msra.mxu0 0.0
        %810 = vmatprep.subr.mxu0 0.0
        %811 = vmatpush1.msra.mxu0 0.0
        %812 = vmatprep.subr.mxu0 0.0
        %813 = vmatpush1.msra.mxu0 0.0
        %814 = vmatprep.subr.mxu0 0.0
        %815 = vmatpush1.msra.mxu0 0.0
        %816 = vmatprep.subr.mxu0 0.0
        %817 = vmatpush1.msra.mxu0 0.0
        %818 = vmatprep.subr.mxu0 0.0
        %819 = vmatpush1.msra.mxu0 0.0
        %820 = vmatprep.subr.mxu0 0.0
        %821 = vmatpush1.msra.mxu0 0.0
        %822 = vmatprep.subr.mxu0 0.0
        %823 = vmatpush1.msra.mxu0 0.0
        %824 = vmatprep.subr.mxu0 0.0
        %825 = vmatpush1.msra.mxu0 0.0
        %826 = vmatprep.subr.mxu0 0.0
        %827 = vmatpush1.msra.mxu0 0.0
        %828 = vmatprep.subr.mxu0 0.0
        %829 = vmatpush1.msra.mxu0 0.0
        %830 = vmatprep.subr.mxu0 0.0
        %831 = vmatpush1.msra.mxu0 0.0
        %832 = vmatprep.subr.mxu0 0.0
        %833 = vmatpush1.msra.mxu0 0.0
        %834 = vmatprep.subr.mxu0 0.0
        %835 = vmatpush1.msra.mxu0 0.0
        %836 = vmatprep.subr.mxu0 0.0
        %837 = vmatpush1.msra.mxu0 0.0
        %838 = vmatprep.subr.mxu0 0.0
        %839 = vmatpush1.msra.mxu0 0.0
        %840 = vmatprep.subr.mxu0 0.0
        %841 = vmatpush1.msra.mxu0 0.0
        %842 = vmatprep.subr.mxu0 0.0
        %843 = vmatpush1.msra.mxu0 0.0
        %844 = vmatprep.subr.mxu0 0.0
        %845 = vmatpush1.msra.mxu0 0.0
        %846 = vmatprep.subr.mxu0 0.0
        %847 = vmatpush1.msra.mxu0 0.0
        %848 = vmatprep.mubr.f32.mxu0 0.0
        %849 = vmatmul.mubr.f32.gmra.mrb[0].mxu0 %v630
        %v850 = vpop.f32.mrb[0].mxu0
        %v851 = vadd.f32 %v626, %v850
        %v852 = vpop.f32.mrb[0].mxu0
        %853 = vdwg.mxu0
        %s854 = scalar_lea.vmem %s1, 16
        %v855 = vld [vmem:[%s854] sm:$0xff]
        %856 = vrot.lane.b32.xlu0 %v376, 126
        %v857 = vpop.permute.xlu0 %856
        %858 = vrot.lane.b32.xlu0 %v385, 126
        %v859 = vpop.permute.xlu0 %858
        %860 = vrot.lane.b32.xlu0 %v377, 126
        %v861 = vpop.permute.xlu0 %860
        %862 = vrot.lane.b32.xlu0 %v386, 126
        %v863 = vpop.permute.xlu0 %862
        %864 = vrot.lane.b32.xlu0 %v378, 126
        %v865 = vpop.permute.xlu0 %864
        %vm866 = vcmask 1031168
        %v867 = vsel %vm866, %v857, %v859
        %v868 = vsel %vm866, %v859, %v861
        %v869 = vsel %vm866, %v861, %v863
        %v870 = vsel %vm866, %v863, %v865
        %v872 = vsel %vm402, %v855, 0
        %v874 = vsel %vm406, %v867, 0
        %v876 = vsel %vm406, %v868, 0
        %v878 = vsel %vm406, %v869, 0
        %v880 = vsel %vm406, %v870, 0
        %v882 = vsel %vm406, %v865, 0
        %884 = vmatprep.subr.mxu0 %v876
        %885 = vmatpush1.msra.mxu0 %v874
        %886 = vmatprep.subr.mxu0 0.0
        %887 = vmatpush1.msra.mxu0 0.0
        %888 = vmatprep.subr.mxu0 0.0
        %889 = vmatpush1.msra.mxu0 0.0
        %890 = vmatprep.subr.mxu0 0.0
        %891 = vmatpush1.msra.mxu0 0.0
        %892 = vmatprep.subr.mxu0 0.0
        %893 = vmatpush1.msra.mxu0 0.0
        %894 = vmatprep.subr.mxu0 0.0
        %895 = vmatpush1.msra.mxu0 0.0
        %896 = vmatprep.subr.mxu0 0.0
        %897 = vmatpush1.msra.mxu0 0.0
        %898 = vmatprep.subr.mxu0 0.0
        %899 = vmatpush1.msra.mxu0 0.0
        %900 = vmatprep.subr.mxu0 0.0
        %901 = vmatpush1.msra.mxu0 0.0
        %902 = vmatprep.subr.mxu0 0.0
        %903 = vmatpush1.msra.mxu0 0.0
        %904 = vmatprep.subr.mxu0 0.0
        %905 = vmatpush1.msra.mxu0 0.0
        %906 = vmatprep.subr.mxu0 0.0
        %907 = vmatpush1.msra.mxu0 0.0
        %908 = vmatprep.subr.mxu0 0.0
        %909 = vmatpush1.msra.mxu0 0.0
        %910 = vmatprep.subr.mxu0 0.0
        %911 = vmatpush1.msra.mxu0 0.0
        %912 = vmatprep.subr.mxu0 0.0
        %913 = vmatpush1.msra.mxu0 0.0
        %914 = vmatprep.subr.mxu0 0.0
        %915 = vmatpush1.msra.mxu0 0.0
        %916 = vmatprep.subr.mxu0 0.0
        %917 = vmatpush1.msra.mxu0 0.0
        %918 = vmatprep.subr.mxu0 0.0
        %919 = vmatpush1.msra.mxu0 0.0
        %920 = vmatprep.subr.mxu0 0.0
        %921 = vmatpush1.msra.mxu0 0.0
        %922 = vmatprep.subr.mxu0 0.0
        %923 = vmatpush1.msra.mxu0 0.0
        %924 = vmatprep.subr.mxu0 0.0
        %925 = vmatpush1.msra.mxu0 0.0
        %926 = vmatprep.subr.mxu0 0.0
        %927 = vmatpush1.msra.mxu0 0.0
        %928 = vmatprep.subr.mxu0 0.0
        %929 = vmatpush1.msra.mxu0 0.0
        %930 = vmatprep.subr.mxu0 0.0
        %931 = vmatpush1.msra.mxu0 0.0
        %932 = vmatprep.subr.mxu0 0.0
        %933 = vmatpush1.msra.mxu0 0.0
        %934 = vmatprep.subr.mxu0 0.0
        %935 = vmatpush1.msra.mxu0 0.0
        %936 = vmatprep.subr.mxu0 0.0
        %937 = vmatpush1.msra.mxu0 0.0
        %938 = vmatprep.subr.mxu0 0.0
        %939 = vmatpush1.msra.mxu0 0.0
        %940 = vmatprep.subr.mxu0 0.0
        %941 = vmatpush1.msra.mxu0 0.0
        %942 = vmatprep.subr.mxu0 0.0
        %943 = vmatpush1.msra.mxu0 0.0
        %944 = vmatprep.subr.mxu0 0.0
        %945 = vmatpush1.msra.mxu0 0.0
        %946 = vmatprep.subr.mxu0 0.0
        %947 = vmatpush1.msra.mxu0 0.0
        %948 = vmatprep.mubr.f32.mxu0 0.0
        %949 = vmatmul.mubr.f32.gmra.mrb[0].mxu0 %v872
        %v950 = vpop.f32.mrb[0].mxu0
        %v951 = vadd.f32 0.0, %v950
        %v952 = vpop.f32.mrb[0].mxu0
        %v953 = vadd.f32 0.0, %v952
        %954 = vdwg.mxu0
        %955 = vmatprep.subr.mxu0 %v880
        %956 = vmatpush1.msra.mxu0 %v878
        %957 = vmatprep.subr.mxu0 0.0
        %958 = vmatpush1.msra.mxu0 0.0
        %959 = vmatprep.subr.mxu0 0.0
        %960 = vmatpush1.msra.mxu0 0.0
        %961 = vmatprep.subr.mxu0 0.0
        %962 = vmatpush1.msra.mxu0 0.0
        %963 = vmatprep.subr.mxu0 0.0
        %964 = vmatpush1.msra.mxu0 0.0
        %965 = vmatprep.subr.mxu0 0.0
        %966 = vmatpush1.msra.mxu0 0.0
        %967 = vmatprep.subr.mxu0 0.0
        %968 = vmatpush1.msra.mxu0 0.0
        %969 = vmatprep.subr.mxu0 0.0
        %970 = vmatpush1.msra.mxu0 0.0
        %971 = vmatprep.subr.mxu0 0.0
        %972 = vmatpush1.msra.mxu0 0.0
        %973 = vmatprep.subr.mxu0 0.0
        %974 = vmatpush1.msra.mxu0 0.0
        %975 = vmatprep.subr.mxu0 0.0
        %976 = vmatpush1.msra.mxu0 0.0
        %977 = vmatprep.subr.mxu0 0.0
        %978 = vmatpush1.msra.mxu0 0.0
        %979 = vmatprep.subr.mxu0 0.0
        %980 = vmatpush1.msra.mxu0 0.0
        %981 = vmatprep.subr.mxu0 0.0
        %982 = vmatpush1.msra.mxu0 0.0
        %983 = vmatprep.subr.mxu0 0.0
        %984 = vmatpush1.msra.mxu0 0.0
        %985 = vmatprep.subr.mxu0 0.0
        %986 = vmatpush1.msra.mxu0 0.0
        %987 = vmatprep.subr.mxu0 0.0
        %988 = vmatpush1.msra.mxu0 0.0
        %989 = vmatprep.subr.mxu0 0.0
        %990 = vmatpush1.msra.mxu0 0.0
        %991 = vmatprep.subr.mxu0 0.0
        %992 = vmatpush1.msra.mxu0 0.0
        %993 = vmatprep.subr.mxu0 0.0
        %994 = vmatpush1.msra.mxu0 0.0
        %995 = vmatprep.subr.mxu0 0.0
        %996 = vmatpush1.msra.mxu0 0.0
        %997 = vmatprep.subr.mxu0 0.0
        %998 = vmatpush1.msra.mxu0 0.0
        %999 = vmatprep.subr.mxu0 0.0
        %1000 = vmatpush1.msra.mxu0 0.0
        %1001 = vmatprep.subr.mxu0 0.0
        %1002 = vmatpush1.msra.mxu0 0.0
        %1003 = vmatprep.subr.mxu0 0.0
        %1004 = vmatpush1.msra.mxu0 0.0
        %1005 = vmatprep.subr.mxu0 0.0
        %1006 = vmatpush1.msra.mxu0 0.0
        %1007 = vmatprep.subr.mxu0 0.0
        %1008 = vmatpush1.msra.mxu0 0.0
        %1009 = vmatprep.subr.mxu0 0.0
        %1010 = vmatpush1.msra.mxu0 0.0
        %1011 = vmatprep.subr.mxu0 0.0
        %1012 = vmatpush1.msra.mxu0 0.0
        %1013 = vmatprep.subr.mxu0 0.0
        %1014 = vmatpush1.msra.mxu0 0.0
        %1015 = vmatprep.subr.mxu0 0.0
        %1016 = vmatpush1.msra.mxu0 0.0
        %1017 = vmatprep.subr.mxu0 0.0
        %1018 = vmatpush1.msra.mxu0 0.0
        %1019 = vmatprep.mubr.f32.mxu0 0.0
        %1020 = vmatmul.mubr.f32.gmra.mrb[0].mxu0 %v872
        %v1021 = vpop.f32.mrb[0].mxu0
        %v1022 = vadd.f32 0.0, %v1021
        %v1023 = vpop.f32.mrb[0].mxu0
        %v1024 = vadd.f32 0.0, %v1023
        %1025 = vdwg.mxu0
        %1026 = vmatprep.subr.mxu0 0.0
        %1027 = vmatpush1.msra.mxu0 %v882
        %1028 = vmatprep.subr.mxu0 0.0
        %1029 = vmatpush1.msra.mxu0 0.0
        %1030 = vmatprep.subr.mxu0 0.0
        %1031 = vmatpush1.msra.mxu0 0.0
        %1032 = vmatprep.subr.mxu0 0.0
        %1033 = vmatpush1.msra.mxu0 0.0
        %1034 = vmatprep.subr.mxu0 0.0
        %1035 = vmatpush1.msra.mxu0 0.0
        %1036 = vmatprep.subr.mxu0 0.0
        %1037 = vmatpush1.msra.mxu0 0.0
        %1038 = vmatprep.subr.mxu0 0.0
        %1039 = vmatpush1.msra.mxu0 0.0
        %1040 = vmatprep.subr.mxu0 0.0
        %1041 = vmatpush1.msra.mxu0 0.0
        %1042 = vmatprep.subr.mxu0 0.0
        %1043 = vmatpush1.msra.mxu0 0.0
        %1044 = vmatprep.subr.mxu0 0.0
        %1045 = vmatpush1.msra.mxu0 0.0
        %1046 = vmatprep.subr.mxu0 0.0
        %1047 = vmatpush1.msra.mxu0 0.0
        %1048 = vmatprep.subr.mxu0 0.0
        %1049 = vmatpush1.msra.mxu0 0.0
        %1050 = vmatprep.subr.mxu0 0.0
        %1051 = vmatpush1.msra.mxu0 0.0
        %1052 = vmatprep.subr.mxu0 0.0
        %1053 = vmatpush1.msra.mxu0 0.0
        %1054 = vmatprep.subr.mxu0 0.0
        %1055 = vmatpush1.msra.mxu0 0.0
        %1056 = vmatprep.subr.mxu0 0.0
        %1057 = vmatpush1.msra.mxu0 0.0
        %1058 = vmatprep.subr.mxu0 0.0
        %1059 = vmatpush1.msra.mxu0 0.0
        %1060 = vmatprep.subr.mxu0 0.0
        %1061 = vmatpush1.msra.mxu0 0.0
        %1062 = vmatprep.subr.mxu0 0.0
        %1063 = vmatpush1.msra.mxu0 0.0
        %1064 = vmatprep.subr.mxu0 0.0
        %1065 = vmatpush1.msra.mxu0 0.0
        %1066 = vmatprep.subr.mxu0 0.0
        %1067 = vmatpush1.msra.mxu0 0.0
        %1068 = vmatprep.subr.mxu0 0.0
        %1069 = vmatpush1.msra.mxu0 0.0
        %1070 = vmatprep.subr.mxu0 0.0
        %1071 = vmatpush1.msra.mxu0 0.0
        %1072 = vmatprep.subr.mxu0 0.0
        %1073 = vmatpush1.msra.mxu0 0.0
        %1074 = vmatprep.subr.mxu0 0.0
        %1075 = vmatpush1.msra.mxu0 0.0
        %1076 = vmatprep.subr.mxu0 0.0
        %1077 = vmatpush1.msra.mxu0 0.0
        %1078 = vmatprep.subr.mxu0 0.0
        %1079 = vmatpush1.msra.mxu0 0.0
        %1080 = vmatprep.subr.mxu0 0.0
        %1081 = vmatpush1.msra.mxu0 0.0
        %1082 = vmatprep.subr.mxu0 0.0
        %1083 = vmatpush1.msra.mxu0 0.0
        %1084 = vmatprep.subr.mxu0 0.0
        %1085 = vmatpush1.msra.mxu0 0.0
        %1086 = vmatprep.subr.mxu0 0.0
        %1087 = vmatpush1.msra.mxu0 0.0
        %1088 = vmatprep.subr.mxu0 0.0
        %1089 = vmatpush1.msra.mxu0 0.0
        %1090 = vmatprep.mubr.f32.mxu0 0.0
        %1091 = vmatmul.mubr.f32.gmra.mrb[0].mxu0 %v872
        %v1092 = vpop.f32.mrb[0].mxu0
        %v1093 = vadd.f32 0.0, %v1092
        %v1094 = vpop.f32.mrb[0].mxu0
        %1095 = vdwg.mxu0
        %v1096 = vadd.f32 %v709, %v951
        %v1097 = vadd.f32 %v711, %v953
        %v1098 = vadd.f32 %v780, %v1022
        %v1099 = vadd.f32 %v782, %v1024
        %v1100 = vadd.f32 %v851, %v1093
        %s1101 = scalar_lea.vmem %s1, 24
        %v1102 = vld [vmem:[%s1101] sm:$0xff]
        %1103 = vrot.lane.b32.xlu0 %v376, 104
        %v1104 = vpop.permute.xlu0 %1103
        %1105 = vrot.lane.b32.xlu0 %v385, 104
        %v1106 = vpop.permute.xlu0 %1105
        %1107 = vrot.lane.b32.xlu0 %v377, 104
        %v1108 = vpop.permute.xlu0 %1107
        %1109 = vrot.lane.b32.xlu0 %v386, 104
        %v1110 = vpop.permute.xlu0 %1109
        %1111 = vrot.lane.b32.xlu0 %v378, 104
        %v1112 = vpop.permute.xlu0 %1111
        %vm1113 = vcmask 850944
        %v1114 = vsel %vm1113, %v1104, %v1106
        %v1115 = vsel %vm1113, %v1106, %v1108
        %v1116 = vsel %vm1113, %v1108, %v1110
        %v1117 = vsel %vm1113, %v1110, %v1112
        %v1119 = vsel %vm402, %v1102, 0
        %v1121 = vsel %vm406, %v1114, 0
        %v1123 = vsel %vm406, %v1115, 0
        %v1125 = vsel %vm406, %v1116, 0
        %v1127 = vsel %vm406, %v1117, 0
        %v1129 = vsel %vm406, %v1112, 0
        %1131 = vmatprep.subr.mxu0 %v1123
        %1132 = vmatpush1.msra.mxu0 %v1121
        %1133 = vmatprep.subr.mxu0 0.0
        %1134 = vmatpush1.msra.mxu0 0.0
        %1135 = vmatprep.subr.mxu0 0.0
        %1136 = vmatpush1.msra.mxu0 0.0
        %1137 = vmatprep.subr.mxu0 0.0
        %1138 = vmatpush1.msra.mxu0 0.0
        %1139 = vmatprep.subr.mxu0 0.0
        %1140 = vmatpush1.msra.mxu0 0.0
        %1141 = vmatprep.subr.mxu0 0.0
        %1142 = vmatpush1.msra.mxu0 0.0
        %1143 = vmatprep.subr.mxu0 0.0
        %1144 = vmatpush1.msra.mxu0 0.0
        %1145 = vmatprep.subr.mxu0 0.0
        %1146 = vmatpush1.msra.mxu0 0.0
        %1147 = vmatprep.subr.mxu0 0.0
        %1148 = vmatpush1.msra.mxu0 0.0
        %1149 = vmatprep.subr.mxu0 0.0
        %1150 = vmatpush1.msra.mxu0 0.0
        %1151 = vmatprep.subr.mxu0 0.0
        %1152 = vmatpush1.msra.mxu0 0.0
        %1153 = vmatprep.subr.mxu0 0.0
        %1154 = vmatpush1.msra.mxu0 0.0
        %1155 = vmatprep.subr.mxu0 0.0
        %1156 = vmatpush1.msra.mxu0 0.0
        %1157 = vmatprep.subr.mxu0 0.0
        %1158 = vmatpush1.msra.mxu0 0.0
        %1159 = vmatprep.subr.mxu0 0.0
        %1160 = vmatpush1.msra.mxu0 0.0
        %1161 = vmatprep.subr.mxu0 0.0
        %1162 = vmatpush1.msra.mxu0 0.0
        %1163 = vmatprep.subr.mxu0 0.0
        %1164 = vmatpush1.msra.mxu0 0.0
        %1165 = vmatprep.subr.mxu0 0.0
        %1166 = vmatpush1.msra.mxu0 0.0
        %1167 = vmatprep.subr.mxu0 0.0
        %1168 = vmatpush1.msra.mxu0 0.0
        %1169 = vmatprep.subr.mxu0 0.0
        %1170 = vmatpush1.msra.mxu0 0.0
        %1171 = vmatprep.subr.mxu0 0.0
        %1172 = vmatpush1.msra.mxu0 0.0
        %1173 = vmatprep.subr.mxu0 0.0
        %1174 = vmatpush1.msra.mxu0 0.0
        %1175 = vmatprep.subr.mxu0 0.0
        %1176 = vmatpush1.msra.mxu0 0.0
        %1177 = vmatprep.subr.mxu0 0.0
        %1178 = vmatpush1.msra.mxu0 0.0
        %1179 = vmatprep.subr.mxu0 0.0
        %1180 = vmatpush1.msra.mxu0 0.0
        %1181 = vmatprep.subr.mxu0 0.0
        %1182 = vmatpush1.msra.mxu0 0.0
        %1183 = vmatprep.subr.mxu0 0.0
        %1184 = vmatpush1.msra.mxu0 0.0
        %1185 = vmatprep.subr.mxu0 0.0
        %1186 = vmatpush1.msra.mxu0 0.0
        %1187 = vmatprep.subr.mxu0 0.0
        %1188 = vmatpush1.msra.mxu0 0.0
        %1189 = vmatprep.subr.mxu0 0.0
        %1190 = vmatpush1.msra.mxu0 0.0
        %1191 = vmatprep.subr.mxu0 0.0
        %1192 = vmatpush1.msra.mxu0 0.0
        %1193 = vmatprep.subr.mxu0 0.0
        %1194 = vmatpush1.msra.mxu0 0.0
        %1195 = vmatprep.mubr.f32.mxu0 0.0
        %1196 = vmatmul.mubr.f32.gmra.mrb[0].mxu0 %v1119
        %v1197 = vpop.f32.mrb[0].mxu0
        %v1198 = vadd.f32 0.0, %v1197
        %v1199 = vpop.f32.mrb[0].mxu0
        %v1200 = vadd.f32 0.0, %v1199
        %1201 = vdwg.mxu0
        %1202 = vmatprep.subr.mxu0 %v1127
        %1203 = vmatpush1.msra.mxu0 %v1125
        %1204 = vmatprep.subr.mxu0 0.0
        %1205 = vmatpush1.msra.mxu0 0.0
        %1206 = vmatprep.subr.mxu0 0.0
        %1207 = vmatpush1.msra.mxu0 0.0
        %1208 = vmatprep.subr.mxu0 0.0
        %1209 = vmatpush1.msra.mxu0 0.0
        %1210 = vmatprep.subr.mxu0 0.0
        %1211 = vmatpush1.msra.mxu0 0.0
        %1212 = vmatprep.subr.mxu0 0.0
        %1213 = vmatpush1.msra.mxu0 0.0
        %1214 = vmatprep.subr.mxu0 0.0
        %1215 = vmatpush1.msra.mxu0 0.0
        %1216 = vmatprep.subr.mxu0 0.0
        %1217 = vmatpush1.msra.mxu0 0.0
        %1218 = vmatprep.subr.mxu0 0.0
        %1219 = vmatpush1.msra.mxu0 0.0
        %1220 = vmatprep.subr.mxu0 0.0
        %1221 = vmatpush1.msra.mxu0 0.0
        %1222 = vmatprep.subr.mxu0 0.0
        %1223 = vmatpush1.msra.mxu0 0.0
        %1224 = vmatprep.subr.mxu0 0.0
        %1225 = vmatpush1.msra.mxu0 0.0
        %1226 = vmatprep.subr.mxu0 0.0
        %1227 = vmatpush1.msra.mxu0 0.0
        %1228 = vmatprep.subr.mxu0 0.0
        %1229 = vmatpush1.msra.mxu0 0.0
        %1230 = vmatprep.subr.mxu0 0.0
        %1231 = vmatpush1.msra.mxu0 0.0
        %1232 = vmatprep.subr.mxu0 0.0
        %1233 = vmatpush1.msra.mxu0 0.0
        %1234 = vmatprep.subr.mxu0 0.0
        %1235 = vmatpush1.msra.mxu0 0.0
        %1236 = vmatprep.subr.mxu0 0.0
        %1237 = vmatpush1.msra.mxu0 0.0
        %1238 = vmatprep.subr.mxu0 0.0
        %1239 = vmatpush1.msra.mxu0 0.0
        %1240 = vmatprep.subr.mxu0 0.0
        %1241 = vmatpush1.msra.mxu0 0.0
        %1242 = vmatprep.subr.mxu0 0.0
        %1243 = vmatpush1.msra.mxu0 0.0
        %1244 = vmatprep.subr.mxu0 0.0
        %1245 = vmatpush1.msra.mxu0 0.0
        %1246 = vmatprep.subr.mxu0 0.0
        %1247 = vmatpush1.msra.mxu0 0.0
        %1248 = vmatprep.subr.mxu0 0.0
        %1249 = vmatpush1.msra.mxu0 0.0
        %1250 = vmatprep.subr.mxu0 0.0
        %1251 = vmatpush1.msra.mxu0 0.0
        %1252 = vmatprep.subr.mxu0 0.0
        %1253 = vmatpush1.msra.mxu0 0.0
        %1254 = vmatprep.subr.mxu0 0.0
        %1255 = vmatpush1.msra.mxu0 0.0
        %1256 = vmatprep.subr.mxu0 0.0
        %1257 = vmatpush1.msra.mxu0 0.0
        %1258 = vmatprep.subr.mxu0 0.0
        %1259 = vmatpush1.msra.mxu0 0.0
        %1260 = vmatprep.subr.mxu0 0.0
        %1261 = vmatpush1.msra.mxu0 0.0
        %1262 = vmatprep.subr.mxu0 0.0
        %1263 = vmatpush1.msra.mxu0 0.0
        %1264 = vmatprep.subr.mxu0 0.0
        %1265 = vmatpush1.msra.mxu0 0.0
        %1266 = vmatprep.mubr.f32.mxu0 0.0
        %1267 = vmatmul.mubr.f32.gmra.mrb[0].mxu0 %v1119
        %v1268 = vpop.f32.mrb[0].mxu0
        %v1269 = vadd.f32 0.0, %v1268
        %v1270 = vpop.f32.mrb[0].mxu0
        %v1271 = vadd.f32 0.0, %v1270
        %1272 = vdwg.mxu0
        %1273 = vmatprep.subr.mxu0 0.0
        %1274 = vmatpush1.msra.mxu0 %v1129
        %1275 = vmatprep.subr.mxu0 0.0
        %1276 = vmatpush1.msra.mxu0 0.0
        %1277 = vmatprep.subr.mxu0 0.0
        %1278 = vmatpush1.msra.mxu0 0.0
        %1279 = vmatprep.subr.mxu0 0.0
        %1280 = vmatpush1.msra.mxu0 0.0
        %1281 = vmatprep.subr.mxu0 0.0
        %1282 = vmatpush1.msra.mxu0 0.0
        %1283 = vmatprep.subr.mxu0 0.0
        %1284 = vmatpush1.msra.mxu0 0.0
        %1285 = vmatprep.subr.mxu0 0.0
        %1286 = vmatpush1.msra.mxu0 0.0
        %1287 = vmatprep.subr.mxu0 0.0
        %1288 = vmatpush1.msra.mxu0 0.0
        %1289 = vmatprep.subr.mxu0 0.0
        %1290 = vmatpush1.msra.mxu0 0.0
        %1291 = vmatprep.subr.mxu0 0.0
        %1292 = vmatpush1.msra.mxu0 0.0
        %1293 = vmatprep.subr.mxu0 0.0
        %1294 = vmatpush1.msra.mxu0 0.0
        %1295 = vmatprep.subr.mxu0 0.0
        %1296 = vmatpush1.msra.mxu0 0.0
        %1297 = vmatprep.subr.mxu0 0.0
        %1298 = vmatpush1.msra.mxu0 0.0
        %1299 = vmatprep.subr.mxu0 0.0
        %1300 = vmatpush1.msra.mxu0 0.0
        %1301 = vmatprep.subr.mxu0 0.0
        %1302 = vmatpush1.msra.mxu0 0.0
        %1303 = vmatprep.subr.mxu0 0.0
        %1304 = vmatpush1.msra.mxu0 0.0
        %1305 = vmatprep.subr.mxu0 0.0
        %1306 = vmatpush1.msra.mxu0 0.0
        %1307 = vmatprep.subr.mxu0 0.0
        %1308 = vmatpush1.msra.mxu0 0.0
        %1309 = vmatprep.subr.mxu0 0.0
        %1310 = vmatpush1.msra.mxu0 0.0
        %1311 = vmatprep.subr.mxu0 0.0
        %1312 = vmatpush1.msra.mxu0 0.0
        %1313 = vmatprep.subr.mxu0 0.0
        %1314 = vmatpush1.msra.mxu0 0.0
        %1315 = vmatprep.subr.mxu0 0.0
        %1316 = vmatpush1.msra.mxu0 0.0
        %1317 = vmatprep.subr.mxu0 0.0
        %1318 = vmatpush1.msra.mxu0 0.0
        %1319 = vmatprep.subr.mxu0 0.0
        %1320 = vmatpush1.msra.mxu0 0.0
        %1321 = vmatprep.subr.mxu0 0.0
        %1322 = vmatpush1.msra.mxu0 0.0
        %1323 = vmatprep.subr.mxu0 0.0
        %1324 = vmatpush1.msra.mxu0 0.0
        %1325 = vmatprep.subr.mxu0 0.0
        %1326 = vmatpush1.msra.mxu0 0.0
        %1327 = vmatprep.subr.mxu0 0.0
        %1328 = vmatpush1.msra.mxu0 0.0
        %1329 = vmatprep.subr.mxu0 0.0
        %1330 = vmatpush1.msra.mxu0 0.0
        %1331 = vmatprep.subr.mxu0 0.0
        %1332 = vmatpush1.msra.mxu0 0.0
        %1333 = vmatprep.subr.mxu0 0.0
        %1334 = vmatpush1.msra.mxu0 0.0
        %1335 = vmatprep.subr.mxu0 0.0
        %1336 = vmatpush1.msra.mxu0 0.0
        %1337 = vmatprep.mubr.f32.mxu0 0.0
        %1338 = vmatmul.mubr.f32.gmra.mrb[0].mxu0 %v1119
        %v1339 = vpop.f32.mrb[0].mxu0
        %v1340 = vadd.f32 0.0, %v1339
        %v1341 = vpop.f32.mrb[0].mxu0
        %1342 = vdwg.mxu0
        %v1343 = vadd.f32 %v1096, %v1198
        %v1344 = vadd.f32 %v1097, %v1200
        %v1345 = vadd.f32 %v1098, %v1269
        %v1346 = vadd.f32 %v1099, %v1271
        %v1347 = vadd.f32 %v1100, %v1340
        %s1348 = scalar_lea.vmem %s1, 32
        %v1349 = vld [vmem:[%s1348] sm:$0xff]
        %1350 = vrot.lane.b32.xlu0 %v376, 103
        %v1351 = vpop.permute.xlu0 %1350
        %1352 = vrot.lane.b32.xlu0 %v385, 103
        %v1353 = vpop.permute.xlu0 %1352
        %1354 = vrot.lane.b32.xlu0 %v377, 103
        %v1355 = vpop.permute.xlu0 %1354
        %1356 = vrot.lane.b32.xlu0 %v386, 103
        %v1357 = vpop.permute.xlu0 %1356
        %1358 = vrot.lane.b32.xlu0 %v378, 103
        %v1359 = vpop.permute.xlu0 %1358
        %vm1360 = vcmask 842752
        %v1361 = vsel %vm1360, %v1351, %v1353
        %v1362 = vsel %vm1360, %v1353, %v1355
        %v1363 = vsel %vm1360, %v1355, %v1357
        %v1364 = vsel %vm1360, %v1357, %v1359
        %v1366 = vsel %vm402, %v1349, 0
        %v1368 = vsel %vm406, %v1361, 0
        %v1370 = vsel %vm406, %v1362, 0
        %v1372 = vsel %vm406, %v1363, 0
        %v1374 = vsel %vm406, %v1364, 0
        %v1376 = vsel %vm406, %v1359, 0
        %1378 = vmatprep.subr.mxu0 %v1370
        %1379 = vmatpush1.msra.mxu0 %v1368
        %1380 = vmatprep.subr.mxu0 0.0
        %1381 = vmatpush1.msra.mxu0 0.0
        %1382 = vmatprep.subr.mxu0 0.0
        %1383 = vmatpush1.msra.mxu0 0.0
        %1384 = vmatprep.subr.mxu0 0.0
        %1385 = vmatpush1.msra.mxu0 0.0
        %1386 = vmatprep.subr.mxu0 0.0
        %1387 = vmatpush1.msra.mxu0 0.0
        %1388 = vmatprep.subr.mxu0 0.0
        %1389 = vmatpush1.msra.mxu0 0.0
        %1390 = vmatprep.subr.mxu0 0.0
        %1391 = vmatpush1.msra.mxu0 0.0
        %1392 = vmatprep.subr.mxu0 0.0
        %1393 = vmatpush1.msra.mxu0 0.0
        %1394 = vmatprep.subr.mxu0 0.0
        %1395 = vmatpush1.msra.mxu0 0.0
        %1396 = vmatprep.subr.mxu0 0.0
        %1397 = vmatpush1.msra.mxu0 0.0
        %1398 = vmatprep.subr.mxu0 0.0
        %1399 = vmatpush1.msra.mxu0 0.0
        %1400 = vmatprep.subr.mxu0 0.0
        %1401 = vmatpush1.msra.mxu0 0.0
        %1402 = vmatprep.subr.mxu0 0.0
        %1403 = vmatpush1.msra.mxu0 0.0
        %1404 = vmatprep.subr.mxu0 0.0
        %1405 = vmatpush1.msra.mxu0 0.0
        %1406 = vmatprep.subr.mxu0 0.0
        %1407 = vmatpush1.msra.mxu0 0.0
        %1408 = vmatprep.subr.mxu0 0.0
        %1409 = vmatpush1.msra.mxu0 0.0
        %1410 = vmatprep.subr.mxu0 0.0
        %1411 = vmatpush1.msra.mxu0 0.0
        %1412 = vmatprep.subr.mxu0 0.0
        %1413 = vmatpush1.msra.mxu0 0.0
        %1414 = vmatprep.subr.mxu0 0.0
        %1415 = vmatpush1.msra.mxu0 0.0
        %1416 = vmatprep.subr.mxu0 0.0
        %1417 = vmatpush1.msra.mxu0 0.0
        %1418 = vmatprep.subr.mxu0 0.0
        %1419 = vmatpush1.msra.mxu0 0.0
        %1420 = vmatprep.subr.mxu0 0.0
        %1421 = vmatpush1.msra.mxu0 0.0
        %1422 = vmatprep.subr.mxu0 0.0
        %1423 = vmatpush1.msra.mxu0 0.0
        %1424 = vmatprep.subr.mxu0 0.0
        %1425 = vmatpush1.msra.mxu0 0.0
        %1426 = vmatprep.subr.mxu0 0.0
        %1427 = vmatpush1.msra.mxu0 0.0
        %1428 = vmatprep.subr.mxu0 0.0
        %1429 = vmatpush1.msra.mxu0 0.0
        %1430 = vmatprep.subr.mxu0 0.0
        %1431 = vmatpush1.msra.mxu0 0.0
        %1432 = vmatprep.subr.mxu0 0.0
        %1433 = vmatpush1.msra.mxu0 0.0
        %1434 = vmatprep.subr.mxu0 0.0
        %1435 = vmatpush1.msra.mxu0 0.0
        %1436 = vmatprep.subr.mxu0 0.0
        %1437 = vmatpush1.msra.mxu0 0.0
        %1438 = vmatprep.subr.mxu0 0.0
        %1439 = vmatpush1.msra.mxu0 0.0
        %1440 = vmatprep.subr.mxu0 0.0
        %1441 = vmatpush1.msra.mxu0 0.0
        %1442 = vmatprep.mubr.f32.mxu0 0.0
        %1443 = vmatmul.mubr.f32.gmra.mrb[0].mxu0 %v1366
        %v1444 = vpop.f32.mrb[0].mxu0
        %v1445 = vadd.f32 0.0, %v1444
        %v1446 = vpop.f32.mrb[0].mxu0
        %v1447 = vadd.f32 0.0, %v1446
        %1448 = vdwg.mxu0
        %1449 = vmatprep.subr.mxu0 %v1374
        %1450 = vmatpush1.msra.mxu0 %v1372
        %1451 = vmatprep.subr.mxu0 0.0
        %1452 = vmatpush1.msra.mxu0 0.0
        %1453 = vmatprep.subr.mxu0 0.0
        %1454 = vmatpush1.msra.mxu0 0.0
        %1455 = vmatprep.subr.mxu0 0.0
        %1456 = vmatpush1.msra.mxu0 0.0
        %1457 = vmatprep.subr.mxu0 0.0
        %1458 = vmatpush1.msra.mxu0 0.0
        %1459 = vmatprep.subr.mxu0 0.0
        %1460 = vmatpush1.msra.mxu0 0.0
        %1461 = vmatprep.subr.mxu0 0.0
        %1462 = vmatpush1.msra.mxu0 0.0
        %1463 = vmatprep.subr.mxu0 0.0
        %1464 = vmatpush1.msra.mxu0 0.0
        %1465 = vmatprep.subr.mxu0 0.0
        %1466 = vmatpush1.msra.mxu0 0.0
        %1467 = vmatprep.subr.mxu0 0.0
        %1468 = vmatpush1.msra.mxu0 0.0
        %1469 = vmatprep.subr.mxu0 0.0
        %1470 = vmatpush1.msra.mxu0 0.0
        %1471 = vmatprep.subr.mxu0 0.0
        %1472 = vmatpush1.msra.mxu0 0.0
        %1473 = vmatprep.subr.mxu0 0.0
        %1474 = vmatpush1.msra.mxu0 0.0
        %1475 = vmatprep.subr.mxu0 0.0
        %1476 = vmatpush1.msra.mxu0 0.0
        %1477 = vmatprep.subr.mxu0 0.0
        %1478 = vmatpush1.msra.mxu0 0.0
        %1479 = vmatprep.subr.mxu0 0.0
        %1480 = vmatpush1.msra.mxu0 0.0
        %1481 = vmatprep.subr.mxu0 0.0
        %1482 = vmatpush1.msra.mxu0 0.0
        %1483 = vmatprep.subr.mxu0 0.0
        %1484 = vmatpush1.msra.mxu0 0.0
        %1485 = vmatprep.subr.mxu0 0.0
        %1486 = vmatpush1.msra.mxu0 0.0
        %1487 = vmatprep.subr.mxu0 0.0
        %1488 = vmatpush1.msra.mxu0 0.0
        %1489 = vmatprep.subr.mxu0 0.0
        %1490 = vmatpush1.msra.mxu0 0.0
        %1491 = vmatprep.subr.mxu0 0.0
        %1492 = vmatpush1.msra.mxu0 0.0
        %1493 = vmatprep.subr.mxu0 0.0
        %1494 = vmatpush1.msra.mxu0 0.0
        %1495 = vmatprep.subr.mxu0 0.0
        %1496 = vmatpush1.msra.mxu0 0.0
        %1497 = vmatprep.subr.mxu0 0.0
        %1498 = vmatpush1.msra.mxu0 0.0
        %1499 = vmatprep.subr.mxu0 0.0
        %1500 = vmatpush1.msra.mxu0 0.0
        %1501 = vmatprep.subr.mxu0 0.0
        %1502 = vmatpush1.msra.mxu0 0.0
        %1503 = vmatprep.subr.mxu0 0.0
        %1504 = vmatpush1.msra.mxu0 0.0
        %1505 = vmatprep.subr.mxu0 0.0
        %1506 = vmatpush1.msra.mxu0 0.0
        %1507 = vmatprep.subr.mxu0 0.0
        %1508 = vmatpush1.msra.mxu0 0.0
        %1509 = vmatprep.subr.mxu0 0.0
        %1510 = vmatpush1.msra.mxu0 0.0
        %1511 = vmatprep.subr.mxu0 0.0
        %1512 = vmatpush1.msra.mxu0 0.0
        %1513 = vmatprep.mubr.f32.mxu0 0.0
        %1514 = vmatmul.mubr.f32.gmra.mrb[0].mxu0 %v1366
        %v1515 = vpop.f32.mrb[0].mxu0
        %v1516 = vadd.f32 0.0, %v1515
        %v1517 = vpop.f32.mrb[0].mxu0
        %v1518 = vadd.f32 0.0, %v1517
        %1519 = vdwg.mxu0
        %1520 = vmatprep.subr.mxu0 0.0
        %1521 = vmatpush1.msra.mxu0 %v1376
        %1522 = vmatprep.subr.mxu0 0.0
        %1523 = vmatpush1.msra.mxu0 0.0
        %1524 = vmatprep.subr.mxu0 0.0
        %1525 = vmatpush1.msra.mxu0 0.0
        %1526 = vmatprep.subr.mxu0 0.0
        %1527 = vmatpush1.msra.mxu0 0.0
        %1528 = vmatprep.subr.mxu0 0.0
        %1529 = vmatpush1.msra.mxu0 0.0
        %1530 = vmatprep.subr.mxu0 0.0
        %1531 = vmatpush1.msra.mxu0 0.0
        %1532 = vmatprep.subr.mxu0 0.0
        %1533 = vmatpush1.msra.mxu0 0.0
        %1534 = vmatprep.subr.mxu0 0.0
        %1535 = vmatpush1.msra.mxu0 0.0
        %1536 = vmatprep.subr.mxu0 0.0
        %1537 = vmatpush1.msra.mxu0 0.0
        %1538 = vmatprep.subr.mxu0 0.0
        %1539 = vmatpush1.msra.mxu0 0.0
        %1540 = vmatprep.subr.mxu0 0.0
        %1541 = vmatpush1.msra.mxu0 0.0
        %1542 = vmatprep.subr.mxu0 0.0
        %1543 = vmatpush1.msra.mxu0 0.0
        %1544 = vmatprep.subr.mxu0 0.0
        %1545 = vmatpush1.msra.mxu0 0.0
        %1546 = vmatprep.subr.mxu0 0.0
        %1547 = vmatpush1.msra.mxu0 0.0
        %1548 = vmatprep.subr.mxu0 0.0
        %1549 = vmatpush1.msra.mxu0 0.0
        %1550 = vmatprep.subr.mxu0 0.0
        %1551 = vmatpush1.msra.mxu0 0.0
        %1552 = vmatprep.subr.mxu0 0.0
        %1553 = vmatpush1.msra.mxu0 0.0
        %1554 = vmatprep.subr.mxu0 0.0
        %1555 = vmatpush1.msra.mxu0 0.0
        %1556 = vmatprep.subr.mxu0 0.0
        %1557 = vmatpush1.msra.mxu0 0.0
        %1558 = vmatprep.subr.mxu0 0.0
        %1559 = vmatpush1.msra.mxu0 0.0
        %1560 = vmatprep.subr.mxu0 0.0
        %1561 = vmatpush1.msra.mxu0 0.0
        %1562 = vmatprep.subr.mxu0 0.0
        %1563 = vmatpush1.msra.mxu0 0.0
        %1564 = vmatprep.subr.mxu0 0.0
        %1565 = vmatpush1.msra.mxu0 0.0
        %1566 = vmatprep.subr.mxu0 0.0
        %1567 = vmatpush1.msra.mxu0 0.0
        %1568 = vmatprep.subr.mxu0 0.0
        %1569 = vmatpush1.msra.mxu0 0.0
        %1570 = vmatprep.subr.mxu0 0.0
        %1571 = vmatpush1.msra.mxu0 0.0
        %1572 = vmatprep.subr.mxu0 0.0
        %1573 = vmatpush1.msra.mxu0 0.0
        %1574 = vmatprep.subr.mxu0 0.0
        %1575 = vmatpush1.msra.mxu0 0.0
        %1576 = vmatprep.subr.mxu0 0.0
        %1577 = vmatpush1.msra.mxu0 0.0
        %1578 = vmatprep.subr.mxu0 0.0
        %1579 = vmatpush1.msra.mxu0 0.0
        %1580 = vmatprep.subr.mxu0 0.0
        %1581 = vmatpush1.msra.mxu0 0.0
        %1582 = vmatprep.subr.mxu0 0.0
        %1583 = vmatpush1.msra.mxu0 0.0
        %1584 = vmatprep.mubr.f32.mxu0 0.0
        %1585 = vmatmul.mubr.f32.gmra.mrb[0].mxu0 %v1366
        %v1586 = vpop.f32.mrb[0].mxu0
        %v1587 = vadd.f32 0.0, %v1586
        %v1588 = vpop.f32.mrb[0].mxu0
        %1589 = vdwg.mxu0
        %v1590 = vadd.f32 %v1343, %v1445
        %v1591 = vadd.f32 %v1344, %v1447
        %v1592 = vadd.f32 %v1345, %v1516
        %v1593 = vadd.f32 %v1346, %v1518
        %v1594 = vadd.f32 %v1347, %v1587
        %s1595 = scalar_lea.vmem %s1, 40
        %v1596 = vld [vmem:[%s1595] sm:$0xff]
        %1597 = vrot.lane.b32.xlu0 %v376, 102
        %v1598 = vpop.permute.xlu0 %1597
        %1599 = vrot.lane.b32.xlu0 %v385, 102
        %v1600 = vpop.permute.xlu0 %1599
        %1601 = vrot.lane.b32.xlu0 %v377, 102
        %v1602 = vpop.permute.xlu0 %1601
        %1603 = vrot.lane.b32.xlu0 %v386, 102
        %v1604 = vpop.permute.xlu0 %1603
        %1605 = vrot.lane.b32.xlu0 %v378, 102
        %v1606 = vpop.permute.xlu0 %1605
        %vm1607 = vcmask 834560
        %v1608 = vsel %vm1607, %v1598, %v1600
        %v1609 = vsel %vm1607, %v1600, %v1602
        %v1610 = vsel %vm1607, %v1602, %v1604
        %v1611 = vsel %vm1607, %v1604, %v1606
        %v1613 = vsel %vm402, %v1596, 0
        %v1615 = vsel %vm406, %v1608, 0
        %v1617 = vsel %vm406, %v1609, 0
        %v1619 = vsel %vm406, %v1610, 0
        %v1621 = vsel %vm406, %v1611, 0
        %v1623 = vsel %vm406, %v1606, 0
        %1625 = vmatprep.subr.mxu0 %v1617
        %1626 = vmatpush1.msra.mxu0 %v1615
        %1627 = vmatprep.subr.mxu0 0.0
        %1628 = vmatpush1.msra.mxu0 0.0
        %1629 = vmatprep.subr.mxu0 0.0
        %1630 = vmatpush1.msra.mxu0 0.0
        %1631 = vmatprep.subr.mxu0 0.0
        %1632 = vmatpush1.msra.mxu0 0.0
        %1633 = vmatprep.subr.mxu0 0.0
        %1634 = vmatpush1.msra.mxu0 0.0
        %1635 = vmatprep.subr.mxu0 0.0
        %1636 = vmatpush1.msra.mxu0 0.0
        %1637 = vmatprep.subr.mxu0 0.0
        %1638 = vmatpush1.msra.mxu0 0.0
        %1639 = vmatprep.subr.mxu0 0.0
        %1640 = vmatpush1.msra.mxu0 0.0
        %1641 = vmatprep.subr.mxu0 0.0
        %1642 = vmatpush1.msra.mxu0 0.0
        %1643 = vmatprep.subr.mxu0 0.0
        %1644 = vmatpush1.msra.mxu0 0.0
        %1645 = vmatprep.subr.mxu0 0.0
        %1646 = vmatpush1.msra.mxu0 0.0
        %1647 = vmatprep.subr.mxu0 0.0
        %1648 = vmatpush1.msra.mxu0 0.0
        %1649 = vmatprep.subr.mxu0 0.0
        %1650 = vmatpush1.msra.mxu0 0.0
        %1651 = vmatprep.subr.mxu0 0.0
        %1652 = vmatpush1.msra.mxu0 0.0
        %1653 = vmatprep.subr.mxu0 0.0
        %1654 = vmatpush1.msra.mxu0 0.0
        %1655 = vmatprep.subr.mxu0 0.0
        %1656 = vmatpush1.msra.mxu0 0.0
        %1657 = vmatprep.subr.mxu0 0.0
        %1658 = vmatpush1.msra.mxu0 0.0
        %1659 = vmatprep.subr.mxu0 0.0
        %1660 = vmatpush1.msra.mxu0 0.0
        %1661 = vmatprep.subr.mxu0 0.0
        %1662 = vmatpush1.msra.mxu0 0.0
        %1663 = vmatprep.subr.mxu0 0.0
        %1664 = vmatpush1.msra.mxu0 0.0
        %1665 = vmatprep.subr.mxu0 0.0
        %1666 = vmatpush1.msra.mxu0 0.0
        %1667 = vmatprep.subr.mxu0 0.0
        %1668 = vmatpush1.msra.mxu0 0.0
        %1669 = vmatprep.subr.mxu0 0.0
        %1670 = vmatpush1.msra.mxu0 0.0
        %1671 = vmatprep.subr.mxu0 0.0
        %1672 = vmatpush1.msra.mxu0 0.0
        %1673 = vmatprep.subr.mxu0 0.0
        %1674 = vmatpush1.msra.mxu0 0.0
        %1675 = vmatprep.subr.mxu0 0.0
        %1676 = vmatpush1.msra.mxu0 0.0
        %1677 = vmatprep.subr.mxu0 0.0
        %1678 = vmatpush1.msra.mxu0 0.0
        %1679 = vmatprep.subr.mxu0 0.0
        %1680 = vmatpush1.msra.mxu0 0.0
        %1681 = vmatprep.subr.mxu0 0.0
        %1682 = vmatpush1.msra.mxu0 0.0
        %1683 = vmatprep.subr.mxu0 0.0
        %1684 = vmatpush1.msra.mxu0 0.0
        %1685 = vmatprep.subr.mxu0 0.0
        %1686 = vmatpush1.msra.mxu0 0.0
        %1687 = vmatprep.subr.mxu0 0.0
        %1688 = vmatpush1.msra.mxu0 0.0
        %1689 = vmatprep.mubr.f32.mxu0 0.0
        %1690 = vmatmul.mubr.f32.gmra.mrb[0].mxu0 %v1613
        %v1691 = vpop.f32.mrb[0].mxu0
        %v1692 = vadd.f32 0.0, %v1691
        %v1693 = vpop.f32.mrb[0].mxu0
        %v1694 = vadd.f32 0.0, %v1693
        %1695 = vdwg.mxu0
        %1696 = vmatprep.subr.mxu0 %v1621
        %1697 = vmatpush1.msra.mxu0 %v1619
        %1698 = vmatprep.subr.mxu0 0.0
        %1699 = vmatpush1.msra.mxu0 0.0
        %1700 = vmatprep.subr.mxu0 0.0
        %1701 = vmatpush1.msra.mxu0 0.0
        %1702 = vmatprep.subr.mxu0 0.0
        %1703 = vmatpush1.msra.mxu0 0.0
        %1704 = vmatprep.subr.mxu0 0.0
        %1705 = vmatpush1.msra.mxu0 0.0
        %1706 = vmatprep.subr.mxu0 0.0
        %1707 = vmatpush1.msra.mxu0 0.0
        %1708 = vmatprep.subr.mxu0 0.0
        %1709 = vmatpush1.msra.mxu0 0.0
        %1710 = vmatprep.subr.mxu0 0.0
        %1711 = vmatpush1.msra.mxu0 0.0
        %1712 = vmatprep.subr.mxu0 0.0
        %1713 = vmatpush1.msra.mxu0 0.0
        %1714 = vmatprep.subr.mxu0 0.0
        %1715 = vmatpush1.msra.mxu0 0.0
        %1716 = vmatprep.subr.mxu0 0.0
        %1717 = vmatpush1.msra.mxu0 0.0
        %1718 = vmatprep.subr.mxu0 0.0
        %1719 = vmatpush1.msra.mxu0 0.0
        %1720 = vmatprep.subr.mxu0 0.0
        %1721 = vmatpush1.msra.mxu0 0.0
        %1722 = vmatprep.subr.mxu0 0.0
        %1723 = vmatpush1.msra.mxu0 0.0
        %1724 = vmatprep.subr.mxu0 0.0
        %1725 = vmatpush1.msra.mxu0 0.0
        %1726 = vmatprep.subr.mxu0 0.0
        %1727 = vmatpush1.msra.mxu0 0.0
        %1728 = vmatprep.subr.mxu0 0.0
        %1729 = vmatpush1.msra.mxu0 0.0
        %1730 = vmatprep.subr.mxu0 0.0
        %1731 = vmatpush1.msra.mxu0 0.0
        %1732 = vmatprep.subr.mxu0 0.0
        %1733 = vmatpush1.msra.mxu0 0.0
        %1734 = vmatprep.subr.mxu0 0.0
        %1735 = vmatpush1.msra.mxu0 0.0
        %1736 = vmatprep.subr.mxu0 0.0
        %1737 = vmatpush1.msra.mxu0 0.0
        %1738 = vmatprep.subr.mxu0 0.0
        %1739 = vmatpush1.msra.mxu0 0.0
        %1740 = vmatprep.subr.mxu0 0.0
        %1741 = vmatpush1.msra.mxu0 0.0
        %1742 = vmatprep.subr.mxu0 0.0
        %1743 = vmatpush1.msra.mxu0 0.0
        %1744 = vmatprep.subr.mxu0 0.0
        %1745 = vmatpush1.msra.mxu0 0.0
        %1746 = vmatprep.subr.mxu0 0.0
        %1747 = vmatpush1.msra.mxu0 0.0
        %1748 = vmatprep.subr.mxu0 0.0
        %1749 = vmatpush1.msra.mxu0 0.0
        %1750 = vmatprep.subr.mxu0 0.0
        %1751 = vmatpush1.msra.mxu0 0.0
        %1752 = vmatprep.subr.mxu0 0.0
        %1753 = vmatpush1.msra.mxu0 0.0
        %1754 = vmatprep.subr.mxu0 0.0
        %1755 = vmatpush1.msra.mxu0 0.0
        %1756 = vmatprep.subr.mxu0 0.0
        %1757 = vmatpush1.msra.mxu0 0.0
        %1758 = vmatprep.subr.mxu0 0.0
        %1759 = vmatpush1.msra.mxu0 0.0
        %1760 = vmatprep.mubr.f32.mxu0 0.0
        %1761 = vmatmul.mubr.f32.gmra.mrb[0].mxu0 %v1613
        %v1762 = vpop.f32.mrb[0].mxu0
        %v1763 = vadd.f32 0.0, %v1762
        %v1764 = vpop.f32.mrb[0].mxu0
        %v1765 = vadd.f32 0.0, %v1764
        %1766 = vdwg.mxu0
        %1767 = vmatprep.subr.mxu0 0.0
        %1768 = vmatpush1.msra.mxu0 %v1623
        %1769 = vmatprep.subr.mxu0 0.0
        %1770 = vmatpush1.msra.mxu0 0.0
        %1771 = vmatprep.subr.mxu0 0.0
        %1772 = vmatpush1.msra.mxu0 0.0
        %1773 = vmatprep.subr.mxu0 0.0
        %1774 = vmatpush1.msra.mxu0 0.0
        %1775 = vmatprep.subr.mxu0 0.0
        %1776 = vmatpush1.msra.mxu0 0.0
        %1777 = vmatprep.subr.mxu0 0.0
        %1778 = vmatpush1.msra.mxu0 0.0
        %1779 = vmatprep.subr.mxu0 0.0
        %1780 = vmatpush1.msra.mxu0 0.0
        %1781 = vmatprep.subr.mxu0 0.0
        %1782 = vmatpush1.msra.mxu0 0.0
        %1783 = vmatprep.subr.mxu0 0.0
        %1784 = vmatpush1.msra.mxu0 0.0
        %1785 = vmatprep.subr.mxu0 0.0
        %1786 = vmatpush1.msra.mxu0 0.0
        %1787 = vmatprep.subr.mxu0 0.0
        %1788 = vmatpush1.msra.mxu0 0.0
        %1789 = vmatprep.subr.mxu0 0.0
        %1790 = vmatpush1.msra.mxu0 0.0
        %1791 = vmatprep.subr.mxu0 0.0
        %1792 = vmatpush1.msra.mxu0 0.0
        %1793 = vmatprep.subr.mxu0 0.0
        %1794 = vmatpush1.msra.mxu0 0.0
        %1795 = vmatprep.subr.mxu0 0.0
        %1796 = vmatpush1.msra.mxu0 0.0
        %1797 = vmatprep.subr.mxu0 0.0
        %1798 = vmatpush1.msra.mxu0 0.0
        %1799 = vmatprep.subr.mxu0 0.0
        %1800 = vmatpush1.msra.mxu0 0.0
        %1801 = vmatprep.subr.mxu0 0.0
        %1802 = vmatpush1.msra.mxu0 0.0
        %1803 = vmatprep.subr.mxu0 0.0
        %1804 = vmatpush1.msra.mxu0 0.0
        %1805 = vmatprep.subr.mxu0 0.0
        %1806 = vmatpush1.msra.mxu0 0.0
        %1807 = vmatprep.subr.mxu0 0.0
        %1808 = vmatpush1.msra.mxu0 0.0
        %1809 = vmatprep.subr.mxu0 0.0
        %1810 = vmatpush1.msra.mxu0 0.0
        %1811 = vmatprep.subr.mxu0 0.0
        %1812 = vmatpush1.msra.mxu0 0.0
        %1813 = vmatprep.subr.mxu0 0.0
        %1814 = vmatpush1.msra.mxu0 0.0
        %1815 = vmatprep.subr.mxu0 0.0
        %1816 = vmatpush1.msra.mxu0 0.0
        %1817 = vmatprep.subr.mxu0 0.0
        %1818 = vmatpush1.msra.mxu0 0.0
        %1819 = vmatprep.subr.mxu0 0.0
        %1820 = vmatpush1.msra.mxu0 0.0
        %1821 = vmatprep.subr.mxu0 0.0
        %1822 = vmatpush1.msra.mxu0 0.0
        %1823 = vmatprep.subr.mxu0 0.0
        %1824 = vmatpush1.msra.mxu0 0.0
        %1825 = vmatprep.subr.mxu0 0.0
        %1826 = vmatpush1.msra.mxu0 0.0
        %1827 = vmatprep.subr.mxu0 0.0
        %1828 = vmatpush1.msra.mxu0 0.0
        %1829 = vmatprep.subr.mxu0 0.0
        %1830 = vmatpush1.msra.mxu0 0.0
        %1831 = vmatprep.mubr.f32.mxu0 0.0
        %1832 = vmatmul.mubr.f32.gmra.mrb[0].mxu0 %v1613
        %v1833 = vpop.f32.mrb[0].mxu0
        %v1834 = vadd.f32 0.0, %v1833
        %v1835 = vpop.f32.mrb[0].mxu0
        %1836 = vdwg.mxu0
        %v1837 = vadd.f32 %v1590, %v1692
        %v1838 = vadd.f32 %v1591, %v1694
        %v1839 = vadd.f32 %v1592, %v1763
        %v1840 = vadd.f32 %v1593, %v1765
        %v1841 = vadd.f32 %v1594, %v1834
        %s1842 = scalar_lea.vmem %s1, 48
        %v1843 = vld [vmem:[%s1842] sm:$0xff]
        %1844 = vrot.lane.b32.xlu0 %v376, 80
        %v1845 = vpop.permute.xlu0 %1844
        %1846 = vrot.lane.b32.xlu0 %v385, 80
        %v1847 = vpop.permute.xlu0 %1846
        %1848 = vrot.lane.b32.xlu0 %v377, 80
        %v1849 = vpop.permute.xlu0 %1848
        %1850 = vrot.lane.b32.xlu0 %v386, 80
        %v1851 = vpop.permute.xlu0 %1850
        %1852 = vrot.lane.b32.xlu0 %v378, 80
        %v1853 = vpop.permute.xlu0 %1852
        %vm1854 = vcmask 654336
        %v1855 = vsel %vm1854, %v1845, %v1847
        %v1856 = vsel %vm1854, %v1847, %v1849
        %v1857 = vsel %vm1854, %v1849, %v1851
        %v1858 = vsel %vm1854, %v1851, %v1853
        %v1860 = vsel %vm402, %v1843, 0
        %v1862 = vsel %vm406, %v1855, 0
        %v1864 = vsel %vm406, %v1856, 0
        %v1866 = vsel %vm406, %v1857, 0
        %v1868 = vsel %vm406, %v1858, 0
        %v1870 = vsel %vm406, %v1853, 0
        %1872 = vmatprep.subr.mxu0 %v1864
        %1873 = vmatpush1.msra.mxu0 %v1862
        %1874 = vmatprep.subr.mxu0 0.0
        %1875 = vmatpush1.msra.mxu0 0.0
        %1876 = vmatprep.subr.mxu0 0.0
        %1877 = vmatpush1.msra.mxu0 0.0
        %1878 = vmatprep.subr.mxu0 0.0
        %1879 = vmatpush1.msra.mxu0 0.0
        %1880 = vmatprep.subr.mxu0 0.0
        %1881 = vmatpush1.msra.mxu0 0.0
        %1882 = vmatprep.subr.mxu0 0.0
        %1883 = vmatpush1.msra.mxu0 0.0
        %1884 = vmatprep.subr.mxu0 0.0
        %1885 = vmatpush1.msra.mxu0 0.0
        %1886 = vmatprep.subr.mxu0 0.0
        %1887 = vmatpush1.msra.mxu0 0.0
        %1888 = vmatprep.subr.mxu0 0.0
        %1889 = vmatpush1.msra.mxu0 0.0
        %1890 = vmatprep.subr.mxu0 0.0
        %1891 = vmatpush1.msra.mxu0 0.0
        %1892 = vmatprep.subr.mxu0 0.0
        %1893 = vmatpush1.msra.mxu0 0.0
        %1894 = vmatprep.subr.mxu0 0.0
        %1895 = vmatpush1.msra.mxu0 0.0
        %1896 = vmatprep.subr.mxu0 0.0
        %1897 = vmatpush1.msra.mxu0 0.0
        %1898 = vmatprep.subr.mxu0 0.0
        %1899 = vmatpush1.msra.mxu0 0.0
        %1900 = vmatprep.subr.mxu0 0.0
        %1901 = vmatpush1.msra.mxu0 0.0
        %1902 = vmatprep.subr.mxu0 0.0
        %1903 = vmatpush1.msra.mxu0 0.0
        %1904 = vmatprep.subr.mxu0 0.0
        %1905 = vmatpush1.msra.mxu0 0.0
        %1906 = vmatprep.subr.mxu0 0.0
        %1907 = vmatpush1.msra.mxu0 0.0
        %1908 = vmatprep.subr.mxu0 0.0
        %1909 = vmatpush1.msra.mxu0 0.0
        %1910 = vmatprep.subr.mxu0 0.0
        %1911 = vmatpush1.msra.mxu0 0.0
        %1912 = vmatprep.subr.mxu0 0.0
        %1913 = vmatpush1.msra.mxu0 0.0
        %1914 = vmatprep.subr.mxu0 0.0
        %1915 = vmatpush1.msra.mxu0 0.0
        %1916 = vmatprep.subr.mxu0 0.0
        %1917 = vmatpush1.msra.mxu0 0.0
        %1918 = vmatprep.subr.mxu0 0.0
        %1919 = vmatpush1.msra.mxu0 0.0
        %1920 = vmatprep.subr.mxu0 0.0
        %1921 = vmatpush1.msra.mxu0 0.0
        %1922 = vmatprep.subr.mxu0 0.0
        %1923 = vmatpush1.msra.mxu0 0.0
        %1924 = vmatprep.subr.mxu0 0.0
        %1925 = vmatpush1.msra.mxu0 0.0
        %1926 = vmatprep.subr.mxu0 0.0
        %1927 = vmatpush1.msra.mxu0 0.0
        %1928 = vmatprep.subr.mxu0 0.0
        %1929 = vmatpush1.msra.mxu0 0.0
        %1930 = vmatprep.subr.mxu0 0.0
        %1931 = vmatpush1.msra.mxu0 0.0
        %1932 = vmatprep.subr.mxu0 0.0
        %1933 = vmatpush1.msra.mxu0 0.0
        %1934 = vmatprep.subr.mxu0 0.0
        %1935 = vmatpush1.msra.mxu0 0.0
        %1936 = vmatprep.mubr.f32.mxu0 0.0
        %1937 = vmatmul.mubr.f32.gmra.mrb[0].mxu0 %v1860
        %v1938 = vpop.f32.mrb[0].mxu0
        %v1939 = vadd.f32 0.0, %v1938
        %v1940 = vpop.f32.mrb[0].mxu0
        %v1941 = vadd.f32 0.0, %v1940
        %1942 = vdwg.mxu0
        %1943 = vmatprep.subr.mxu0 %v1868
        %1944 = vmatpush1.msra.mxu0 %v1866
        %1945 = vmatprep.subr.mxu0 0.0
        %1946 = vmatpush1.msra.mxu0 0.0
        %1947 = vmatprep.subr.mxu0 0.0
        %1948 = vmatpush1.msra.mxu0 0.0
        %1949 = vmatprep.subr.mxu0 0.0
        %1950 = vmatpush1.msra.mxu0 0.0
        %1951 = vmatprep.subr.mxu0 0.0
        %1952 = vmatpush1.msra.mxu0 0.0
        %1953 = vmatprep.subr.mxu0 0.0
        %1954 = vmatpush1.msra.mxu0 0.0
        %1955 = vmatprep.subr.mxu0 0.0
        %1956 = vmatpush1.msra.mxu0 0.0
        %1957 = vmatprep.subr.mxu0 0.0
        %1958 = vmatpush1.msra.mxu0 0.0
        %1959 = vmatprep.subr.mxu0 0.0
        %1960 = vmatpush1.msra.mxu0 0.0
        %1961 = vmatprep.subr.mxu0 0.0
        %1962 = vmatpush1.msra.mxu0 0.0
        %1963 = vmatprep.subr.mxu0 0.0
        %1964 = vmatpush1.msra.mxu0 0.0
        %1965 = vmatprep.subr.mxu0 0.0
        %1966 = vmatpush1.msra.mxu0 0.0
        %1967 = vmatprep.subr.mxu0 0.0
        %1968 = vmatpush1.msra.mxu0 0.0
        %1969 = vmatprep.subr.mxu0 0.0
        %1970 = vmatpush1.msra.mxu0 0.0
        %1971 = vmatprep.subr.mxu0 0.0
        %1972 = vmatpush1.msra.mxu0 0.0
        %1973 = vmatprep.subr.mxu0 0.0
        %1974 = vmatpush1.msra.mxu0 0.0
        %1975 = vmatprep.subr.mxu0 0.0
        %1976 = vmatpush1.msra.mxu0 0.0
        %1977 = vmatprep.subr.mxu0 0.0
        %1978 = vmatpush1.msra.mxu0 0.0
        %1979 = vmatprep.subr.mxu0 0.0
        %1980 = vmatpush1.msra.mxu0 0.0
        %1981 = vmatprep.subr.mxu0 0.0
        %1982 = vmatpush1.msra.mxu0 0.0
        %1983 = vmatprep.subr.mxu0 0.0
        %1984 = vmatpush1.msra.mxu0 0.0
        %1985 = vmatprep.subr.mxu0 0.0
        %1986 = vmatpush1.msra.mxu0 0.0
        %1987 = vmatprep.subr.mxu0 0.0
        %1988 = vmatpush1.msra.mxu0 0.0
        %1989 = vmatprep.subr.mxu0 0.0
        %1990 = vmatpush1.msra.mxu0 0.0
        %1991 = vmatprep.subr.mxu0 0.0
        %1992 = vmatpush1.msra.mxu0 0.0
        %1993 = vmatprep.subr.mxu0 0.0
        %1994 = vmatpush1.msra.mxu0 0.0
        %1995 = vmatprep.subr.mxu0 0.0
        %1996 = vmatpush1.msra.mxu0 0.0
        %1997 = vmatprep.subr.mxu0 0.0
        %1998 = vmatpush1.msra.mxu0 0.0
        %1999 = vmatprep.subr.mxu0 0.0
        %2000 = vmatpush1.msra.mxu0 0.0
        %2001 = vmatprep.subr.mxu0 0.0
        %2002 = vmatpush1.msra.mxu0 0.0
        %2003 = vmatprep.subr.mxu0 0.0
        %2004 = vmatpush1.msra.mxu0 0.0
        %2005 = vmatprep.subr.mxu0 0.0
        %2006 = vmatpush1.msra.mxu0 0.0
        %2007 = vmatprep.mubr.f32.mxu0 0.0
        %2008 = vmatmul.mubr.f32.gmra.mrb[0].mxu0 %v1860
        %v2009 = vpop.f32.mrb[0].mxu0
        %v2010 = vadd.f32 0.0, %v2009
        %v2011 = vpop.f32.mrb[0].mxu0
        %v2012 = vadd.f32 0.0, %v2011
        %2013 = vdwg.mxu0
        %2014 = vmatprep.subr.mxu0 0.0
        %2015 = vmatpush1.msra.mxu0 %v1870
        %2016 = vmatprep.subr.mxu0 0.0
        %2017 = vmatpush1.msra.mxu0 0.0
        %2018 = vmatprep.subr.mxu0 0.0
        %2019 = vmatpush1.msra.mxu0 0.0
        %2020 = vmatprep.subr.mxu0 0.0
        %2021 = vmatpush1.msra.mxu0 0.0
        %2022 = vmatprep.subr.mxu0 0.0
        %2023 = vmatpush1.msra.mxu0 0.0
        %2024 = vmatprep.subr.mxu0 0.0
        %2025 = vmatpush1.msra.mxu0 0.0
        %2026 = vmatprep.subr.mxu0 0.0
        %2027 = vmatpush1.msra.mxu0 0.0
        %2028 = vmatprep.subr.mxu0 0.0
        %2029 = vmatpush1.msra.mxu0 0.0
        %2030 = vmatprep.subr.mxu0 0.0
        %2031 = vmatpush1.msra.mxu0 0.0
        %2032 = vmatprep.subr.mxu0 0.0
        %2033 = vmatpush1.msra.mxu0 0.0
        %2034 = vmatprep.subr.mxu0 0.0
        %2035 = vmatpush1.msra.mxu0 0.0
        %2036 = vmatprep.subr.mxu0 0.0
        %2037 = vmatpush1.msra.mxu0 0.0
        %2038 = vmatprep.subr.mxu0 0.0
        %2039 = vmatpush1.msra.mxu0 0.0
        %2040 = vmatprep.subr.mxu0 0.0
        %2041 = vmatpush1.msra.mxu0 0.0
        %2042 = vmatprep.subr.mxu0 0.0
        %2043 = vmatpush1.msra.mxu0 0.0
        %2044 = vmatprep.subr.mxu0 0.0
        %2045 = vmatpush1.msra.mxu0 0.0
        %2046 = vmatprep.subr.mxu0 0.0
        %2047 = vmatpush1.msra.mxu0 0.0
        %2048 = vmatprep.subr.mxu0 0.0
        %2049 = vmatpush1.msra.mxu0 0.0
        %2050 = vmatprep.subr.mxu0 0.0
        %2051 = vmatpush1.msra.mxu0 0.0
        %2052 = vmatprep.subr.mxu0 0.0
        %2053 = vmatpush1.msra.mxu0 0.0
        %2054 = vmatprep.subr.mxu0 0.0
        %2055 = vmatpush1.msra.mxu0 0.0
        %2056 = vmatprep.subr.mxu0 0.0
        %2057 = vmatpush1.msra.mxu0 0.0
        %2058 = vmatprep.subr.mxu0 0.0
        %2059 = vmatpush1.msra.mxu0 0.0
        %2060 = vmatprep.subr.mxu0 0.0
        %2061 = vmatpush1.msra.mxu0 0.0
        %2062 = vmatprep.subr.mxu0 0.0
        %2063 = vmatpush1.msra.mxu0 0.0
        %2064 = vmatprep.subr.mxu0 0.0
        %2065 = vmatpush1.msra.mxu0 0.0
        %2066 = vmatprep.subr.mxu0 0.0
        %2067 = vmatpush1.msra.mxu0 0.0
        %2068 = vmatprep.subr.mxu0 0.0
        %2069 = vmatpush1.msra.mxu0 0.0
        %2070 = vmatprep.subr.mxu0 0.0
        %2071 = vmatpush1.msra.mxu0 0.0
        %2072 = vmatprep.subr.mxu0 0.0
        %2073 = vmatpush1.msra.mxu0 0.0
        %2074 = vmatprep.subr.mxu0 0.0
        %2075 = vmatpush1.msra.mxu0 0.0
        %2076 = vmatprep.subr.mxu0 0.0
        %2077 = vmatpush1.msra.mxu0 0.0
        %2078 = vmatprep.mubr.f32.mxu0 0.0
        %2079 = vmatmul.mubr.f32.gmra.mrb[0].mxu0 %v1860
        %v2080 = vpop.f32.mrb[0].mxu0
        %v2081 = vadd.f32 0.0, %v2080
        %v2082 = vpop.f32.mrb[0].mxu0
        %2083 = vdwg.mxu0
        %v2084 = vadd.f32 %v1837, %v1939
        %v2085 = vadd.f32 %v1838, %v1941
        %v2086 = vadd.f32 %v1839, %v2010
        %v2087 = vadd.f32 %v1840, %v2012
        %v2088 = vadd.f32 %v1841, %v2081
        %s2089 = scalar_lea.vmem %s1, 56
        %v2090 = vld [vmem:[%s2089] sm:$0xff]
        %2091 = vrot.lane.b32.xlu0 %v376, 79
        %v2092 = vpop.permute.xlu0 %2091
        %2093 = vrot.lane.b32.xlu0 %v385, 79
        %v2094 = vpop.permute.xlu0 %2093
        %2095 = vrot.lane.b32.xlu0 %v377, 79
        %v2096 = vpop.permute.xlu0 %2095
        %2097 = vrot.lane.b32.xlu0 %v386, 79
        %v2098 = vpop.permute.xlu0 %2097
        %2099 = vrot.lane.b32.xlu0 %v378, 79
        %v2100 = vpop.permute.xlu0 %2099
        %vm2101 = vcmask 646144
        %v2102 = vsel %vm2101, %v2092, %v2094
        %v2103 = vsel %vm2101, %v2094, %v2096
        %v2104 = vsel %vm2101, %v2096, %v2098
        %v2105 = vsel %vm2101, %v2098, %v2100
        %v2107 = vsel %vm402, %v2090, 0
        %v2109 = vsel %vm406, %v2102, 0
        %v2111 = vsel %vm406, %v2103, 0
        %v2113 = vsel %vm406, %v2104, 0
        %v2115 = vsel %vm406, %v2105, 0
        %v2117 = vsel %vm406, %v2100, 0
        %2119 = vmatprep.subr.mxu0 %v2111
        %2120 = vmatpush1.msra.mxu0 %v2109
        %2121 = vmatprep.subr.mxu0 0.0
        %2122 = vmatpush1.msra.mxu0 0.0
        %2123 = vmatprep.subr.mxu0 0.0
        %2124 = vmatpush1.msra.mxu0 0.0
        %2125 = vmatprep.subr.mxu0 0.0
        %2126 = vmatpush1.msra.mxu0 0.0
        %2127 = vmatprep.subr.mxu0 0.0
        %2128 = vmatpush1.msra.mxu0 0.0
        %2129 = vmatprep.subr.mxu0 0.0
        %2130 = vmatpush1.msra.mxu0 0.0
        %2131 = vmatprep.subr.mxu0 0.0
        %2132 = vmatpush1.msra.mxu0 0.0
        %2133 = vmatprep.subr.mxu0 0.0
        %2134 = vmatpush1.msra.mxu0 0.0
        %2135 = vmatprep.subr.mxu0 0.0
        %2136 = vmatpush1.msra.mxu0 0.0
        %2137 = vmatprep.subr.mxu0 0.0
        %2138 = vmatpush1.msra.mxu0 0.0
        %2139 = vmatprep.subr.mxu0 0.0
        %2140 = vmatpush1.msra.mxu0 0.0
        %2141 = vmatprep.subr.mxu0 0.0
        %2142 = vmatpush1.msra.mxu0 0.0
        %2143 = vmatprep.subr.mxu0 0.0
        %2144 = vmatpush1.msra.mxu0 0.0
        %2145 = vmatprep.subr.mxu0 0.0
        %2146 = vmatpush1.msra.mxu0 0.0
        %2147 = vmatprep.subr.mxu0 0.0
        %2148 = vmatpush1.msra.mxu0 0.0
        %2149 = vmatprep.subr.mxu0 0.0
        %2150 = vmatpush1.msra.mxu0 0.0
        %2151 = vmatprep.subr.mxu0 0.0
        %2152 = vmatpush1.msra.mxu0 0.0
        %2153 = vmatprep.subr.mxu0 0.0
        %2154 = vmatpush1.msra.mxu0 0.0
        %2155 = vmatprep.subr.mxu0 0.0
        %2156 = vmatpush1.msra.mxu0 0.0
        %2157 = vmatprep.subr.mxu0 0.0
        %2158 = vmatpush1.msra.mxu0 0.0
        %2159 = vmatprep.subr.mxu0 0.0
        %2160 = vmatpush1.msra.mxu0 0.0
        %2161 = vmatprep.subr.mxu0 0.0
        %2162 = vmatpush1.msra.mxu0 0.0
        %2163 = vmatprep.subr.mxu0 0.0
        %2164 = vmatpush1.msra.mxu0 0.0
        %2165 = vmatprep.subr.mxu0 0.0
        %2166 = vmatpush1.msra.mxu0 0.0
        %2167 = vmatprep.subr.mxu0 0.0
        %2168 = vmatpush1.msra.mxu0 0.0
        %2169 = vmatprep.subr.mxu0 0.0
        %2170 = vmatpush1.msra.mxu0 0.0
        %2171 = vmatprep.subr.mxu0 0.0
        %2172 = vmatpush1.msra.mxu0 0.0
        %2173 = vmatprep.subr.mxu0 0.0
        %2174 = vmatpush1.msra.mxu0 0.0
        %2175 = vmatprep.subr.mxu0 0.0
        %2176 = vmatpush1.msra.mxu0 0.0
        %2177 = vmatprep.subr.mxu0 0.0
        %2178 = vmatpush1.msra.mxu0 0.0
        %2179 = vmatprep.subr.mxu0 0.0
        %2180 = vmatpush1.msra.mxu0 0.0
        %2181 = vmatprep.subr.mxu0 0.0
        %2182 = vmatpush1.msra.mxu0 0.0
        %2183 = vmatprep.mubr.f32.mxu0 0.0
        %2184 = vmatmul.mubr.f32.gmra.mrb[0].mxu0 %v2107
        %v2185 = vpop.f32.mrb[0].mxu0
        %v2186 = vadd.f32 0.0, %v2185
        %v2187 = vpop.f32.mrb[0].mxu0
        %v2188 = vadd.f32 0.0, %v2187
        %2189 = vdwg.mxu0
        %2190 = vmatprep.subr.mxu0 %v2115
        %2191 = vmatpush1.msra.mxu0 %v2113
        %2192 = vmatprep.subr.mxu0 0.0
        %2193 = vmatpush1.msra.mxu0 0.0
        %2194 = vmatprep.subr.mxu0 0.0
        %2195 = vmatpush1.msra.mxu0 0.0
        %2196 = vmatprep.subr.mxu0 0.0
        %2197 = vmatpush1.msra.mxu0 0.0
        %2198 = vmatprep.subr.mxu0 0.0
        %2199 = vmatpush1.msra.mxu0 0.0
        %2200 = vmatprep.subr.mxu0 0.0
        %2201 = vmatpush1.msra.mxu0 0.0
        %2202 = vmatprep.subr.mxu0 0.0
        %2203 = vmatpush1.msra.mxu0 0.0
        %2204 = vmatprep.subr.mxu0 0.0
        %2205 = vmatpush1.msra.mxu0 0.0
        %2206 = vmatprep.subr.mxu0 0.0
        %2207 = vmatpush1.msra.mxu0 0.0
        %2208 = vmatprep.subr.mxu0 0.0
        %2209 = vmatpush1.msra.mxu0 0.0
        %2210 = vmatprep.subr.mxu0 0.0
        %2211 = vmatpush1.msra.mxu0 0.0
        %2212 = vmatprep.subr.mxu0 0.0
        %2213 = vmatpush1.msra.mxu0 0.0
        %2214 = vmatprep.subr.mxu0 0.0
        %2215 = vmatpush1.msra.mxu0 0.0
        %2216 = vmatprep.subr.mxu0 0.0
        %2217 = vmatpush1.msra.mxu0 0.0
        %2218 = vmatprep.subr.mxu0 0.0
        %2219 = vmatpush1.msra.mxu0 0.0
        %2220 = vmatprep.subr.mxu0 0.0
        %2221 = vmatpush1.msra.mxu0 0.0
        %2222 = vmatprep.subr.mxu0 0.0
        %2223 = vmatpush1.msra.mxu0 0.0
        %2224 = vmatprep.subr.mxu0 0.0
        %2225 = vmatpush1.msra.mxu0 0.0
        %2226 = vmatprep.subr.mxu0 0.0
        %2227 = vmatpush1.msra.mxu0 0.0
        %2228 = vmatprep.subr.mxu0 0.0
        %2229 = vmatpush1.msra.mxu0 0.0
        %2230 = vmatprep.subr.mxu0 0.0
        %2231 = vmatpush1.msra.mxu0 0.0
        %2232 = vmatprep.subr.mxu0 0.0
        %2233 = vmatpush1.msra.mxu0 0.0
        %2234 = vmatprep.subr.mxu0 0.0
        %2235 = vmatpush1.msra.mxu0 0.0
        %2236 = vmatprep.subr.mxu0 0.0
        %2237 = vmatpush1.msra.mxu0 0.0
        %2238 = vmatprep.subr.mxu0 0.0
        %2239 = vmatpush1.msra.mxu0 0.0
        %2240 = vmatprep.subr.mxu0 0.0
        %2241 = vmatpush1.msra.mxu0 0.0
        %2242 = vmatprep.subr.mxu0 0.0
        %2243 = vmatpush1.msra.mxu0 0.0
        %2244 = vmatprep.subr.mxu0 0.0
        %2245 = vmatpush1.msra.mxu0 0.0
        %2246 = vmatprep.subr.mxu0 0.0
        %2247 = vmatpush1.msra.mxu0 0.0
        %2248 = vmatprep.subr.mxu0 0.0
        %2249 = vmatpush1.msra.mxu0 0.0
        %2250 = vmatprep.subr.mxu0 0.0
        %2251 = vmatpush1.msra.mxu0 0.0
        %2252 = vmatprep.subr.mxu0 0.0
        %2253 = vmatpush1.msra.mxu0 0.0
        %2254 = vmatprep.mubr.f32.mxu0 0.0
        %2255 = vmatmul.mubr.f32.gmra.mrb[0].mxu0 %v2107
        %v2256 = vpop.f32.mrb[0].mxu0
        %v2257 = vadd.f32 0.0, %v2256
        %v2258 = vpop.f32.mrb[0].mxu0
        %v2259 = vadd.f32 0.0, %v2258
        %2260 = vdwg.mxu0
        %2261 = vmatprep.subr.mxu0 0.0
        %2262 = vmatpush1.msra.mxu0 %v2117
        %2263 = vmatprep.subr.mxu0 0.0
        %2264 = vmatpush1.msra.mxu0 0.0
        %2265 = vmatprep.subr.mxu0 0.0
        %2266 = vmatpush1.msra.mxu0 0.0
        %2267 = vmatprep.subr.mxu0 0.0
        %2268 = vmatpush1.msra.mxu0 0.0
        %2269 = vmatprep.subr.mxu0 0.0
        %2270 = vmatpush1.msra.mxu0 0.0
        %2271 = vmatprep.subr.mxu0 0.0
        %2272 = vmatpush1.msra.mxu0 0.0
        %2273 = vmatprep.subr.mxu0 0.0
        %2274 = vmatpush1.msra.mxu0 0.0
        %2275 = vmatprep.subr.mxu0 0.0
        %2276 = vmatpush1.msra.mxu0 0.0
        %2277 = vmatprep.subr.mxu0 0.0
        %2278 = vmatpush1.msra.mxu0 0.0
        %2279 = vmatprep.subr.mxu0 0.0
        %2280 = vmatpush1.msra.mxu0 0.0
        %2281 = vmatprep.subr.mxu0 0.0
        %2282 = vmatpush1.msra.mxu0 0.0
        %2283 = vmatprep.subr.mxu0 0.0
        %2284 = vmatpush1.msra.mxu0 0.0
        %2285 = vmatprep.subr.mxu0 0.0
        %2286 = vmatpush1.msra.mxu0 0.0
        %2287 = vmatprep.subr.mxu0 0.0
        %2288 = vmatpush1.msra.mxu0 0.0
        %2289 = vmatprep.subr.mxu0 0.0
        %2290 = vmatpush1.msra.mxu0 0.0
        %2291 = vmatprep.subr.mxu0 0.0
        %2292 = vmatpush1.msra.mxu0 0.0
        %2293 = vmatprep.subr.mxu0 0.0
        %2294 = vmatpush1.msra.mxu0 0.0
        %2295 = vmatprep.subr.mxu0 0.0
        %2296 = vmatpush1.msra.mxu0 0.0
        %2297 = vmatprep.subr.mxu0 0.0
        %2298 = vmatpush1.msra.mxu0 0.0
        %2299 = vmatprep.subr.mxu0 0.0
        %2300 = vmatpush1.msra.mxu0 0.0
        %2301 = vmatprep.subr.mxu0 0.0
        %2302 = vmatpush1.msra.mxu0 0.0
        %2303 = vmatprep.subr.mxu0 0.0
        %2304 = vmatpush1.msra.mxu0 0.0
        %2305 = vmatprep.subr.mxu0 0.0
        %2306 = vmatpush1.msra.mxu0 0.0
        %2307 = vmatprep.subr.mxu0 0.0
        %2308 = vmatpush1.msra.mxu0 0.0
        %2309 = vmatprep.subr.mxu0 0.0
        %2310 = vmatpush1.msra.mxu0 0.0
        %2311 = vmatprep.subr.mxu0 0.0
        %2312 = vmatpush1.msra.mxu0 0.0
        %2313 = vmatprep.subr.mxu0 0.0
        %2314 = vmatpush1.msra.mxu0 0.0
        %2315 = vmatprep.subr.mxu0 0.0
        %2316 = vmatpush1.msra.mxu0 0.0
        %2317 = vmatprep.subr.mxu0 0.0
        %2318 = vmatpush1.msra.mxu0 0.0
        %2319 = vmatprep.subr.mxu0 0.0
        %2320 = vmatpush1.msra.mxu0 0.0
        %2321 = vmatprep.subr.mxu0 0.0
        %2322 = vmatpush1.msra.mxu0 0.0
        %2323 = vmatprep.subr.mxu0 0.0
        %2324 = vmatpush1.msra.mxu0 0.0
        %2325 = vmatprep.mubr.f32.mxu0 0.0
        %2326 = vmatmul.mubr.f32.gmra.mrb[0].mxu0 %v2107
        %v2327 = vpop.f32.mrb[0].mxu0
        %v2328 = vadd.f32 0.0, %v2327
        %v2329 = vpop.f32.mrb[0].mxu0
        %2330 = vdwg.mxu0
        %v2331 = vadd.f32 %v2084, %v2186
        %v2332 = vadd.f32 %v2085, %v2188
        %v2333 = vadd.f32 %v2086, %v2257
        %v2334 = vadd.f32 %v2087, %v2259
        %v2335 = vadd.f32 %v2088, %v2328
        %s2336 = scalar_lea.vmem %s1, 64
        %v2337 = vld [vmem:[%s2336] sm:$0xff]
        %2338 = vrot.lane.b32.xlu0 %v376, 78
        %v2339 = vpop.permute.xlu0 %2338
        %2340 = vrot.lane.b32.xlu0 %v385, 78
        %v2341 = vpop.permute.xlu0 %2340
        %2342 = vrot.lane.b32.xlu0 %v377, 78
        %v2343 = vpop.permute.xlu0 %2342
        %2344 = vrot.lane.b32.xlu0 %v386, 78
        %v2345 = vpop.permute.xlu0 %2344
        %2346 = vrot.lane.b32.xlu0 %v378, 78
        %v2347 = vpop.permute.xlu0 %2346
        %vm2348 = vcmask 637952
        %v2349 = vsel %vm2348, %v2339, %v2341
        %v2350 = vsel %vm2348, %v2341, %v2343
        %v2351 = vsel %vm2348, %v2343, %v2345
        %v2352 = vsel %vm2348, %v2345, %v2347
        %v2354 = vsel %vm402, %v2337, 0
        %v2356 = vsel %vm406, %v2349, 0
        %v2358 = vsel %vm406, %v2350, 0
        %v2360 = vsel %vm406, %v2351, 0
        %v2362 = vsel %vm406, %v2352, 0
        %v2364 = vsel %vm406, %v2347, 0
        %2366 = vmatprep.subr.mxu0 %v2358
        %2367 = vmatpush1.msra.mxu0 %v2356
        %2368 = vmatprep.subr.mxu0 0.0
        %2369 = vmatpush1.msra.mxu0 0.0
        %2370 = vmatprep.subr.mxu0 0.0
        %2371 = vmatpush1.msra.mxu0 0.0
        %2372 = vmatprep.subr.mxu0 0.0
        %2373 = vmatpush1.msra.mxu0 0.0
        %2374 = vmatprep.subr.mxu0 0.0
        %2375 = vmatpush1.msra.mxu0 0.0
        %2376 = vmatprep.subr.mxu0 0.0
        %2377 = vmatpush1.msra.mxu0 0.0
        %2378 = vmatprep.subr.mxu0 0.0
        %2379 = vmatpush1.msra.mxu0 0.0
        %2380 = vmatprep.subr.mxu0 0.0
        %2381 = vmatpush1.msra.mxu0 0.0
        %2382 = vmatprep.subr.mxu0 0.0
        %2383 = vmatpush1.msra.mxu0 0.0
        %2384 = vmatprep.subr.mxu0 0.0
        %2385 = vmatpush1.msra.mxu0 0.0
        %2386 = vmatprep.subr.mxu0 0.0
        %2387 = vmatpush1.msra.mxu0 0.0
        %2388 = vmatprep.subr.mxu0 0.0
        %2389 = vmatpush1.msra.mxu0 0.0
        %2390 = vmatprep.subr.mxu0 0.0
        %2391 = vmatpush1.msra.mxu0 0.0
        %2392 = vmatprep.subr.mxu0 0.0
        %2393 = vmatpush1.msra.mxu0 0.0
        %2394 = vmatprep.subr.mxu0 0.0
        %2395 = vmatpush1.msra.mxu0 0.0
        %2396 = vmatprep.subr.mxu0 0.0
        %2397 = vmatpush1.msra.mxu0 0.0
        %2398 = vmatprep.subr.mxu0 0.0
        %2399 = vmatpush1.msra.mxu0 0.0
        %2400 = vmatprep.subr.mxu0 0.0
        %2401 = vmatpush1.msra.mxu0 0.0
        %2402 = vmatprep.subr.mxu0 0.0
        %2403 = vmatpush1.msra.mxu0 0.0
        %2404 = vmatprep.subr.mxu0 0.0
        %2405 = vmatpush1.msra.mxu0 0.0
        %2406 = vmatprep.subr.mxu0 0.0
        %2407 = vmatpush1.msra.mxu0 0.0
        %2408 = vmatprep.subr.mxu0 0.0
        %2409 = vmatpush1.msra.mxu0 0.0
        %2410 = vmatprep.subr.mxu0 0.0
        %2411 = vmatpush1.msra.mxu0 0.0
        %2412 = vmatprep.subr.mxu0 0.0
        %2413 = vmatpush1.msra.mxu0 0.0
        %2414 = vmatprep.subr.mxu0 0.0
        %2415 = vmatpush1.msra.mxu0 0.0
        %2416 = vmatprep.subr.mxu0 0.0
        %2417 = vmatpush1.msra.mxu0 0.0
        %2418 = vmatprep.subr.mxu0 0.0
        %2419 = vmatpush1.msra.mxu0 0.0
        %2420 = vmatprep.subr.mxu0 0.0
        %2421 = vmatpush1.msra.mxu0 0.0
        %2422 = vmatprep.subr.mxu0 0.0
        %2423 = vmatpush1.msra.mxu0 0.0
        %2424 = vmatprep.subr.mxu0 0.0
        %2425 = vmatpush1.msra.mxu0 0.0
        %2426 = vmatprep.subr.mxu0 0.0
        %2427 = vmatpush1.msra.mxu0 0.0
        %2428 = vmatprep.subr.mxu0 0.0
        %2429 = vmatpush1.msra.mxu0 0.0
        %2430 = vmatprep.mubr.f32.mxu0 0.0
        %2431 = vmatmul.mubr.f32.gmra.mrb[0].mxu0 %v2354
        %v2432 = vpop.f32.mrb[0].mxu0
        %v2433 = vadd.f32 0.0, %v2432
        %v2434 = vpop.f32.mrb[0].mxu0
        %v2435 = vadd.f32 0.0, %v2434
        %2436 = vdwg.mxu0
        %2437 = vmatprep.subr.mxu0 %v2362
        %2438 = vmatpush1.msra.mxu0 %v2360
        %2439 = vmatprep.subr.mxu0 0.0
        %2440 = vmatpush1.msra.mxu0 0.0
        %2441 = vmatprep.subr.mxu0 0.0
        %2442 = vmatpush1.msra.mxu0 0.0
        %2443 = vmatprep.subr.mxu0 0.0
        %2444 = vmatpush1.msra.mxu0 0.0
        %2445 = vmatprep.subr.mxu0 0.0
        %2446 = vmatpush1.msra.mxu0 0.0
        %2447 = vmatprep.subr.mxu0 0.0
        %2448 = vmatpush1.msra.mxu0 0.0
        %2449 = vmatprep.subr.mxu0 0.0
        %2450 = vmatpush1.msra.mxu0 0.0
        %2451 = vmatprep.subr.mxu0 0.0
        %2452 = vmatpush1.msra.mxu0 0.0
        %2453 = vmatprep.subr.mxu0 0.0
        %2454 = vmatpush1.msra.mxu0 0.0
        %2455 = vmatprep.subr.mxu0 0.0
        %2456 = vmatpush1.msra.mxu0 0.0
        %2457 = vmatprep.subr.mxu0 0.0
        %2458 = vmatpush1.msra.mxu0 0.0
        %2459 = vmatprep.subr.mxu0 0.0
        %2460 = vmatpush1.msra.mxu0 0.0
        %2461 = vmatprep.subr.mxu0 0.0
        %2462 = vmatpush1.msra.mxu0 0.0
        %2463 = vmatprep.subr.mxu0 0.0
        %2464 = vmatpush1.msra.mxu0 0.0
        %2465 = vmatprep.subr.mxu0 0.0
        %2466 = vmatpush1.msra.mxu0 0.0
        %2467 = vmatprep.subr.mxu0 0.0
        %2468 = vmatpush1.msra.mxu0 0.0
        %2469 = vmatprep.subr.mxu0 0.0
        %2470 = vmatpush1.msra.mxu0 0.0
        %2471 = vmatprep.subr.mxu0 0.0
        %2472 = vmatpush1.msra.mxu0 0.0
        %2473 = vmatprep.subr.mxu0 0.0
        %2474 = vmatpush1.msra.mxu0 0.0
        %2475 = vmatprep.subr.mxu0 0.0
        %2476 = vmatpush1.msra.mxu0 0.0
        %2477 = vmatprep.subr.mxu0 0.0
        %2478 = vmatpush1.msra.mxu0 0.0
        %2479 = vmatprep.subr.mxu0 0.0
        %2480 = vmatpush1.msra.mxu0 0.0
        %2481 = vmatprep.subr.mxu0 0.0
        %2482 = vmatpush1.msra.mxu0 0.0
        %2483 = vmatprep.subr.mxu0 0.0
        %2484 = vmatpush1.msra.mxu0 0.0
        %2485 = vmatprep.subr.mxu0 0.0
        %2486 = vmatpush1.msra.mxu0 0.0
        %2487 = vmatprep.subr.mxu0 0.0
        %2488 = vmatpush1.msra.mxu0 0.0
        %2489 = vmatprep.subr.mxu0 0.0
        %2490 = vmatpush1.msra.mxu0 0.0
        %2491 = vmatprep.subr.mxu0 0.0
        %2492 = vmatpush1.msra.mxu0 0.0
        %2493 = vmatprep.subr.mxu0 0.0
        %2494 = vmatpush1.msra.mxu0 0.0
        %2495 = vmatprep.subr.mxu0 0.0
        %2496 = vmatpush1.msra.mxu0 0.0
        %2497 = vmatprep.subr.mxu0 0.0
        %2498 = vmatpush1.msra.mxu0 0.0
        %2499 = vmatprep.subr.mxu0 0.0
        %2500 = vmatpush1.msra.mxu0 0.0
        %2501 = vmatprep.mubr.f32.mxu0 0.0
        %2502 = vmatmul.mubr.f32.gmra.mrb[0].mxu0 %v2354
        %v2503 = vpop.f32.mrb[0].mxu0
        %v2504 = vadd.f32 0.0, %v2503
        %v2505 = vpop.f32.mrb[0].mxu0
        %v2506 = vadd.f32 0.0, %v2505
        %2507 = vdwg.mxu0
        %2508 = vmatprep.subr.mxu0 0.0
        %2509 = vmatpush1.msra.mxu0 %v2364
        %2510 = vmatprep.subr.mxu0 0.0
        %2511 = vmatpush1.msra.mxu0 0.0
        %2512 = vmatprep.subr.mxu0 0.0
        %2513 = vmatpush1.msra.mxu0 0.0
        %2514 = vmatprep.subr.mxu0 0.0
        %2515 = vmatpush1.msra.mxu0 0.0
        %2516 = vmatprep.subr.mxu0 0.0
        %2517 = vmatpush1.msra.mxu0 0.0
        %2518 = vmatprep.subr.mxu0 0.0
        %2519 = vmatpush1.msra.mxu0 0.0
        %2520 = vmatprep.subr.mxu0 0.0
        %2521 = vmatpush1.msra.mxu0 0.0
        %2522 = vmatprep.subr.mxu0 0.0
        %2523 = vmatpush1.msra.mxu0 0.0
        %2524 = vmatprep.subr.mxu0 0.0
        %2525 = vmatpush1.msra.mxu0 0.0
        %2526 = vmatprep.subr.mxu0 0.0
        %2527 = vmatpush1.msra.mxu0 0.0
        %2528 = vmatprep.subr.mxu0 0.0
        %2529 = vmatpush1.msra.mxu0 0.0
        %2530 = vmatprep.subr.mxu0 0.0
        %2531 = vmatpush1.msra.mxu0 0.0
        %2532 = vmatprep.subr.mxu0 0.0
        %2533 = vmatpush1.msra.mxu0 0.0
        %2534 = vmatprep.subr.mxu0 0.0
        %2535 = vmatpush1.msra.mxu0 0.0
        %2536 = vmatprep.subr.mxu0 0.0
        %2537 = vmatpush1.msra.mxu0 0.0
        %2538 = vmatprep.subr.mxu0 0.0
        %2539 = vmatpush1.msra.mxu0 0.0
        %2540 = vmatprep.subr.mxu0 0.0
        %2541 = vmatpush1.msra.mxu0 0.0
        %2542 = vmatprep.subr.mxu0 0.0
        %2543 = vmatpush1.msra.mxu0 0.0
        %2544 = vmatprep.subr.mxu0 0.0
        %2545 = vmatpush1.msra.mxu0 0.0
        %2546 = vmatprep.subr.mxu0 0.0
        %2547 = vmatpush1.msra.mxu0 0.0
        %2548 = vmatprep.subr.mxu0 0.0
        %2549 = vmatpush1.msra.mxu0 0.0
        %2550 = vmatprep.subr.mxu0 0.0
        %2551 = vmatpush1.msra.mxu0 0.0
        %2552 = vmatprep.subr.mxu0 0.0
        %2553 = vmatpush1.msra.mxu0 0.0
        %2554 = vmatprep.subr.mxu0 0.0
        %2555 = vmatpush1.msra.mxu0 0.0
        %2556 = vmatprep.subr.mxu0 0.0
        %2557 = vmatpush1.msra.mxu0 0.0
        %2558 = vmatprep.subr.mxu0 0.0
        %2559 = vmatpush1.msra.mxu0 0.0
        %2560 = vmatprep.subr.mxu0 0.0
        %2561 = vmatpush1.msra.mxu0 0.0
        %2562 = vmatprep.subr.mxu0 0.0
        %2563 = vmatpush1.msra.mxu0 0.0
        %2564 = vmatprep.subr.mxu0 0.0
        %2565 = vmatpush1.msra.mxu0 0.0
        %2566 = vmatprep.subr.mxu0 0.0
        %2567 = vmatpush1.msra.mxu0 0.0
        %2568 = vmatprep.subr.mxu0 0.0
        %2569 = vmatpush1.msra.mxu0 0.0
        %2570 = vmatprep.subr.mxu0 0.0
        %2571 = vmatpush1.msra.mxu0 0.0
        %2572 = vmatprep.mubr.f32.mxu0 0.0
        %2573 = vmatmul.mubr.f32.gmra.mrb[0].mxu0 %v2354
        %v2574 = vpop.f32.mrb[0].mxu0
        %v2575 = vadd.f32 0.0, %v2574
        %v2576 = vpop.f32.mrb[0].mxu0
        %2577 = vdwg.mxu0
        %v2578 = vadd.f32 %v2331, %v2433
        %v2579 = vadd.f32 %v2332, %v2435
        %v2580 = vadd.f32 %v2333, %v2504
        %v2581 = vadd.f32 %v2334, %v2506
        %v2582 = vadd.f32 %v2335, %v2575
        %v2583 = vld [vmem:[%s2] sm:$0xff]
        %2585 = vset.pattern.permute.xlu0 0
        %2586 = vperm.xlu0 %2585, %v2583
        %v2587 = vpop.permute.xlu0 %2586
        %v2589 = vadd.f32 %v2578, %v2587
        %v2590 = vadd.f32 %v2579, %v2587
        %v2591 = vadd.f32 %v2580, %v2587
        %v2592 = vadd.f32 %v2581, %v2587
        %v2593 = vadd.f32 %v2582, %v2587
        %2598 = vrot.lane.b32.xlu0 %v2589, 127
        %v2599 = vpop.permute.xlu0 %2598
        %2600 = vrot.lane.b32.xlu0 %v2590, 127
        %v2601 = vpop.permute.xlu0 %2600
        %2602 = vrot.lane.b32.xlu0 %v2591, 127
        %v2603 = vpop.permute.xlu0 %2602
        %2604 = vrot.lane.b32.xlu0 %v2592, 127
        %v2605 = vpop.permute.xlu0 %2604
        %v2606 = vsel %vm397, %v2599, %v2601
        %v2607 = vsel %vm397, %v2601, %v2603
        %v2608 = vsel %vm397, %v2603, %v2605
        %v2613 = vmax.f32 %v2589, %v2606
        %v2614 = vmax.f32 %v2590, %v2607
        %v2615 = vmax.f32 %v2591, %v2608
        %v2616 = vmax.f32 %v2592, %v2605
        %2618 = vrot.lane.b32.xlu0 %v2593, 127
        %v2619 = vpop.permute.xlu0 %2618
        %v2620 = vsel %vm397, %v2605, %v2619
        %v2623 = vmax.f32 %v2592, %v2620
        %v2624 = vmax.f32 %v2593, %v2619
        %2630 = vrot.lane.b32.xlu0 %v2613, 104
        %v2631 = vpop.permute.xlu0 %2630
        %2632 = vrot.lane.b32.xlu0 %v2614, 104
        %v2633 = vpop.permute.xlu0 %2632
        %2634 = vrot.lane.b32.xlu0 %v2615, 104
        %v2635 = vpop.permute.xlu0 %2634
        %2636 = vrot.lane.b32.xlu0 %v2623, 104
        %v2637 = vpop.permute.xlu0 %2636
        %2638 = vrot.lane.b32.xlu0 %v2624, 104
        %v2639 = vpop.permute.xlu0 %2638
        %v2640 = vsel %vm1113, %v2631, %v2633
        %v2641 = vsel %vm1113, %v2633, %v2635
        %v2642 = vsel %vm1113, %v2635, %v2637
        %v2643 = vsel %vm1113, %v2637, %v2639
        %v2648 = vmax.f32 %v2613, %v2640
        %v2649 = vmax.f32 %v2614, %v2641
        %v2650 = vmax.f32 %v2615, %v2642
        %v2651 = vmax.f32 %v2616, %v2643
        %v2652 = vmax.f32 %v2648, 0.0
        %v2653 = vmax.f32 %v2649, 0.0
        %v2654 = vmax.f32 %v2650, 0.0
        %v2655 = vmax.f32 %v2651, 0.0
        %v2656 = vld [vmem:[%s3] sm:$0xff]
        %v2657 = vld [vmem:[%s3 + $0x8] sm:$0xff]
        %v2658 = vld [vmem:[%s3 + $0x10] sm:$0xff]
        %v2659 = vld [vmem:[%s3 + $0x18] sm:$0xff]
        %v2660 = vld [vmem:[%s3 + $0x20] sm:$0xff]
        %v2661 = vld [vmem:[%s3 + $0x28] sm:$0xff]
        %v2662 = vld [vmem:[%s3 + $0x30] sm:$0xff]
        %v2663 = vld [vmem:[%s3 + $0x38] sm:$0xff]
        %v2664 = vld [vmem:[%s3 + $0x40] sm:$0xff]
        %v2665 = vld [vmem:[%s3 + $0x48] sm:$0xff]
        %v2666 = vld [vmem:[%s3 + $0x50] sm:$0xff]
        %v2667 = vld [vmem:[%s3 + $0x58] sm:$0xff]
        %v2668 = vld [vmem:[%s3 + $0x60] sm:$0xff]
        %v2669 = vld [vmem:[%s3 + $0x68] sm:$0xff]
        %v2670 = vld [vmem:[%s3 + $0x70] sm:$0xff]
        %v2671 = vld [vmem:[%s3 + $0x78] sm:$0xff]
        %v2672 = vld [vmem:[%s3 + $0x80] sm:$0xff]
        %v2673 = vld [vmem:[%s3 + $0x88] sm:$0xff]
        %v2674 = vld [vmem:[%s3 + $0x90] sm:$0xff]
        %v2675 = vld [vmem:[%s3 + $0x98] sm:$0xff]
        %v2676 = vld [vmem:[%s3 + $0xa0] sm:$0xff]
        %v2677 = vld [vmem:[%s3 + $0xa8] sm:$0xff]
        %v2678 = vld [vmem:[%s3 + $0xb0] sm:$0xff]
        %v2679 = vld [vmem:[%s3 + $0xb8] sm:$0xff]
        %v2680 = vld [vmem:[%s3 + $0xc0] sm:$0xff]
        %v2681 = vld [vmem:[%s3 + $0xc8] sm:$0xff]
        %v2682 = vld [vmem:[%s3 + $0xd0] sm:$0xff]
        %v2683 = vld [vmem:[%s3 + $0xd8] sm:$0xff]
        %v2684 = vld [vmem:[%s3 + $0xe0] sm:$0xff]
        %v2685 = vld [vmem:[%s3 + $0xe8] sm:$0xff]
        %v2686 = vld [vmem:[%s3 + $0xf0] sm:$0xff]
        %v2687 = vld [vmem:[%s3 + $0xf8] sm:$0xff]
        %v2688 = vld [vmem:[%s3 + $0x100] sm:$0xff]
        %v2689 = vld [vmem:[%s3 + $0x108] sm:$0xff]
        %v2690 = vld [vmem:[%s3 + $0x110] sm:$0xff]
        %v2691 = vld [vmem:[%s3 + $0x118] sm:$0xff]
        %v2692 = vld [vmem:[%s3 + $0x120] sm:$0xff]
        %v2693 = vld [vmem:[%s3 + $0x128] sm:$0xff]
        %v2694 = vld [vmem:[%s3 + $0x130] sm:$0xff]
        %v2695 = vld [vmem:[%s3 + $0x138] sm:$0xff]
        %v2696 = vld [vmem:[%s3 + $0x140] sm:$0xff]
        %v2697 = vld [vmem:[%s3 + $0x148] sm:$0xff]
        %v2698 = vld [vmem:[%s3 + $0x150] sm:$0xff]
        %v2699 = vld [vmem:[%s3 + $0x158] sm:$0xff]
        %v2700 = vld [vmem:[%s3 + $0x160] sm:$0xff]
        %v2701 = vld [vmem:[%s3 + $0x168] sm:$0xff]
        %v2702 = vld [vmem:[%s3 + $0x170] sm:$0xff]
        %v2703 = vld [vmem:[%s3 + $0x178] sm:$0xff]
        %v2704 = vld [vmem:[%s3 + $0x180] sm:$0xff]
        %v2705 = vld [vmem:[%s3 + $0x188] sm:$0xff]
        %v2706 = vld [vmem:[%s3 + $0x190] sm:$0xff]
        %v2707 = vld [vmem:[%s3 + $0x198] sm:$0xff]
        %v2708 = vld [vmem:[%s3 + $0x1a0] sm:$0xff]
        %v2709 = vld [vmem:[%s3 + $0x1a8] sm:$0xff]
        %v2710 = vld [vmem:[%s3 + $0x1b0] sm:$0xff]
        %v2711 = vld [vmem:[%s3 + $0x1b8] sm:$0xff]
        %v2712 = vld [vmem:[%s3 + $0x1c0] sm:$0xff]
        %v2713 = vld [vmem:[%s3 + $0x1c8] sm:$0xff]
        %v2714 = vld [vmem:[%s3 + $0x1d0] sm:$0xff]
        %v2715 = vld [vmem:[%s3 + $0x1d8] sm:$0xff]
        %v2716 = vld [vmem:[%s3 + $0x1e0] sm:$0xff]
        %v2717 = vld [vmem:[%s3 + $0x1e8] sm:$0xff]
        %v2718 = vld [vmem:[%s3 + $0x1f0] sm:$0x1f]
        %vm2719 = vcmask 957440
        %v2721 = vsel %vm2719, %v2655, 0
        %vm2723 = vcmask 1044480
        %v2725 = vsel %vm2723, %v2718, 0
        %2727 = vmatprep.subr.mxu0 0.0
        %2728 = vmatpush1.msra.mxu0 %v2656
        %2729 = vmatprep.subr.mxu0 0.0
        %2730 = vmatpush1.msra.mxu0 %v2657
        %2731 = vmatprep.subr.mxu0 0.0
        %2732 = vmatpush1.msra.mxu0 %v2658
        %2733 = vmatprep.subr.mxu0 0.0
        %2734 = vmatpush1.msra.mxu0 %v2659
        %2735 = vmatprep.subr.mxu0 0.0
        %2736 = vmatpush1.msra.mxu0 %v2660
        %2737 = vmatprep.subr.mxu0 0.0
        %2738 = vmatpush1.msra.mxu0 %v2661
        %2739 = vmatprep.subr.mxu0 0.0
        %2740 = vmatpush1.msra.mxu0 %v2662
        %2741 = vmatprep.subr.mxu0 0.0
        %2742 = vmatpush1.msra.mxu0 %v2663
        %2743 = vmatprep.subr.mxu0 0.0
        %2744 = vmatpush1.msra.mxu0 %v2664
        %2745 = vmatprep.subr.mxu0 0.0
        %2746 = vmatpush1.msra.mxu0 %v2665
        %2747 = vmatprep.subr.mxu0 0.0
        %2748 = vmatpush1.msra.mxu0 %v2666
        %2749 = vmatprep.subr.mxu0 0.0
        %2750 = vmatpush1.msra.mxu0 %v2667
        %2751 = vmatprep.subr.mxu0 0.0
        %2752 = vmatpush1.msra.mxu0 %v2668
        %2753 = vmatprep.subr.mxu0 0.0
        %2754 = vmatpush1.msra.mxu0 %v2669
        %2755 = vmatprep.subr.mxu0 0.0
        %2756 = vmatpush1.msra.mxu0 %v2670
        %2757 = vmatprep.subr.mxu0 0.0
        %2758 = vmatpush1.msra.mxu0 %v2671
        %2759 = vmatprep.subr.mxu0 0.0
        %2760 = vmatpush1.msra.mxu0 %v2672
        %2761 = vmatprep.subr.mxu0 0.0
        %2762 = vmatpush1.msra.mxu0 %v2673
        %2763 = vmatprep.subr.mxu0 0.0
        %2764 = vmatpush1.msra.mxu0 %v2674
        %2765 = vmatprep.subr.mxu0 0.0
        %2766 = vmatpush1.msra.mxu0 %v2675
        %2767 = vmatprep.subr.mxu0 0.0
        %2768 = vmatpush1.msra.mxu0 %v2676
        %2769 = vmatprep.subr.mxu0 0.0
        %2770 = vmatpush1.msra.mxu0 %v2677
        %2771 = vmatprep.subr.mxu0 0.0
        %2772 = vmatpush1.msra.mxu0 %v2678
        %2773 = vmatprep.subr.mxu0 0.0
        %2774 = vmatpush1.msra.mxu0 %v2679
        %2775 = vmatprep.subr.mxu0 0.0
        %2776 = vmatpush1.msra.mxu0 %v2680
        %2777 = vmatprep.subr.mxu0 0.0
        %2778 = vmatpush1.msra.mxu0 %v2681
        %2779 = vmatprep.subr.mxu0 0.0
        %2780 = vmatpush1.msra.mxu0 %v2682
        %2781 = vmatprep.subr.mxu0 0.0
        %2782 = vmatpush1.msra.mxu0 %v2683
        %2783 = vmatprep.subr.mxu0 0.0
        %2784 = vmatpush1.msra.mxu0 %v2684
        %2785 = vmatprep.subr.mxu0 0.0
        %2786 = vmatpush1.msra.mxu0 %v2685
        %2787 = vmatprep.subr.mxu0 0.0
        %2788 = vmatpush1.msra.mxu0 %v2686
        %2789 = vmatprep.subr.mxu0 0.0
        %2790 = vmatpush1.msra.mxu0 %v2687
        %2791 = vmatprep.mubr.f32.mxu0 %v2653
        %2792 = vmatmul.mubr.f32.gmra.mrb[0].mxu0 %v2652
        %v2793 = vpop.f32.mrb[0].mxu0
        %v2794 = vadd.f32 0.0, %v2793
        %v2795 = vpop.f32.mrb[0].mxu0
        %2796 = vdwg.mxu0
        %2797 = vmatprep.subr.mxu0 0.0
        %2798 = vmatpush1.msra.mxu0 %v2688
        %2799 = vmatprep.subr.mxu0 0.0
        %2800 = vmatpush1.msra.mxu0 %v2689
        %2801 = vmatprep.subr.mxu0 0.0
        %2802 = vmatpush1.msra.mxu0 %v2690
        %2803 = vmatprep.subr.mxu0 0.0
        %2804 = vmatpush1.msra.mxu0 %v2691
        %2805 = vmatprep.subr.mxu0 0.0
        %2806 = vmatpush1.msra.mxu0 %v2692
        %2807 = vmatprep.subr.mxu0 0.0
        %2808 = vmatpush1.msra.mxu0 %v2693
        %2809 = vmatprep.subr.mxu0 0.0
        %2810 = vmatpush1.msra.mxu0 %v2694
        %2811 = vmatprep.subr.mxu0 0.0
        %2812 = vmatpush1.msra.mxu0 %v2695
        %2813 = vmatprep.subr.mxu0 0.0
        %2814 = vmatpush1.msra.mxu0 %v2696
        %2815 = vmatprep.subr.mxu0 0.0
        %2816 = vmatpush1.msra.mxu0 %v2697
        %2817 = vmatprep.subr.mxu0 0.0
        %2818 = vmatpush1.msra.mxu0 %v2698
        %2819 = vmatprep.subr.mxu0 0.0
        %2820 = vmatpush1.msra.mxu0 %v2699
        %2821 = vmatprep.subr.mxu0 0.0
        %2822 = vmatpush1.msra.mxu0 %v2700
        %2823 = vmatprep.subr.mxu0 0.0
        %2824 = vmatpush1.msra.mxu0 %v2701
        %2825 = vmatprep.subr.mxu0 0.0
        %2826 = vmatpush1.msra.mxu0 %v2702
        %2827 = vmatprep.subr.mxu0 0.0
        %2828 = vmatpush1.msra.mxu0 %v2703
        %2829 = vmatprep.subr.mxu0 0.0
        %2830 = vmatpush1.msra.mxu0 %v2704
        %2831 = vmatprep.subr.mxu0 0.0
        %2832 = vmatpush1.msra.mxu0 %v2705
        %2833 = vmatprep.subr.mxu0 0.0
        %2834 = vmatpush1.msra.mxu0 %v2706
        %2835 = vmatprep.subr.mxu0 0.0
        %2836 = vmatpush1.msra.mxu0 %v2707
        %2837 = vmatprep.subr.mxu0 0.0
        %2838 = vmatpush1.msra.mxu0 %v2708
        %2839 = vmatprep.subr.mxu0 0.0
        %2840 = vmatpush1.msra.mxu0 %v2709
        %2841 = vmatprep.subr.mxu0 0.0
        %2842 = vmatpush1.msra.mxu0 %v2710
        %2843 = vmatprep.subr.mxu0 0.0
        %2844 = vmatpush1.msra.mxu0 %v2711
        %2845 = vmatprep.subr.mxu0 0.0
        %2846 = vmatpush1.msra.mxu0 %v2712
        %2847 = vmatprep.subr.mxu0 0.0
        %2848 = vmatpush1.msra.mxu0 %v2713
        %2849 = vmatprep.subr.mxu0 0.0
        %2850 = vmatpush1.msra.mxu0 %v2714
        %2851 = vmatprep.subr.mxu0 0.0
        %2852 = vmatpush1.msra.mxu0 %v2715
        %2853 = vmatprep.subr.mxu0 0.0
        %2854 = vmatpush1.msra.mxu0 %v2716
        %2855 = vmatprep.subr.mxu0 0.0
        %2856 = vmatpush1.msra.mxu0 %v2717
        %2857 = vmatprep.subr.mxu0 0.0
        %2858 = vmatpush1.msra.mxu0 %v2725
        %2859 = vmatprep.subr.mxu0 0.0
        %2860 = vmatpush1.msra.mxu0 0.0
        %2861 = vmatprep.mubr.f32.mxu0 %v2721
        %2862 = vmatmul.mubr.f32.gmra.mrb[0].mxu0 %v2654
        %v2863 = vpop.f32.mrb[0].mxu0
        %v2864 = vadd.f32 %v2794, %v2863
        %v2865 = vpop.f32.mrb[0].mxu0
        %2866 = vdwg.mxu0
        %v2867 = vld [vmem:[%s4] sm:$0xff]
        %s2868 = scalar_lea.vmem %s4, 8
        %v2869 = vld [vmem:[%s2868] sm:$0xff]
        %2871 = vrot.lane.b32.xlu0 %v2864, 127
        %v2872 = vpop.permute.xlu0 %2871
        %vm2874 = vcmask 64512
        %v2876 = vsel %vm2874, %v2869, 0
        %2878 = vmatprep.subr.mxu0 0.0
        %2879 = vmatpush1.msra.mxu0 %v2872
        %2880 = vmatprep.subr.mxu0 0.0
        %2881 = vmatpush1.msra.mxu0 0.0
        %2882 = vmatprep.subr.mxu0 0.0
        %2883 = vmatpush1.msra.mxu0 0.0
        %2884 = vmatprep.subr.mxu0 0.0
        %2885 = vmatpush1.msra.mxu0 0.0
        %2886 = vmatprep.subr.mxu0 0.0
        %2887 = vmatpush1.msra.mxu0 0.0
        %2888 = vmatprep.subr.mxu0 0.0
        %2889 = vmatpush1.msra.mxu0 0.0
        %2890 = vmatprep.subr.mxu0 0.0
        %2891 = vmatpush1.msra.mxu0 0.0
        %2892 = vmatprep.subr.mxu0 0.0
        %2893 = vmatpush1.msra.mxu0 0.0
        %2894 = vmatprep.subr.mxu0 0.0
        %2895 = vmatpush1.msra.mxu0 0.0
        %2896 = vmatprep.subr.mxu0 0.0
        %2897 = vmatpush1.msra.mxu0 0.0
        %2898 = vmatprep.subr.mxu0 0.0
        %2899 = vmatpush1.msra.mxu0 0.0
        %2900 = vmatprep.subr.mxu0 0.0
        %2901 = vmatpush1.msra.mxu0 0.0
        %2902 = vmatprep.subr.mxu0 0.0
        %2903 = vmatpush1.msra.mxu0 0.0
        %2904 = vmatprep.subr.mxu0 0.0
        %2905 = vmatpush1.msra.mxu0 0.0
        %2906 = vmatprep.subr.mxu0 0.0
        %2907 = vmatpush1.msra.mxu0 0.0
        %2908 = vmatprep.subr.mxu0 0.0
        %2909 = vmatpush1.msra.mxu0 0.0
        %2910 = vmatprep.subr.mxu0 0.0
        %2911 = vmatpush1.msra.mxu0 0.0
        %2912 = vmatprep.subr.mxu0 0.0
        %2913 = vmatpush1.msra.mxu0 0.0
        %2914 = vmatprep.subr.mxu0 0.0
        %2915 = vmatpush1.msra.mxu0 0.0
        %2916 = vmatprep.subr.mxu0 0.0
        %2917 = vmatpush1.msra.mxu0 0.0
        %2918 = vmatprep.subr.mxu0 0.0
        %2919 = vmatpush1.msra.mxu0 0.0
        %2920 = vmatprep.subr.mxu0 0.0
        %2921 = vmatpush1.msra.mxu0 0.0
        %2922 = vmatprep.subr.mxu0 0.0
        %2923 = vmatpush1.msra.mxu0 0.0
        %2924 = vmatprep.subr.mxu0 0.0
        %2925 = vmatpush1.msra.mxu0 0.0
        %2926 = vmatprep.subr.mxu0 0.0
        %2927 = vmatpush1.msra.mxu0 0.0
        %2928 = vmatprep.subr.mxu0 0.0
        %2929 = vmatpush1.msra.mxu0 0.0
        %2930 = vmatprep.subr.mxu0 0.0
        %2931 = vmatpush1.msra.mxu0 0.0
        %2932 = vmatprep.subr.mxu0 0.0
        %2933 = vmatpush1.msra.mxu0 0.0
        %2934 = vmatprep.subr.mxu0 0.0
        %2935 = vmatpush1.msra.mxu0 0.0
        %2936 = vmatprep.subr.mxu0 0.0
        %2937 = vmatpush1.msra.mxu0 0.0
        %2938 = vmatprep.subr.mxu0 0.0
        %2939 = vmatpush1.msra.mxu0 0.0
        %2940 = vmatprep.subr.mxu0 0.0
        %2941 = vmatpush1.msra.mxu0 0.0
        %2942 = vmatprep.mubr.f32.mxu0 0.0
        %2943 = vmatmul.mubr.f32.gmra.mrb[0].mxu0 %v2876
        %v2944 = vpop.f32.mrb[0].mxu0
        %v2945 = vadd.f32 0.0, %v2944
        %v2946 = vpop.f32.mrb[0].mxu0
        %2947 = vdwg.mxu0
        %v2949 = vsel %vm2874, %v2867, 0
        %2951 = vmatprep.subr.mxu0 0.0
        %2952 = vmatpush1.msra.mxu0 %v2864
        %2953 = vmatprep.subr.mxu0 0.0
        %2954 = vmatpush1.msra.mxu0 0.0
        %2955 = vmatprep.subr.mxu0 0.0
        %2956 = vmatpush1.msra.mxu0 0.0
        %2957 = vmatprep.subr.mxu0 0.0
        %2958 = vmatpush1.msra.mxu0 0.0
        %2959 = vmatprep.subr.mxu0 0.0
        %2960 = vmatpush1.msra.mxu0 0.0
        %2961 = vmatprep.subr.mxu0 0.0
        %2962 = vmatpush1.msra.mxu0 0.0
        %2963 = vmatprep.subr.mxu0 0.0
        %2964 = vmatpush1.msra.mxu0 0.0
        %2965 = vmatprep.subr.mxu0 0.0
        %2966 = vmatpush1.msra.mxu0 0.0
        %2967 = vmatprep.subr.mxu0 0.0
        %2968 = vmatpush1.msra.mxu0 0.0
        %2969 = vmatprep.subr.mxu0 0.0
        %2970 = vmatpush1.msra.mxu0 0.0
        %2971 = vmatprep.subr.mxu0 0.0
        %2972 = vmatpush1.msra.mxu0 0.0
        %2973 = vmatprep.subr.mxu0 0.0
        %2974 = vmatpush1.msra.mxu0 0.0
        %2975 = vmatprep.subr.mxu0 0.0
        %2976 = vmatpush1.msra.mxu0 0.0
        %2977 = vmatprep.subr.mxu0 0.0
        %2978 = vmatpush1.msra.mxu0 0.0
        %2979 = vmatprep.subr.mxu0 0.0
        %2980 = vmatpush1.msra.mxu0 0.0
        %2981 = vmatprep.subr.mxu0 0.0
        %2982 = vmatpush1.msra.mxu0 0.0
        %2983 = vmatprep.subr.mxu0 0.0
        %2984 = vmatpush1.msra.mxu0 0.0
        %2985 = vmatprep.subr.mxu0 0.0
        %2986 = vmatpush1.msra.mxu0 0.0
        %2987 = vmatprep.subr.mxu0 0.0
        %2988 = vmatpush1.msra.mxu0 0.0
        %2989 = vmatprep.subr.mxu0 0.0
        %2990 = vmatpush1.msra.mxu0 0.0
        %2991 = vmatprep.subr.mxu0 0.0
        %2992 = vmatpush1.msra.mxu0 0.0
        %2993 = vmatprep.subr.mxu0 0.0
        %2994 = vmatpush1.msra.mxu0 0.0
        %2995 = vmatprep.subr.mxu0 0.0
        %2996 = vmatpush1.msra.mxu0 0.0
        %2997 = vmatprep.subr.mxu0 0.0
        %2998 = vmatpush1.msra.mxu0 0.0
        %2999 = vmatprep.subr.mxu0 0.0
        %3000 = vmatpush1.msra.mxu0 0.0
        %3001 = vmatprep.subr.mxu0 0.0
        %3002 = vmatpush1.msra.mxu0 0.0
        %3003 = vmatprep.subr.mxu0 0.0
        %3004 = vmatpush1.msra.mxu0 0.0
        %3005 = vmatprep.subr.mxu0 0.0
        %3006 = vmatpush1.msra.mxu0 0.0
        %3007 = vmatprep.subr.mxu0 0.0
        %3008 = vmatpush1.msra.mxu0 0.0
        %3009 = vmatprep.subr.mxu0 0.0
        %3010 = vmatpush1.msra.mxu0 0.0
        %3011 = vmatprep.subr.mxu0 0.0
        %3012 = vmatpush1.msra.mxu0 0.0
        %3013 = vmatprep.subr.mxu0 0.0
        %3014 = vmatpush1.msra.mxu0 0.0
        %3015 = vmatprep.mubr.f32.mxu0 0.0
        %3016 = vmatmul.mubr.f32.gmra.mrb[0].mxu0 %v2949
        %v3017 = vpop.f32.mrb[0].mxu0
        %v3018 = vadd.f32 %v2945, %v3017
        %v3019 = vpop.f32.mrb[0].mxu0
        %3020 = vdwg.mxu0
        %s3021 = scalar_lea.vmem %s4, 16
        %v3022 = vld [vmem:[%s3021] sm:$0xff]
        %3023 = vrot.lane.b32.xlu0 %v2864, 126
        %v3024 = vpop.permute.xlu0 %3023
        %v3027 = vsel %vm2874, %v3022, 0
        %3029 = vmatprep.subr.mxu0 0.0
        %3030 = vmatpush1.msra.mxu0 %v3024
        %3031 = vmatprep.subr.mxu0 0.0
        %3032 = vmatpush1.msra.mxu0 0.0
        %3033 = vmatprep.subr.mxu0 0.0
        %3034 = vmatpush1.msra.mxu0 0.0
        %3035 = vmatprep.subr.mxu0 0.0
        %3036 = vmatpush1.msra.mxu0 0.0
        %3037 = vmatprep.subr.mxu0 0.0
        %3038 = vmatpush1.msra.mxu0 0.0
        %3039 = vmatprep.subr.mxu0 0.0
        %3040 = vmatpush1.msra.mxu0 0.0
        %3041 = vmatprep.subr.mxu0 0.0
        %3042 = vmatpush1.msra.mxu0 0.0
        %3043 = vmatprep.subr.mxu0 0.0
        %3044 = vmatpush1.msra.mxu0 0.0
        %3045 = vmatprep.subr.mxu0 0.0
        %3046 = vmatpush1.msra.mxu0 0.0
        %3047 = vmatprep.subr.mxu0 0.0
        %3048 = vmatpush1.msra.mxu0 0.0
        %3049 = vmatprep.subr.mxu0 0.0
        %3050 = vmatpush1.msra.mxu0 0.0
        %3051 = vmatprep.subr.mxu0 0.0
        %3052 = vmatpush1.msra.mxu0 0.0
        %3053 = vmatprep.subr.mxu0 0.0
        %3054 = vmatpush1.msra.mxu0 0.0
        %3055 = vmatprep.subr.mxu0 0.0
        %3056 = vmatpush1.msra.mxu0 0.0
        %3057 = vmatprep.subr.mxu0 0.0
        %3058 = vmatpush1.msra.mxu0 0.0
        %3059 = vmatprep.subr.mxu0 0.0
        %3060 = vmatpush1.msra.mxu0 0.0
        %3061 = vmatprep.subr.mxu0 0.0
        %3062 = vmatpush1.msra.mxu0 0.0
        %3063 = vmatprep.subr.mxu0 0.0
        %3064 = vmatpush1.msra.mxu0 0.0
        %3065 = vmatprep.subr.mxu0 0.0
        %3066 = vmatpush1.msra.mxu0 0.0
        %3067 = vmatprep.subr.mxu0 0.0
        %3068 = vmatpush1.msra.mxu0 0.0
        %3069 = vmatprep.subr.mxu0 0.0
        %3070 = vmatpush1.msra.mxu0 0.0
        %3071 = vmatprep.subr.mxu0 0.0
        %3072 = vmatpush1.msra.mxu0 0.0
        %3073 = vmatprep.subr.mxu0 0.0
        %3074 = vmatpush1.msra.mxu0 0.0
        %3075 = vmatprep.subr.mxu0 0.0
        %3076 = vmatpush1.msra.mxu0 0.0
        %3077 = vmatprep.subr.mxu0 0.0
        %3078 = vmatpush1.msra.mxu0 0.0
        %3079 = vmatprep.subr.mxu0 0.0
        %3080 = vmatpush1.msra.mxu0 0.0
        %3081 = vmatprep.subr.mxu0 0.0
        %3082 = vmatpush1.msra.mxu0 0.0
        %3083 = vmatprep.subr.mxu0 0.0
        %3084 = vmatpush1.msra.mxu0 0.0
        %3085 = vmatprep.subr.mxu0 0.0
        %3086 = vmatpush1.msra.mxu0 0.0
        %3087 = vmatprep.subr.mxu0 0.0
        %3088 = vmatpush1.msra.mxu0 0.0
        %3089 = vmatprep.subr.mxu0 0.0
        %3090 = vmatpush1.msra.mxu0 0.0
        %3091 = vmatprep.subr.mxu0 0.0
        %3092 = vmatpush1.msra.mxu0 0.0
        %3093 = vmatprep.mubr.f32.mxu0 0.0
        %3094 = vmatmul.mubr.f32.gmra.mrb[0].mxu0 %v3027
        %v3095 = vpop.f32.mrb[0].mxu0
        %v3096 = vadd.f32 0.0, %v3095
        %v3097 = vpop.f32.mrb[0].mxu0
        %3098 = vdwg.mxu0
        %v3099 = vadd.f32 %v3018, %v3096
        %s3100 = scalar_lea.vmem %s4, 24
        %v3101 = vld [vmem:[%s3100] sm:$0xff]
        %3102 = vrot.lane.b32.xlu0 %v2864, 117
        %v3103 = vpop.permute.xlu0 %3102
        %v3106 = vsel %vm2874, %v3101, 0
        %3108 = vmatprep.subr.mxu0 0.0
        %3109 = vmatpush1.msra.mxu0 %v3103
        %3110 = vmatprep.subr.mxu0 0.0
        %3111 = vmatpush1.msra.mxu0 0.0
        %3112 = vmatprep.subr.mxu0 0.0
        %3113 = vmatpush1.msra.mxu0 0.0
        %3114 = vmatprep.subr.mxu0 0.0
        %3115 = vmatpush1.msra.mxu0 0.0
        %3116 = vmatprep.subr.mxu0 0.0
        %3117 = vmatpush1.msra.mxu0 0.0
        %3118 = vmatprep.subr.mxu0 0.0
        %3119 = vmatpush1.msra.mxu0 0.0
        %3120 = vmatprep.subr.mxu0 0.0
        %3121 = vmatpush1.msra.mxu0 0.0
        %3122 = vmatprep.subr.mxu0 0.0
        %3123 = vmatpush1.msra.mxu0 0.0
        %3124 = vmatprep.subr.mxu0 0.0
        %3125 = vmatpush1.msra.mxu0 0.0
        %3126 = vmatprep.subr.mxu0 0.0
        %3127 = vmatpush1.msra.mxu0 0.0
        %3128 = vmatprep.subr.mxu0 0.0
        %3129 = vmatpush1.msra.mxu0 0.0
        %3130 = vmatprep.subr.mxu0 0.0
        %3131 = vmatpush1.msra.mxu0 0.0
        %3132 = vmatprep.subr.mxu0 0.0
        %3133 = vmatpush1.msra.mxu0 0.0
        %3134 = vmatprep.subr.mxu0 0.0
        %3135 = vmatpush1.msra.mxu0 0.0
        %3136 = vmatprep.subr.mxu0 0.0
        %3137 = vmatpush1.msra.mxu0 0.0
        %3138 = vmatprep.subr.mxu0 0.0
        %3139 = vmatpush1.msra.mxu0 0.0
        %3140 = vmatprep.subr.mxu0 0.0
        %3141 = vmatpush1.msra.mxu0 0.0
        %3142 = vmatprep.subr.mxu0 0.0
        %3143 = vmatpush1.msra.mxu0 0.0
        %3144 = vmatprep.subr.mxu0 0.0
        %3145 = vmatpush1.msra.mxu0 0.0
        %3146 = vmatprep.subr.mxu0 0.0
        %3147 = vmatpush1.msra.mxu0 0.0
        %3148 = vmatprep.subr.mxu0 0.0
        %3149 = vmatpush1.msra.mxu0 0.0
        %3150 = vmatprep.subr.mxu0 0.0
        %3151 = vmatpush1.msra.mxu0 0.0
        %3152 = vmatprep.subr.mxu0 0.0
        %3153 = vmatpush1.msra.mxu0 0.0
        %3154 = vmatprep.subr.mxu0 0.0
        %3155 = vmatpush1.msra.mxu0 0.0
        %3156 = vmatprep.subr.mxu0 0.0
        %3157 = vmatpush1.msra.mxu0 0.0
        %3158 = vmatprep.subr.mxu0 0.0
        %3159 = vmatpush1.msra.mxu0 0.0
        %3160 = vmatprep.subr.mxu0 0.0
        %3161 = vmatpush1.msra.mxu0 0.0
        %3162 = vmatprep.subr.mxu0 0.0
        %3163 = vmatpush1.msra.mxu0 0.0
        %3164 = vmatprep.subr.mxu0 0.0
        %3165 = vmatpush1.msra.mxu0 0.0
        %3166 = vmatprep.subr.mxu0 0.0
        %3167 = vmatpush1.msra.mxu0 0.0
        %3168 = vmatprep.subr.mxu0 0.0
        %3169 = vmatpush1.msra.mxu0 0.0
        %3170 = vmatprep.subr.mxu0 0.0
        %3171 = vmatpush1.msra.mxu0 0.0
        %3172 = vmatprep.mubr.f32.mxu0 0.0
        %3173 = vmatmul.mubr.f32.gmra.mrb[0].mxu0 %v3106
        %v3174 = vpop.f32.mrb[0].mxu0
        %v3175 = vadd.f32 0.0, %v3174
        %v3176 = vpop.f32.mrb[0].mxu0
        %3177 = vdwg.mxu0
        %v3178 = vadd.f32 %v3099, %v3175
        %s3179 = scalar_lea.vmem %s4, 32
        %v3180 = vld [vmem:[%s3179] sm:$0xff]
        %3181 = vrot.lane.b32.xlu0 %v2864, 116
        %v3182 = vpop.permute.xlu0 %3181
        %v3185 = vsel %vm2874, %v3180, 0
        %3187 = vmatprep.subr.mxu0 0.0
        %3188 = vmatpush1.msra.mxu0 %v3182
        %3189 = vmatprep.subr.mxu0 0.0
        %3190 = vmatpush1.msra.mxu0 0.0
        %3191 = vmatprep.subr.mxu0 0.0
        %3192 = vmatpush1.msra.mxu0 0.0
        %3193 = vmatprep.subr.mxu0 0.0
        %3194 = vmatpush1.msra.mxu0 0.0
        %3195 = vmatprep.subr.mxu0 0.0
        %3196 = vmatpush1.msra.mxu0 0.0
        %3197 = vmatprep.subr.mxu0 0.0
        %3198 = vmatpush1.msra.mxu0 0.0
        %3199 = vmatprep.subr.mxu0 0.0
        %3200 = vmatpush1.msra.mxu0 0.0
        %3201 = vmatprep.subr.mxu0 0.0
        %3202 = vmatpush1.msra.mxu0 0.0
        %3203 = vmatprep.subr.mxu0 0.0
        %3204 = vmatpush1.msra.mxu0 0.0
        %3205 = vmatprep.subr.mxu0 0.0
        %3206 = vmatpush1.msra.mxu0 0.0
        %3207 = vmatprep.subr.mxu0 0.0
        %3208 = vmatpush1.msra.mxu0 0.0
        %3209 = vmatprep.subr.mxu0 0.0
        %3210 = vmatpush1.msra.mxu0 0.0
        %3211 = vmatprep.subr.mxu0 0.0
        %3212 = vmatpush1.msra.mxu0 0.0
        %3213 = vmatprep.subr.mxu0 0.0
        %3214 = vmatpush1.msra.mxu0 0.0
        %3215 = vmatprep.subr.mxu0 0.0
        %3216 = vmatpush1.msra.mxu0 0.0
        %3217 = vmatprep.subr.mxu0 0.0
        %3218 = vmatpush1.msra.mxu0 0.0
        %3219 = vmatprep.subr.mxu0 0.0
        %3220 = vmatpush1.msra.mxu0 0.0
        %3221 = vmatprep.subr.mxu0 0.0
        %3222 = vmatpush1.msra.mxu0 0.0
        %3223 = vmatprep.subr.mxu0 0.0
        %3224 = vmatpush1.msra.mxu0 0.0
        %3225 = vmatprep.subr.mxu0 0.0
        %3226 = vmatpush1.msra.mxu0 0.0
        %3227 = vmatprep.subr.mxu0 0.0
        %3228 = vmatpush1.msra.mxu0 0.0
        %3229 = vmatprep.subr.mxu0 0.0
        %3230 = vmatpush1.msra.mxu0 0.0
        %3231 = vmatprep.subr.mxu0 0.0
        %3232 = vmatpush1.msra.mxu0 0.0
        %3233 = vmatprep.subr.mxu0 0.0
        %3234 = vmatpush1.msra.mxu0 0.0
        %3235 = vmatprep.subr.mxu0 0.0
        %3236 = vmatpush1.msra.mxu0 0.0
        %3237 = vmatprep.subr.mxu0 0.0
        %3238 = vmatpush1.msra.mxu0 0.0
        %3239 = vmatprep.subr.mxu0 0.0
        %3240 = vmatpush1.msra.mxu0 0.0
        %3241 = vmatprep.subr.mxu0 0.0
        %3242 = vmatpush1.msra.mxu0 0.0
        %3243 = vmatprep.subr.mxu0 0.0
        %3244 = vmatpush1.msra.mxu0 0.0
        %3245 = vmatprep.subr.mxu0 0.0
        %3246 = vmatpush1.msra.mxu0 0.0
        %3247 = vmatprep.subr.mxu0 0.0
        %3248 = vmatpush1.msra.mxu0 0.0
        %3249 = vmatprep.subr.mxu0 0.0
        %3250 = vmatpush1.msra.mxu0 0.0
        %3251 = vmatprep.mubr.f32.mxu0 0.0
        %3252 = vmatmul.mubr.f32.gmra.mrb[0].mxu0 %v3185
        %v3253 = vpop.f32.mrb[0].mxu0
        %v3254 = vadd.f32 0.0, %v3253
        %v3255 = vpop.f32.mrb[0].mxu0
        %3256 = vdwg.mxu0
        %v3257 = vadd.f32 %v3178, %v3254
        %s3258 = scalar_lea.vmem %s4, 40
        %v3259 = vld [vmem:[%s3258] sm:$0xff]
        %3260 = vrot.lane.b32.xlu0 %v2864, 115
        %v3261 = vpop.permute.xlu0 %3260
        %v3264 = vsel %vm2874, %v3259, 0
        %3266 = vmatprep.subr.mxu0 0.0
        %3267 = vmatpush1.msra.mxu0 %v3261
        %3268 = vmatprep.subr.mxu0 0.0
        %3269 = vmatpush1.msra.mxu0 0.0
        %3270 = vmatprep.subr.mxu0 0.0
        %3271 = vmatpush1.msra.mxu0 0.0
        %3272 = vmatprep.subr.mxu0 0.0
        %3273 = vmatpush1.msra.mxu0 0.0
        %3274 = vmatprep.subr.mxu0 0.0
        %3275 = vmatpush1.msra.mxu0 0.0
        %3276 = vmatprep.subr.mxu0 0.0
        %3277 = vmatpush1.msra.mxu0 0.0
        %3278 = vmatprep.subr.mxu0 0.0
        %3279 = vmatpush1.msra.mxu0 0.0
        %3280 = vmatprep.subr.mxu0 0.0
        %3281 = vmatpush1.msra.mxu0 0.0
        %3282 = vmatprep.subr.mxu0 0.0
        %3283 = vmatpush1.msra.mxu0 0.0
        %3284 = vmatprep.subr.mxu0 0.0
        %3285 = vmatpush1.msra.mxu0 0.0
        %3286 = vmatprep.subr.mxu0 0.0
        %3287 = vmatpush1.msra.mxu0 0.0
        %3288 = vmatprep.subr.mxu0 0.0
        %3289 = vmatpush1.msra.mxu0 0.0
        %3290 = vmatprep.subr.mxu0 0.0
        %3291 = vmatpush1.msra.mxu0 0.0
        %3292 = vmatprep.subr.mxu0 0.0
        %3293 = vmatpush1.msra.mxu0 0.0
        %3294 = vmatprep.subr.mxu0 0.0
        %3295 = vmatpush1.msra.mxu0 0.0
        %3296 = vmatprep.subr.mxu0 0.0
        %3297 = vmatpush1.msra.mxu0 0.0
        %3298 = vmatprep.subr.mxu0 0.0
        %3299 = vmatpush1.msra.mxu0 0.0
        %3300 = vmatprep.subr.mxu0 0.0
        %3301 = vmatpush1.msra.mxu0 0.0
        %3302 = vmatprep.subr.mxu0 0.0
        %3303 = vmatpush1.msra.mxu0 0.0
        %3304 = vmatprep.subr.mxu0 0.0
        %3305 = vmatpush1.msra.mxu0 0.0
        %3306 = vmatprep.subr.mxu0 0.0
        %3307 = vmatpush1.msra.mxu0 0.0
        %3308 = vmatprep.subr.mxu0 0.0
        %3309 = vmatpush1.msra.mxu0 0.0
        %3310 = vmatprep.subr.mxu0 0.0
        %3311 = vmatpush1.msra.mxu0 0.0
        %3312 = vmatprep.subr.mxu0 0.0
        %3313 = vmatpush1.msra.mxu0 0.0
        %3314 = vmatprep.subr.mxu0 0.0
        %3315 = vmatpush1.msra.mxu0 0.0
        %3316 = vmatprep.subr.mxu0 0.0
        %3317 = vmatpush1.msra.mxu0 0.0
        %3318 = vmatprep.subr.mxu0 0.0
        %3319 = vmatpush1.msra.mxu0 0.0
        %3320 = vmatprep.subr.mxu0 0.0
        %3321 = vmatpush1.msra.mxu0 0.0
        %3322 = vmatprep.subr.mxu0 0.0
        %3323 = vmatpush1.msra.mxu0 0.0
        %3324 = vmatprep.subr.mxu0 0.0
        %3325 = vmatpush1.msra.mxu0 0.0
        %3326 = vmatprep.subr.mxu0 0.0
        %3327 = vmatpush1.msra.mxu0 0.0
        %3328 = vmatprep.subr.mxu0 0.0
        %3329 = vmatpush1.msra.mxu0 0.0
        %3330 = vmatprep.mubr.f32.mxu0 0.0
        %3331 = vmatmul.mubr.f32.gmra.mrb[0].mxu0 %v3264
        %v3332 = vpop.f32.mrb[0].mxu0
        %v3333 = vadd.f32 0.0, %v3332
        %v3334 = vpop.f32.mrb[0].mxu0
        %3335 = vdwg.mxu0
        %v3336 = vadd.f32 %v3257, %v3333
        %s3337 = scalar_lea.vmem %s4, 48
        %v3338 = vld [vmem:[%s3337] sm:$0xff]
        %3339 = vrot.lane.b32.xlu0 %v2864, 106
        %v3340 = vpop.permute.xlu0 %3339
        %v3343 = vsel %vm2874, %v3338, 0
        %3345 = vmatprep.subr.mxu0 0.0
        %3346 = vmatpush1.msra.mxu0 %v3340
        %3347 = vmatprep.subr.mxu0 0.0
        %3348 = vmatpush1.msra.mxu0 0.0
        %3349 = vmatprep.subr.mxu0 0.0
        %3350 = vmatpush1.msra.mxu0 0.0
        %3351 = vmatprep.subr.mxu0 0.0
        %3352 = vmatpush1.msra.mxu0 0.0
        %3353 = vmatprep.subr.mxu0 0.0
        %3354 = vmatpush1.msra.mxu0 0.0
        %3355 = vmatprep.subr.mxu0 0.0
        %3356 = vmatpush1.msra.mxu0 0.0
        %3357 = vmatprep.subr.mxu0 0.0
        %3358 = vmatpush1.msra.mxu0 0.0
        %3359 = vmatprep.subr.mxu0 0.0
        %3360 = vmatpush1.msra.mxu0 0.0
        %3361 = vmatprep.subr.mxu0 0.0
        %3362 = vmatpush1.msra.mxu0 0.0
        %3363 = vmatprep.subr.mxu0 0.0
        %3364 = vmatpush1.msra.mxu0 0.0
        %3365 = vmatprep.subr.mxu0 0.0
        %3366 = vmatpush1.msra.mxu0 0.0
        %3367 = vmatprep.subr.mxu0 0.0
        %3368 = vmatpush1.msra.mxu0 0.0
        %3369 = vmatprep.subr.mxu0 0.0
        %3370 = vmatpush1.msra.mxu0 0.0
        %3371 = vmatprep.subr.mxu0 0.0
        %3372 = vmatpush1.msra.mxu0 0.0
        %3373 = vmatprep.subr.mxu0 0.0
        %3374 = vmatpush1.msra.mxu0 0.0
        %3375 = vmatprep.subr.mxu0 0.0
        %3376 = vmatpush1.msra.mxu0 0.0
        %3377 = vmatprep.subr.mxu0 0.0
        %3378 = vmatpush1.msra.mxu0 0.0
        %3379 = vmatprep.subr.mxu0 0.0
        %3380 = vmatpush1.msra.mxu0 0.0
        %3381 = vmatprep.subr.mxu0 0.0
        %3382 = vmatpush1.msra.mxu0 0.0
        %3383 = vmatprep.subr.mxu0 0.0
        %3384 = vmatpush1.msra.mxu0 0.0
        %3385 = vmatprep.subr.mxu0 0.0
        %3386 = vmatpush1.msra.mxu0 0.0
        %3387 = vmatprep.subr.mxu0 0.0
        %3388 = vmatpush1.msra.mxu0 0.0
        %3389 = vmatprep.subr.mxu0 0.0
        %3390 = vmatpush1.msra.mxu0 0.0
        %3391 = vmatprep.subr.mxu0 0.0
        %3392 = vmatpush1.msra.mxu0 0.0
        %3393 = vmatprep.subr.mxu0 0.0
        %3394 = vmatpush1.msra.mxu0 0.0
        %3395 = vmatprep.subr.mxu0 0.0
        %3396 = vmatpush1.msra.mxu0 0.0
        %3397 = vmatprep.subr.mxu0 0.0
        %3398 = vmatpush1.msra.mxu0 0.0
        %3399 = vmatprep.subr.mxu0 0.0
        %3400 = vmatpush1.msra.mxu0 0.0
        %3401 = vmatprep.subr.mxu0 0.0
        %3402 = vmatpush1.msra.mxu0 0.0
        %3403 = vmatprep.subr.mxu0 0.0
        %3404 = vmatpush1.msra.mxu0 0.0
        %3405 = vmatprep.subr.mxu0 0.0
        %3406 = vmatpush1.msra.mxu0 0.0
        %3407 = vmatprep.subr.mxu0 0.0
        %3408 = vmatpush1.msra.mxu0 0.0
        %3409 = vmatprep.mubr.f32.mxu0 0.0
        %3410 = vmatmul.mubr.f32.gmra.mrb[0].mxu0 %v3343
        %v3411 = vpop.f32.mrb[0].mxu0
        %v3412 = vadd.f32 0.0, %v3411
        %v3413 = vpop.f32.mrb[0].mxu0
        %3414 = vdwg.mxu0
        %v3415 = vadd.f32 %v3336, %v3412
        %s3416 = scalar_lea.vmem %s4, 56
        %v3417 = vld [vmem:[%s3416] sm:$0xff]
        %3418 = vrot.lane.b32.xlu0 %v2864, 105
        %v3419 = vpop.permute.xlu0 %3418
        %v3422 = vsel %vm2874, %v3417, 0
        %3424 = vmatprep.subr.mxu0 0.0
        %3425 = vmatpush1.msra.mxu0 %v3419
        %3426 = vmatprep.subr.mxu0 0.0
        %3427 = vmatpush1.msra.mxu0 0.0
        %3428 = vmatprep.subr.mxu0 0.0
        %3429 = vmatpush1.msra.mxu0 0.0
        %3430 = vmatprep.subr.mxu0 0.0
        %3431 = vmatpush1.msra.mxu0 0.0
        %3432 = vmatprep.subr.mxu0 0.0
        %3433 = vmatpush1.msra.mxu0 0.0
        %3434 = vmatprep.subr.mxu0 0.0
        %3435 = vmatpush1.msra.mxu0 0.0
        %3436 = vmatprep.subr.mxu0 0.0
        %3437 = vmatpush1.msra.mxu0 0.0
        %3438 = vmatprep.subr.mxu0 0.0
        %3439 = vmatpush1.msra.mxu0 0.0
        %3440 = vmatprep.subr.mxu0 0.0
        %3441 = vmatpush1.msra.mxu0 0.0
        %3442 = vmatprep.subr.mxu0 0.0
        %3443 = vmatpush1.msra.mxu0 0.0
        %3444 = vmatprep.subr.mxu0 0.0
        %3445 = vmatpush1.msra.mxu0 0.0
        %3446 = vmatprep.subr.mxu0 0.0
        %3447 = vmatpush1.msra.mxu0 0.0
        %3448 = vmatprep.subr.mxu0 0.0
        %3449 = vmatpush1.msra.mxu0 0.0
        %3450 = vmatprep.subr.mxu0 0.0
        %3451 = vmatpush1.msra.mxu0 0.0
        %3452 = vmatprep.subr.mxu0 0.0
        %3453 = vmatpush1.msra.mxu0 0.0
        %3454 = vmatprep.subr.mxu0 0.0
        %3455 = vmatpush1.msra.mxu0 0.0
        %3456 = vmatprep.subr.mxu0 0.0
        %3457 = vmatpush1.msra.mxu0 0.0
        %3458 = vmatprep.subr.mxu0 0.0
        %3459 = vmatpush1.msra.mxu0 0.0
        %3460 = vmatprep.subr.mxu0 0.0
        %3461 = vmatpush1.msra.mxu0 0.0
        %3462 = vmatprep.subr.mxu0 0.0
        %3463 = vmatpush1.msra.mxu0 0.0
        %3464 = vmatprep.subr.mxu0 0.0
        %3465 = vmatpush1.msra.mxu0 0.0
        %3466 = vmatprep.subr.mxu0 0.0
        %3467 = vmatpush1.msra.mxu0 0.0
        %3468 = vmatprep.subr.mxu0 0.0
        %3469 = vmatpush1.msra.mxu0 0.0
        %3470 = vmatprep.subr.mxu0 0.0
        %3471 = vmatpush1.msra.mxu0 0.0
        %3472 = vmatprep.subr.mxu0 0.0
        %3473 = vmatpush1.msra.mxu0 0.0
        %3474 = vmatprep.subr.mxu0 0.0
        %3475 = vmatpush1.msra.mxu0 0.0
        %3476 = vmatprep.subr.mxu0 0.0
        %3477 = vmatpush1.msra.mxu0 0.0
        %3478 = vmatprep.subr.mxu0 0.0
        %3479 = vmatpush1.msra.mxu0 0.0
        %3480 = vmatprep.subr.mxu0 0.0
        %3481 = vmatpush1.msra.mxu0 0.0
        %3482 = vmatprep.subr.mxu0 0.0
        %3483 = vmatpush1.msra.mxu0 0.0
        %3484 = vmatprep.subr.mxu0 0.0
        %3485 = vmatpush1.msra.mxu0 0.0
        %3486 = vmatprep.subr.mxu0 0.0
        %3487 = vmatpush1.msra.mxu0 0.0
        %3488 = vmatprep.mubr.f32.mxu0 0.0
        %3489 = vmatmul.mubr.f32.gmra.mrb[0].mxu0 %v3422
        %v3490 = vpop.f32.mrb[0].mxu0
        %v3491 = vadd.f32 0.0, %v3490
        %v3492 = vpop.f32.mrb[0].mxu0
        %3493 = vdwg.mxu0
        %v3494 = vadd.f32 %v3415, %v3491
        %s3495 = scalar_lea.vmem %s4, 64
        %v3496 = vld [vmem:[%s3495] sm:$0xff]
        %3497 = vrot.lane.b32.xlu0 %v2864, 104
        %v3498 = vpop.permute.xlu0 %3497
        %v3501 = vsel %vm2874, %v3496, 0
        %3503 = vmatprep.subr.mxu0 0.0
        %3504 = vmatpush1.msra.mxu0 %v3498
        %3505 = vmatprep.subr.mxu0 0.0
        %3506 = vmatpush1.msra.mxu0 0.0
        %3507 = vmatprep.subr.mxu0 0.0
        %3508 = vmatpush1.msra.mxu0 0.0
        %3509 = vmatprep.subr.mxu0 0.0
        %3510 = vmatpush1.msra.mxu0 0.0
        %3511 = vmatprep.subr.mxu0 0.0
        %3512 = vmatpush1.msra.mxu0 0.0
        %3513 = vmatprep.subr.mxu0 0.0
        %3514 = vmatpush1.msra.mxu0 0.0
        %3515 = vmatprep.subr.mxu0 0.0
        %3516 = vmatpush1.msra.mxu0 0.0
        %3517 = vmatprep.subr.mxu0 0.0
        %3518 = vmatpush1.msra.mxu0 0.0
        %3519 = vmatprep.subr.mxu0 0.0
        %3520 = vmatpush1.msra.mxu0 0.0
        %3521 = vmatprep.subr.mxu0 0.0
        %3522 = vmatpush1.msra.mxu0 0.0
        %3523 = vmatprep.subr.mxu0 0.0
        %3524 = vmatpush1.msra.mxu0 0.0
        %3525 = vmatprep.subr.mxu0 0.0
        %3526 = vmatpush1.msra.mxu0 0.0
        %3527 = vmatprep.subr.mxu0 0.0
        %3528 = vmatpush1.msra.mxu0 0.0
        %3529 = vmatprep.subr.mxu0 0.0
        %3530 = vmatpush1.msra.mxu0 0.0
        %3531 = vmatprep.subr.mxu0 0.0
        %3532 = vmatpush1.msra.mxu0 0.0
        %3533 = vmatprep.subr.mxu0 0.0
        %3534 = vmatpush1.msra.mxu0 0.0
        %3535 = vmatprep.subr.mxu0 0.0
        %3536 = vmatpush1.msra.mxu0 0.0
        %3537 = vmatprep.subr.mxu0 0.0
        %3538 = vmatpush1.msra.mxu0 0.0
        %3539 = vmatprep.subr.mxu0 0.0
        %3540 = vmatpush1.msra.mxu0 0.0
        %3541 = vmatprep.subr.mxu0 0.0
        %3542 = vmatpush1.msra.mxu0 0.0
        %3543 = vmatprep.subr.mxu0 0.0
        %3544 = vmatpush1.msra.mxu0 0.0
        %3545 = vmatprep.subr.mxu0 0.0
        %3546 = vmatpush1.msra.mxu0 0.0
        %3547 = vmatprep.subr.mxu0 0.0
        %3548 = vmatpush1.msra.mxu0 0.0
        %3549 = vmatprep.subr.mxu0 0.0
        %3550 = vmatpush1.msra.mxu0 0.0
        %3551 = vmatprep.subr.mxu0 0.0
        %3552 = vmatpush1.msra.mxu0 0.0
        %3553 = vmatprep.subr.mxu0 0.0
        %3554 = vmatpush1.msra.mxu0 0.0
        %3555 = vmatprep.subr.mxu0 0.0
        %3556 = vmatpush1.msra.mxu0 0.0
        %3557 = vmatprep.subr.mxu0 0.0
        %3558 = vmatpush1.msra.mxu0 0.0
        %3559 = vmatprep.subr.mxu0 0.0
        %3560 = vmatpush1.msra.mxu0 0.0
        %3561 = vmatprep.subr.mxu0 0.0
        %3562 = vmatpush1.msra.mxu0 0.0
        %3563 = vmatprep.subr.mxu0 0.0
        %3564 = vmatpush1.msra.mxu0 0.0
        %3565 = vmatprep.subr.mxu0 0.0
        %3566 = vmatpush1.msra.mxu0 0.0
        %3567 = vmatprep.mubr.f32.mxu0 0.0
        %3568 = vmatmul.mubr.f32.gmra.mrb[0].mxu0 %v3501
        %v3569 = vpop.f32.mrb[0].mxu0
        %v3570 = vadd.f32 0.0, %v3569
        %v3571 = vpop.f32.mrb[0].mxu0
        %3572 = vdwg.mxu0
        %v3573 = vadd.f32 %v3494, %v3570
        %v3574 = vld [vmem:[%s5] sm:$0xff]
        %3576 = vset.pattern.permute.xlu0 0
        %3577 = vperm.xlu0 %3576, %v3574
        %v3578 = vpop.permute.xlu0 %3577
        %v3580 = vadd.f32 %v3573, %v3578
        %3582 = vrot.lane.b32.xlu0 %v3580, 127
        %v3583 = vpop.permute.xlu0 %3582
        %v3585 = vmax.f32 %v3580, %v3583
        %3587 = vrot.lane.b32.xlu0 %v3585, 117
        %v3588 = vpop.permute.xlu0 %3587
        %v3590 = vmax.f32 %v3585, %v3588
        %v3591 = vmax.f32 %v3590, 0.0
        %v3592 = vld [vmem:[%s6] sm:$0xff]
        %v3593 = vld [vmem:[%s6 + $0x8] sm:$0xff]
        %v3594 = vld [vmem:[%s6 + $0x10] sm:$0xff]
        %v3595 = vld [vmem:[%s6 + $0x18] sm:$0xff]
        %v3596 = vld [vmem:[%s6 + $0x20] sm:$0xff]
        %v3597 = vld [vmem:[%s6 + $0x28] sm:$0xff]
        %v3598 = vld [vmem:[%s6 + $0x30] sm:$0xff]
        %v3599 = vld [vmem:[%s6 + $0x38] sm:$0xff]
        %v3600 = vld [vmem:[%s6 + $0x40] sm:$0xff]
        %v3601 = vld [vmem:[%s6 + $0x48] sm:$0xff]
        %v3602 = vld [vmem:[%s6 + $0x50] sm:$0x1f]
        %vm3603 = vcmask 695296
        %v3605 = vsel %vm3603, %v3591, 0
        %v3608 = vsel %vm2723, %v3602, 0
        %3610 = vmatprep.subr.mxu0 0.0
        %3611 = vmatpush1.msra.mxu0 %v3592
        %3612 = vmatprep.subr.mxu0 0.0
        %3613 = vmatpush1.msra.mxu0 %v3593
        %3614 = vmatprep.subr.mxu0 0.0
        %3615 = vmatpush1.msra.mxu0 %v3594
        %3616 = vmatprep.subr.mxu0 0.0
        %3617 = vmatpush1.msra.mxu0 %v3595
        %3618 = vmatprep.subr.mxu0 0.0
        %3619 = vmatpush1.msra.mxu0 %v3596
        %3620 = vmatprep.subr.mxu0 0.0
        %3621 = vmatpush1.msra.mxu0 %v3597
        %3622 = vmatprep.subr.mxu0 0.0
        %3623 = vmatpush1.msra.mxu0 %v3598
        %3624 = vmatprep.subr.mxu0 0.0
        %3625 = vmatpush1.msra.mxu0 %v3599
        %3626 = vmatprep.subr.mxu0 0.0
        %3627 = vmatpush1.msra.mxu0 %v3600
        %3628 = vmatprep.subr.mxu0 0.0
        %3629 = vmatpush1.msra.mxu0 %v3601
        %3630 = vmatprep.subr.mxu0 0.0
        %3631 = vmatpush1.msra.mxu0 %v3608
        %3632 = vmatprep.subr.mxu0 0.0
        %3633 = vmatpush1.msra.mxu0 0.0
        %3634 = vmatprep.subr.mxu0 0.0
        %3635 = vmatpush1.msra.mxu0 0.0
        %3636 = vmatprep.subr.mxu0 0.0
        %3637 = vmatpush1.msra.mxu0 0.0
        %3638 = vmatprep.subr.mxu0 0.0
        %3639 = vmatpush1.msra.mxu0 0.0
        %3640 = vmatprep.subr.mxu0 0.0
        %3641 = vmatpush1.msra.mxu0 0.0
        %3642 = vmatprep.subr.mxu0 0.0
        %3643 = vmatpush1.msra.mxu0 0.0
        %3644 = vmatprep.subr.mxu0 0.0
        %3645 = vmatpush1.msra.mxu0 0.0
        %3646 = vmatprep.subr.mxu0 0.0
        %3647 = vmatpush1.msra.mxu0 0.0
        %3648 = vmatprep.subr.mxu0 0.0
        %3649 = vmatpush1.msra.mxu0 0.0
        %3650 = vmatprep.subr.mxu0 0.0
        %3651 = vmatpush1.msra.mxu0 0.0
        %3652 = vmatprep.subr.mxu0 0.0
        %3653 = vmatpush1.msra.mxu0 0.0
        %3654 = vmatprep.subr.mxu0 0.0
        %3655 = vmatpush1.msra.mxu0 0.0
        %3656 = vmatprep.subr.mxu0 0.0
        %3657 = vmatpush1.msra.mxu0 0.0
        %3658 = vmatprep.subr.mxu0 0.0
        %3659 = vmatpush1.msra.mxu0 0.0
        %3660 = vmatprep.subr.mxu0 0.0
        %3661 = vmatpush1.msra.mxu0 0.0
        %3662 = vmatprep.subr.mxu0 0.0
        %3663 = vmatpush1.msra.mxu0 0.0
        %3664 = vmatprep.subr.mxu0 0.0
        %3665 = vmatpush1.msra.mxu0 0.0
        %3666 = vmatprep.subr.mxu0 0.0
        %3667 = vmatpush1.msra.mxu0 0.0
        %3668 = vmatprep.subr.mxu0 0.0
        %3669 = vmatpush1.msra.mxu0 0.0
        %3670 = vmatprep.subr.mxu0 0.0
        %3671 = vmatpush1.msra.mxu0 0.0
        %3672 = vmatprep.subr.mxu0 0.0
        %3673 = vmatpush1.msra.mxu0 0.0
        %3674 = vmatprep.mubr.f32.mxu0 0.0
        %3675 = vmatmul.mubr.f32.gmra.mrb[0].mxu0 %v3605
        %v3676 = vpop.f32.mrb[0].mxu0
        %v3677 = vadd.f32 0.0, %v3676
        %v3678 = vpop.f32.mrb[0].mxu0
        %3679 = vdwg.mxu0
        %v3680 = vld [vmem:[%s7] sm:$0xff]
        %s3681 = scalar_lea.vmem %s7, 8
        %v3682 = vld [vmem:[%s3681] sm:$0xff]
        %3684 = vrot.lane.b32.xlu0 %v3677, 127
        %v3685 = vpop.permute.xlu0 %3684
        %v3688 = vsel %vm2874, %v3682, 0
        %3690 = vmatprep.subr.mxu0 0.0
        %3691 = vmatpush1.msra.mxu0 %v3685
        %3692 = vmatprep.subr.mxu0 0.0
        %3693 = vmatpush1.msra.mxu0 0.0
        %3694 = vmatprep.subr.mxu0 0.0
        %3695 = vmatpush1.msra.mxu0 0.0
        %3696 = vmatprep.subr.mxu0 0.0
        %3697 = vmatpush1.msra.mxu0 0.0
        %3698 = vmatprep.subr.mxu0 0.0
        %3699 = vmatpush1.msra.mxu0 0.0
        %3700 = vmatprep.subr.mxu0 0.0
        %3701 = vmatpush1.msra.mxu0 0.0
        %3702 = vmatprep.subr.mxu0 0.0
        %3703 = vmatpush1.msra.mxu0 0.0
        %3704 = vmatprep.subr.mxu0 0.0
        %3705 = vmatpush1.msra.mxu0 0.0
        %3706 = vmatprep.subr.mxu0 0.0
        %3707 = vmatpush1.msra.mxu0 0.0
        %3708 = vmatprep.subr.mxu0 0.0
        %3709 = vmatpush1.msra.mxu0 0.0
        %3710 = vmatprep.subr.mxu0 0.0
        %3711 = vmatpush1.msra.mxu0 0.0
        %3712 = vmatprep.subr.mxu0 0.0
        %3713 = vmatpush1.msra.mxu0 0.0
        %3714 = vmatprep.subr.mxu0 0.0
        %3715 = vmatpush1.msra.mxu0 0.0
        %3716 = vmatprep.subr.mxu0 0.0
        %3717 = vmatpush1.msra.mxu0 0.0
        %3718 = vmatprep.subr.mxu0 0.0
        %3719 = vmatpush1.msra.mxu0 0.0
        %3720 = vmatprep.subr.mxu0 0.0
        %3721 = vmatpush1.msra.mxu0 0.0
        %3722 = vmatprep.subr.mxu0 0.0
        %3723 = vmatpush1.msra.mxu0 0.0
        %3724 = vmatprep.subr.mxu0 0.0
        %3725 = vmatpush1.msra.mxu0 0.0
        %3726 = vmatprep.subr.mxu0 0.0
        %3727 = vmatpush1.msra.mxu0 0.0
        %3728 = vmatprep.subr.mxu0 0.0
        %3729 = vmatpush1.msra.mxu0 0.0
        %3730 = vmatprep.subr.mxu0 0.0
        %3731 = vmatpush1.msra.mxu0 0.0
        %3732 = vmatprep.subr.mxu0 0.0
        %3733 = vmatpush1.msra.mxu0 0.0
        %3734 = vmatprep.subr.mxu0 0.0
        %3735 = vmatpush1.msra.mxu0 0.0
        %3736 = vmatprep.subr.mxu0 0.0
        %3737 = vmatpush1.msra.mxu0 0.0
        %3738 = vmatprep.subr.mxu0 0.0
        %3739 = vmatpush1.msra.mxu0 0.0
        %3740 = vmatprep.subr.mxu0 0.0
        %3741 = vmatpush1.msra.mxu0 0.0
        %3742 = vmatprep.subr.mxu0 0.0
        %3743 = vmatpush1.msra.mxu0 0.0
        %3744 = vmatprep.subr.mxu0 0.0
        %3745 = vmatpush1.msra.mxu0 0.0
        %3746 = vmatprep.subr.mxu0 0.0
        %3747 = vmatpush1.msra.mxu0 0.0
        %3748 = vmatprep.subr.mxu0 0.0
        %3749 = vmatpush1.msra.mxu0 0.0
        %3750 = vmatprep.subr.mxu0 0.0
        %3751 = vmatpush1.msra.mxu0 0.0
        %3752 = vmatprep.subr.mxu0 0.0
        %3753 = vmatpush1.msra.mxu0 0.0
        %3754 = vmatprep.mubr.f32.mxu0 0.0
        %3755 = vmatmul.mubr.f32.gmra.mrb[0].mxu0 %v3688
        %v3756 = vpop.f32.mrb[0].mxu0
        %v3757 = vadd.f32 0.0, %v3756
        %v3758 = vpop.f32.mrb[0].mxu0
        %3759 = vdwg.mxu0
        %v3761 = vsel %vm2874, %v3680, 0
        %3763 = vmatprep.subr.mxu0 0.0
        %3764 = vmatpush1.msra.mxu0 %v3677
        %3765 = vmatprep.subr.mxu0 0.0
        %3766 = vmatpush1.msra.mxu0 0.0
        %3767 = vmatprep.subr.mxu0 0.0
        %3768 = vmatpush1.msra.mxu0 0.0
        %3769 = vmatprep.subr.mxu0 0.0
        %3770 = vmatpush1.msra.mxu0 0.0
        %3771 = vmatprep.subr.mxu0 0.0
        %3772 = vmatpush1.msra.mxu0 0.0
        %3773 = vmatprep.subr.mxu0 0.0
        %3774 = vmatpush1.msra.mxu0 0.0
        %3775 = vmatprep.subr.mxu0 0.0
        %3776 = vmatpush1.msra.mxu0 0.0
        %3777 = vmatprep.subr.mxu0 0.0
        %3778 = vmatpush1.msra.mxu0 0.0
        %3779 = vmatprep.subr.mxu0 0.0
        %3780 = vmatpush1.msra.mxu0 0.0
        %3781 = vmatprep.subr.mxu0 0.0
        %3782 = vmatpush1.msra.mxu0 0.0
        %3783 = vmatprep.subr.mxu0 0.0
        %3784 = vmatpush1.msra.mxu0 0.0
        %3785 = vmatprep.subr.mxu0 0.0
        %3786 = vmatpush1.msra.mxu0 0.0
        %3787 = vmatprep.subr.mxu0 0.0
        %3788 = vmatpush1.msra.mxu0 0.0
        %3789 = vmatprep.subr.mxu0 0.0
        %3790 = vmatpush1.msra.mxu0 0.0
        %3791 = vmatprep.subr.mxu0 0.0
        %3792 = vmatpush1.msra.mxu0 0.0
        %3793 = vmatprep.subr.mxu0 0.0
        %3794 = vmatpush1.msra.mxu0 0.0
        %3795 = vmatprep.subr.mxu0 0.0
        %3796 = vmatpush1.msra.mxu0 0.0
        %3797 = vmatprep.subr.mxu0 0.0
        %3798 = vmatpush1.msra.mxu0 0.0
        %3799 = vmatprep.subr.mxu0 0.0
        %3800 = vmatpush1.msra.mxu0 0.0
        %3801 = vmatprep.subr.mxu0 0.0
        %3802 = vmatpush1.msra.mxu0 0.0
        %3803 = vmatprep.subr.mxu0 0.0
        %3804 = vmatpush1.msra.mxu0 0.0
        %3805 = vmatprep.subr.mxu0 0.0
        %3806 = vmatpush1.msra.mxu0 0.0
        %3807 = vmatprep.subr.mxu0 0.0
        %3808 = vmatpush1.msra.mxu0 0.0
        %3809 = vmatprep.subr.mxu0 0.0
        %3810 = vmatpush1.msra.mxu0 0.0
        %3811 = vmatprep.subr.mxu0 0.0
        %3812 = vmatpush1.msra.mxu0 0.0
        %3813 = vmatprep.subr.mxu0 0.0
        %3814 = vmatpush1.msra.mxu0 0.0
        %3815 = vmatprep.subr.mxu0 0.0
        %3816 = vmatpush1.msra.mxu0 0.0
        %3817 = vmatprep.subr.mxu0 0.0
        %3818 = vmatpush1.msra.mxu0 0.0
        %3819 = vmatprep.subr.mxu0 0.0
        %3820 = vmatpush1.msra.mxu0 0.0
        %3821 = vmatprep.subr.mxu0 0.0
        %3822 = vmatpush1.msra.mxu0 0.0
        %3823 = vmatprep.subr.mxu0 0.0
        %3824 = vmatpush1.msra.mxu0 0.0
        %3825 = vmatprep.subr.mxu0 0.0
        %3826 = vmatpush1.msra.mxu0 0.0
        %3827 = vmatprep.mubr.f32.mxu0 0.0
        %3828 = vmatmul.mubr.f32.gmra.mrb[0].mxu0 %v3761
        %v3829 = vpop.f32.mrb[0].mxu0
        %v3830 = vadd.f32 %v3757, %v3829
        %v3831 = vpop.f32.mrb[0].mxu0
        %3832 = vdwg.mxu0
        %s3833 = scalar_lea.vmem %s7, 16
        %v3834 = vld [vmem:[%s3833] sm:$0xff]
        %3835 = vrot.lane.b32.xlu0 %v3677, 126
        %v3836 = vpop.permute.xlu0 %3835
        %v3839 = vsel %vm2874, %v3834, 0
        %3841 = vmatprep.subr.mxu0 0.0
        %3842 = vmatpush1.msra.mxu0 %v3836
        %3843 = vmatprep.subr.mxu0 0.0
        %3844 = vmatpush1.msra.mxu0 0.0
        %3845 = vmatprep.subr.mxu0 0.0
        %3846 = vmatpush1.msra.mxu0 0.0
        %3847 = vmatprep.subr.mxu0 0.0
        %3848 = vmatpush1.msra.mxu0 0.0
        %3849 = vmatprep.subr.mxu0 0.0
        %3850 = vmatpush1.msra.mxu0 0.0
        %3851 = vmatprep.subr.mxu0 0.0
        %3852 = vmatpush1.msra.mxu0 0.0
        %3853 = vmatprep.subr.mxu0 0.0
        %3854 = vmatpush1.msra.mxu0 0.0
        %3855 = vmatprep.subr.mxu0 0.0
        %3856 = vmatpush1.msra.mxu0 0.0
        %3857 = vmatprep.subr.mxu0 0.0
        %3858 = vmatpush1.msra.mxu0 0.0
        %3859 = vmatprep.subr.mxu0 0.0
        %3860 = vmatpush1.msra.mxu0 0.0
        %3861 = vmatprep.subr.mxu0 0.0
        %3862 = vmatpush1.msra.mxu0 0.0
        %3863 = vmatprep.subr.mxu0 0.0
        %3864 = vmatpush1.msra.mxu0 0.0
        %3865 = vmatprep.subr.mxu0 0.0
        %3866 = vmatpush1.msra.mxu0 0.0
        %3867 = vmatprep.subr.mxu0 0.0
        %3868 = vmatpush1.msra.mxu0 0.0
        %3869 = vmatprep.subr.mxu0 0.0
        %3870 = vmatpush1.msra.mxu0 0.0
        %3871 = vmatprep.subr.mxu0 0.0
        %3872 = vmatpush1.msra.mxu0 0.0
        %3873 = vmatprep.subr.mxu0 0.0
        %3874 = vmatpush1.msra.mxu0 0.0
        %3875 = vmatprep.subr.mxu0 0.0
        %3876 = vmatpush1.msra.mxu0 0.0
        %3877 = vmatprep.subr.mxu0 0.0
        %3878 = vmatpush1.msra.mxu0 0.0
        %3879 = vmatprep.subr.mxu0 0.0
        %3880 = vmatpush1.msra.mxu0 0.0
        %3881 = vmatprep.subr.mxu0 0.0
        %3882 = vmatpush1.msra.mxu0 0.0
        %3883 = vmatprep.subr.mxu0 0.0
        %3884 = vmatpush1.msra.mxu0 0.0
        %3885 = vmatprep.subr.mxu0 0.0
        %3886 = vmatpush1.msra.mxu0 0.0
        %3887 = vmatprep.subr.mxu0 0.0
        %3888 = vmatpush1.msra.mxu0 0.0
        %3889 = vmatprep.subr.mxu0 0.0
        %3890 = vmatpush1.msra.mxu0 0.0
        %3891 = vmatprep.subr.mxu0 0.0
        %3892 = vmatpush1.msra.mxu0 0.0
        %3893 = vmatprep.subr.mxu0 0.0
        %3894 = vmatpush1.msra.mxu0 0.0
        %3895 = vmatprep.subr.mxu0 0.0
        %3896 = vmatpush1.msra.mxu0 0.0
        %3897 = vmatprep.subr.mxu0 0.0
        %3898 = vmatpush1.msra.mxu0 0.0
        %3899 = vmatprep.subr.mxu0 0.0
        %3900 = vmatpush1.msra.mxu0 0.0
        %3901 = vmatprep.subr.mxu0 0.0
        %3902 = vmatpush1.msra.mxu0 0.0
        %3903 = vmatprep.subr.mxu0 0.0
        %3904 = vmatpush1.msra.mxu0 0.0
        %3905 = vmatprep.mubr.f32.mxu0 0.0
        %3906 = vmatmul.mubr.f32.gmra.mrb[0].mxu0 %v3839
        %v3907 = vpop.f32.mrb[0].mxu0
        %v3908 = vadd.f32 0.0, %v3907
        %v3909 = vpop.f32.mrb[0].mxu0
        %3910 = vdwg.mxu0
        %v3911 = vadd.f32 %v3830, %v3908
        %s3912 = scalar_lea.vmem %s7, 24
        %v3913 = vld [vmem:[%s3912] sm:$0xff]
        %3914 = vrot.lane.b32.xlu0 %v3677, 124
        %v3915 = vpop.permute.xlu0 %3914
        %v3918 = vsel %vm2874, %v3913, 0
        %3920 = vmatprep.subr.mxu0 0.0
        %3921 = vmatpush1.msra.mxu0 %v3915
        %3922 = vmatprep.subr.mxu0 0.0
        %3923 = vmatpush1.msra.mxu0 0.0
        %3924 = vmatprep.subr.mxu0 0.0
        %3925 = vmatpush1.msra.mxu0 0.0
        %3926 = vmatprep.subr.mxu0 0.0
        %3927 = vmatpush1.msra.mxu0 0.0
        %3928 = vmatprep.subr.mxu0 0.0
        %3929 = vmatpush1.msra.mxu0 0.0
        %3930 = vmatprep.subr.mxu0 0.0
        %3931 = vmatpush1.msra.mxu0 0.0
        %3932 = vmatprep.subr.mxu0 0.0
        %3933 = vmatpush1.msra.mxu0 0.0
        %3934 = vmatprep.subr.mxu0 0.0
        %3935 = vmatpush1.msra.mxu0 0.0
        %3936 = vmatprep.subr.mxu0 0.0
        %3937 = vmatpush1.msra.mxu0 0.0
        %3938 = vmatprep.subr.mxu0 0.0
        %3939 = vmatpush1.msra.mxu0 0.0
        %3940 = vmatprep.subr.mxu0 0.0
        %3941 = vmatpush1.msra.mxu0 0.0
        %3942 = vmatprep.subr.mxu0 0.0
        %3943 = vmatpush1.msra.mxu0 0.0
        %3944 = vmatprep.subr.mxu0 0.0
        %3945 = vmatpush1.msra.mxu0 0.0
        %3946 = vmatprep.subr.mxu0 0.0
        %3947 = vmatpush1.msra.mxu0 0.0
        %3948 = vmatprep.subr.mxu0 0.0
        %3949 = vmatpush1.msra.mxu0 0.0
        %3950 = vmatprep.subr.mxu0 0.0
        %3951 = vmatpush1.msra.mxu0 0.0
        %3952 = vmatprep.subr.mxu0 0.0
        %3953 = vmatpush1.msra.mxu0 0.0
        %3954 = vmatprep.subr.mxu0 0.0
        %3955 = vmatpush1.msra.mxu0 0.0
        %3956 = vmatprep.subr.mxu0 0.0
        %3957 = vmatpush1.msra.mxu0 0.0
        %3958 = vmatprep.subr.mxu0 0.0
        %3959 = vmatpush1.msra.mxu0 0.0
        %3960 = vmatprep.subr.mxu0 0.0
        %3961 = vmatpush1.msra.mxu0 0.0
        %3962 = vmatprep.subr.mxu0 0.0
        %3963 = vmatpush1.msra.mxu0 0.0
        %3964 = vmatprep.subr.mxu0 0.0
        %3965 = vmatpush1.msra.mxu0 0.0
        %3966 = vmatprep.subr.mxu0 0.0
        %3967 = vmatpush1.msra.mxu0 0.0
        %3968 = vmatprep.subr.mxu0 0.0
        %3969 = vmatpush1.msra.mxu0 0.0
        %3970 = vmatprep.subr.mxu0 0.0
        %3971 = vmatpush1.msra.mxu0 0.0
        %3972 = vmatprep.subr.mxu0 0.0
        %3973 = vmatpush1.msra.mxu0 0.0
        %3974 = vmatprep.subr.mxu0 0.0
        %3975 = vmatpush1.msra.mxu0 0.0
        %3976 = vmatprep.subr.mxu0 0.0
        %3977 = vmatpush1.msra.mxu0 0.0
        %3978 = vmatprep.subr.mxu0 0.0
        %3979 = vmatpush1.msra.mxu0 0.0
        %3980 = vmatprep.subr.mxu0 0.0
        %3981 = vmatpush1.msra.mxu0 0.0
        %3982 = vmatprep.subr.mxu0 0.0
        %3983 = vmatpush1.msra.mxu0 0.0
        %3984 = vmatprep.mubr.f32.mxu0 0.0
        %3985 = vmatmul.mubr.f32.gmra.mrb[0].mxu0 %v3918
        %v3986 = vpop.f32.mrb[0].mxu0
        %v3987 = vadd.f32 0.0, %v3986
        %v3988 = vpop.f32.mrb[0].mxu0
        %3989 = vdwg.mxu0
        %v3990 = vadd.f32 %v3911, %v3987
        %s3991 = scalar_lea.vmem %s7, 32
        %v3992 = vld [vmem:[%s3991] sm:$0xff]
        %3993 = vrot.lane.b32.xlu0 %v3677, 123
        %v3994 = vpop.permute.xlu0 %3993
        %v3997 = vsel %vm2874, %v3992, 0
        %3999 = vmatprep.subr.mxu0 0.0
        %4000 = vmatpush1.msra.mxu0 %v3994
        %4001 = vmatprep.subr.mxu0 0.0
        %4002 = vmatpush1.msra.mxu0 0.0
        %4003 = vmatprep.subr.mxu0 0.0
        %4004 = vmatpush1.msra.mxu0 0.0
        %4005 = vmatprep.subr.mxu0 0.0
        %4006 = vmatpush1.msra.mxu0 0.0
        %4007 = vmatprep.subr.mxu0 0.0
        %4008 = vmatpush1.msra.mxu0 0.0
        %4009 = vmatprep.subr.mxu0 0.0
        %4010 = vmatpush1.msra.mxu0 0.0
        %4011 = vmatprep.subr.mxu0 0.0
        %4012 = vmatpush1.msra.mxu0 0.0
        %4013 = vmatprep.subr.mxu0 0.0
        %4014 = vmatpush1.msra.mxu0 0.0
        %4015 = vmatprep.subr.mxu0 0.0
        %4016 = vmatpush1.msra.mxu0 0.0
        %4017 = vmatprep.subr.mxu0 0.0
        %4018 = vmatpush1.msra.mxu0 0.0
        %4019 = vmatprep.subr.mxu0 0.0
        %4020 = vmatpush1.msra.mxu0 0.0
        %4021 = vmatprep.subr.mxu0 0.0
        %4022 = vmatpush1.msra.mxu0 0.0
        %4023 = vmatprep.subr.mxu0 0.0
        %4024 = vmatpush1.msra.mxu0 0.0
        %4025 = vmatprep.subr.mxu0 0.0
        %4026 = vmatpush1.msra.mxu0 0.0
        %4027 = vmatprep.subr.mxu0 0.0
        %4028 = vmatpush1.msra.mxu0 0.0
        %4029 = vmatprep.subr.mxu0 0.0
        %4030 = vmatpush1.msra.mxu0 0.0
        %4031 = vmatprep.subr.mxu0 0.0
        %4032 = vmatpush1.msra.mxu0 0.0
        %4033 = vmatprep.subr.mxu0 0.0
        %4034 = vmatpush1.msra.mxu0 0.0
        %4035 = vmatprep.subr.mxu0 0.0
        %4036 = vmatpush1.msra.mxu0 0.0
        %4037 = vmatprep.subr.mxu0 0.0
        %4038 = vmatpush1.msra.mxu0 0.0
        %4039 = vmatprep.subr.mxu0 0.0
        %4040 = vmatpush1.msra.mxu0 0.0
        %4041 = vmatprep.subr.mxu0 0.0
        %4042 = vmatpush1.msra.mxu0 0.0
        %4043 = vmatprep.subr.mxu0 0.0
        %4044 = vmatpush1.msra.mxu0 0.0
        %4045 = vmatprep.subr.mxu0 0.0
        %4046 = vmatpush1.msra.mxu0 0.0
        %4047 = vmatprep.subr.mxu0 0.0
        %4048 = vmatpush1.msra.mxu0 0.0
        %4049 = vmatprep.subr.mxu0 0.0
        %4050 = vmatpush1.msra.mxu0 0.0
        %4051 = vmatprep.subr.mxu0 0.0
        %4052 = vmatpush1.msra.mxu0 0.0
        %4053 = vmatprep.subr.mxu0 0.0
        %4054 = vmatpush1.msra.mxu0 0.0
        %4055 = vmatprep.subr.mxu0 0.0
        %4056 = vmatpush1.msra.mxu0 0.0
        %4057 = vmatprep.subr.mxu0 0.0
        %4058 = vmatpush1.msra.mxu0 0.0
        %4059 = vmatprep.subr.mxu0 0.0
        %4060 = vmatpush1.msra.mxu0 0.0
        %4061 = vmatprep.subr.mxu0 0.0
        %4062 = vmatpush1.msra.mxu0 0.0
        %4063 = vmatprep.mubr.f32.mxu0 0.0
        %4064 = vmatmul.mubr.f32.gmra.mrb[0].mxu0 %v3997
        %v4065 = vpop.f32.mrb[0].mxu0
        %v4066 = vadd.f32 0.0, %v4065
        %v4067 = vpop.f32.mrb[0].mxu0
        %4068 = vdwg.mxu0
        %v4069 = vadd.f32 %v3990, %v4066
        %s4070 = scalar_lea.vmem %s7, 40
        %v4071 = vld [vmem:[%s4070] sm:$0xff]
        %4072 = vrot.lane.b32.xlu0 %v3677, 122
        %v4073 = vpop.permute.xlu0 %4072
        %v4076 = vsel %vm2874, %v4071, 0
        %4078 = vmatprep.subr.mxu0 0.0
        %4079 = vmatpush1.msra.mxu0 %v4073
        %4080 = vmatprep.subr.mxu0 0.0
        %4081 = vmatpush1.msra.mxu0 0.0
        %4082 = vmatprep.subr.mxu0 0.0
        %4083 = vmatpush1.msra.mxu0 0.0
        %4084 = vmatprep.subr.mxu0 0.0
        %4085 = vmatpush1.msra.mxu0 0.0
        %4086 = vmatprep.subr.mxu0 0.0
        %4087 = vmatpush1.msra.mxu0 0.0
        %4088 = vmatprep.subr.mxu0 0.0
        %4089 = vmatpush1.msra.mxu0 0.0
        %4090 = vmatprep.subr.mxu0 0.0
        %4091 = vmatpush1.msra.mxu0 0.0
        %4092 = vmatprep.subr.mxu0 0.0
        %4093 = vmatpush1.msra.mxu0 0.0
        %4094 = vmatprep.subr.mxu0 0.0
        %4095 = vmatpush1.msra.mxu0 0.0
        %4096 = vmatprep.subr.mxu0 0.0
        %4097 = vmatpush1.msra.mxu0 0.0
        %4098 = vmatprep.subr.mxu0 0.0
        %4099 = vmatpush1.msra.mxu0 0.0
        %4100 = vmatprep.subr.mxu0 0.0
        %4101 = vmatpush1.msra.mxu0 0.0
        %4102 = vmatprep.subr.mxu0 0.0
        %4103 = vmatpush1.msra.mxu0 0.0
        %4104 = vmatprep.subr.mxu0 0.0
        %4105 = vmatpush1.msra.mxu0 0.0
        %4106 = vmatprep.subr.mxu0 0.0
        %4107 = vmatpush1.msra.mxu0 0.0
        %4108 = vmatprep.subr.mxu0 0.0
        %4109 = vmatpush1.msra.mxu0 0.0
        %4110 = vmatprep.subr.mxu0 0.0
        %4111 = vmatpush1.msra.mxu0 0.0
        %4112 = vmatprep.subr.mxu0 0.0
        %4113 = vmatpush1.msra.mxu0 0.0
        %4114 = vmatprep.subr.mxu0 0.0
        %4115 = vmatpush1.msra.mxu0 0.0
        %4116 = vmatprep.subr.mxu0 0.0
        %4117 = vmatpush1.msra.mxu0 0.0
        %4118 = vmatprep.subr.mxu0 0.0
        %4119 = vmatpush1.msra.mxu0 0.0
        %4120 = vmatprep.subr.mxu0 0.0
        %4121 = vmatpush1.msra.mxu0 0.0
        %4122 = vmatprep.subr.mxu0 0.0
        %4123 = vmatpush1.msra.mxu0 0.0
        %4124 = vmatprep.subr.mxu0 0.0
        %4125 = vmatpush1.msra.mxu0 0.0
        %4126 = vmatprep.subr.mxu0 0.0
        %4127 = vmatpush1.msra.mxu0 0.0
        %4128 = vmatprep.subr.mxu0 0.0
        %4129 = vmatpush1.msra.mxu0 0.0
        %4130 = vmatprep.subr.mxu0 0.0
        %4131 = vmatpush1.msra.mxu0 0.0
        %4132 = vmatprep.subr.mxu0 0.0
        %4133 = vmatpush1.msra.mxu0 0.0
        %4134 = vmatprep.subr.mxu0 0.0
        %4135 = vmatpush1.msra.mxu0 0.0
        %4136 = vmatprep.subr.mxu0 0.0
        %4137 = vmatpush1.msra.mxu0 0.0
        %4138 = vmatprep.subr.mxu0 0.0
        %4139 = vmatpush1.msra.mxu0 0.0
        %4140 = vmatprep.subr.mxu0 0.0
        %4141 = vmatpush1.msra.mxu0 0.0
        %4142 = vmatprep.mubr.f32.mxu0 0.0
        %4143 = vmatmul.mubr.f32.gmra.mrb[0].mxu0 %v4076
        %v4144 = vpop.f32.mrb[0].mxu0
        %v4145 = vadd.f32 0.0, %v4144
        %v4146 = vpop.f32.mrb[0].mxu0
        %4147 = vdwg.mxu0
        %v4148 = vadd.f32 %v4069, %v4145
        %s4149 = scalar_lea.vmem %s7, 48
        %v4150 = vld [vmem:[%s4149] sm:$0xff]
        %4151 = vrot.lane.b32.xlu0 %v3677, 120
        %v4152 = vpop.permute.xlu0 %4151
        %v4155 = vsel %vm2874, %v4150, 0
        %4157 = vmatprep.subr.mxu0 0.0
        %4158 = vmatpush1.msra.mxu0 %v4152
        %4159 = vmatprep.subr.mxu0 0.0
        %4160 = vmatpush1.msra.mxu0 0.0
        %4161 = vmatprep.subr.mxu0 0.0
        %4162 = vmatpush1.msra.mxu0 0.0
        %4163 = vmatprep.subr.mxu0 0.0
        %4164 = vmatpush1.msra.mxu0 0.0
        %4165 = vmatprep.subr.mxu0 0.0
        %4166 = vmatpush1.msra.mxu0 0.0
        %4167 = vmatprep.subr.mxu0 0.0
        %4168 = vmatpush1.msra.mxu0 0.0
        %4169 = vmatprep.subr.mxu0 0.0
        %4170 = vmatpush1.msra.mxu0 0.0
        %4171 = vmatprep.subr.mxu0 0.0
        %4172 = vmatpush1.msra.mxu0 0.0
        %4173 = vmatprep.subr.mxu0 0.0
        %4174 = vmatpush1.msra.mxu0 0.0
        %4175 = vmatprep.subr.mxu0 0.0
        %4176 = vmatpush1.msra.mxu0 0.0
        %4177 = vmatprep.subr.mxu0 0.0
        %4178 = vmatpush1.msra.mxu0 0.0
        %4179 = vmatprep.subr.mxu0 0.0
        %4180 = vmatpush1.msra.mxu0 0.0
        %4181 = vmatprep.subr.mxu0 0.0
        %4182 = vmatpush1.msra.mxu0 0.0
        %4183 = vmatprep.subr.mxu0 0.0
        %4184 = vmatpush1.msra.mxu0 0.0
        %4185 = vmatprep.subr.mxu0 0.0
        %4186 = vmatpush1.msra.mxu0 0.0
        %4187 = vmatprep.subr.mxu0 0.0
        %4188 = vmatpush1.msra.mxu0 0.0
        %4189 = vmatprep.subr.mxu0 0.0
        %4190 = vmatpush1.msra.mxu0 0.0
        %4191 = vmatprep.subr.mxu0 0.0
        %4192 = vmatpush1.msra.mxu0 0.0
        %4193 = vmatprep.subr.mxu0 0.0
        %4194 = vmatpush1.msra.mxu0 0.0
        %4195 = vmatprep.subr.mxu0 0.0
        %4196 = vmatpush1.msra.mxu0 0.0
        %4197 = vmatprep.subr.mxu0 0.0
        %4198 = vmatpush1.msra.mxu0 0.0
        %4199 = vmatprep.subr.mxu0 0.0
        %4200 = vmatpush1.msra.mxu0 0.0
        %4201 = vmatprep.subr.mxu0 0.0
        %4202 = vmatpush1.msra.mxu0 0.0
        %4203 = vmatprep.subr.mxu0 0.0
        %4204 = vmatpush1.msra.mxu0 0.0
        %4205 = vmatprep.subr.mxu0 0.0
        %4206 = vmatpush1.msra.mxu0 0.0
        %4207 = vmatprep.subr.mxu0 0.0
        %4208 = vmatpush1.msra.mxu0 0.0
        %4209 = vmatprep.subr.mxu0 0.0
        %4210 = vmatpush1.msra.mxu0 0.0
        %4211 = vmatprep.subr.mxu0 0.0
        %4212 = vmatpush1.msra.mxu0 0.0
        %4213 = vmatprep.subr.mxu0 0.0
        %4214 = vmatpush1.msra.mxu0 0.0
        %4215 = vmatprep.subr.mxu0 0.0
        %4216 = vmatpush1.msra.mxu0 0.0
        %4217 = vmatprep.subr.mxu0 0.0
        %4218 = vmatpush1.msra.mxu0 0.0
        %4219 = vmatprep.subr.mxu0 0.0
        %4220 = vmatpush1.msra.mxu0 0.0
        %4221 = vmatprep.mubr.f32.mxu0 0.0
        %4222 = vmatmul.mubr.f32.gmra.mrb[0].mxu0 %v4155
        %v4223 = vpop.f32.mrb[0].mxu0
        %v4224 = vadd.f32 0.0, %v4223
        %v4225 = vpop.f32.mrb[0].mxu0
        %4226 = vdwg.mxu0
        %v4227 = vadd.f32 %v4148, %v4224
        %s4228 = scalar_lea.vmem %s7, 56
        %v4229 = vld [vmem:[%s4228] sm:$0xff]
        %4230 = vrot.lane.b32.xlu0 %v3677, 119
        %v4231 = vpop.permute.xlu0 %4230
        %v4234 = vsel %vm2874, %v4229, 0
        %4236 = vmatprep.subr.mxu0 0.0
        %4237 = vmatpush1.msra.mxu0 %v4231
        %4238 = vmatprep.subr.mxu0 0.0
        %4239 = vmatpush1.msra.mxu0 0.0
        %4240 = vmatprep.subr.mxu0 0.0
        %4241 = vmatpush1.msra.mxu0 0.0
        %4242 = vmatprep.subr.mxu0 0.0
        %4243 = vmatpush1.msra.mxu0 0.0
        %4244 = vmatprep.subr.mxu0 0.0
        %4245 = vmatpush1.msra.mxu0 0.0
        %4246 = vmatprep.subr.mxu0 0.0
        %4247 = vmatpush1.msra.mxu0 0.0
        %4248 = vmatprep.subr.mxu0 0.0
        %4249 = vmatpush1.msra.mxu0 0.0
        %4250 = vmatprep.subr.mxu0 0.0
        %4251 = vmatpush1.msra.mxu0 0.0
        %4252 = vmatprep.subr.mxu0 0.0
        %4253 = vmatpush1.msra.mxu0 0.0
        %4254 = vmatprep.subr.mxu0 0.0
        %4255 = vmatpush1.msra.mxu0 0.0
        %4256 = vmatprep.subr.mxu0 0.0
        %4257 = vmatpush1.msra.mxu0 0.0
        %4258 = vmatprep.subr.mxu0 0.0
        %4259 = vmatpush1.msra.mxu0 0.0
        %4260 = vmatprep.subr.mxu0 0.0
        %4261 = vmatpush1.msra.mxu0 0.0
        %4262 = vmatprep.subr.mxu0 0.0
        %4263 = vmatpush1.msra.mxu0 0.0
        %4264 = vmatprep.subr.mxu0 0.0
        %4265 = vmatpush1.msra.mxu0 0.0
        %4266 = vmatprep.subr.mxu0 0.0
        %4267 = vmatpush1.msra.mxu0 0.0
        %4268 = vmatprep.subr.mxu0 0.0
        %4269 = vmatpush1.msra.mxu0 0.0
        %4270 = vmatprep.subr.mxu0 0.0
        %4271 = vmatpush1.msra.mxu0 0.0
        %4272 = vmatprep.subr.mxu0 0.0
        %4273 = vmatpush1.msra.mxu0 0.0
        %4274 = vmatprep.subr.mxu0 0.0
        %4275 = vmatpush1.msra.mxu0 0.0
        %4276 = vmatprep.subr.mxu0 0.0
        %4277 = vmatpush1.msra.mxu0 0.0
        %4278 = vmatprep.subr.mxu0 0.0
        %4279 = vmatpush1.msra.mxu0 0.0
        %4280 = vmatprep.subr.mxu0 0.0
        %4281 = vmatpush1.msra.mxu0 0.0
        %4282 = vmatprep.subr.mxu0 0.0
        %4283 = vmatpush1.msra.mxu0 0.0
        %4284 = vmatprep.subr.mxu0 0.0
        %4285 = vmatpush1.msra.mxu0 0.0
        %4286 = vmatprep.subr.mxu0 0.0
        %4287 = vmatpush1.msra.mxu0 0.0
        %4288 = vmatprep.subr.mxu0 0.0
        %4289 = vmatpush1.msra.mxu0 0.0
        %4290 = vmatprep.subr.mxu0 0.0
        %4291 = vmatpush1.msra.mxu0 0.0
        %4292 = vmatprep.subr.mxu0 0.0
        %4293 = vmatpush1.msra.mxu0 0.0
        %4294 = vmatprep.subr.mxu0 0.0
        %4295 = vmatpush1.msra.mxu0 0.0
        %4296 = vmatprep.subr.mxu0 0.0
        %4297 = vmatpush1.msra.mxu0 0.0
        %4298 = vmatprep.subr.mxu0 0.0
        %4299 = vmatpush1.msra.mxu0 0.0
        %4300 = vmatprep.mubr.f32.mxu0 0.0
        %4301 = vmatmul.mubr.f32.gmra.mrb[0].mxu0 %v4234
        %v4302 = vpop.f32.mrb[0].mxu0
        %v4303 = vadd.f32 0.0, %v4302
        %v4304 = vpop.f32.mrb[0].mxu0
        %4305 = vdwg.mxu0
        %v4306 = vadd.f32 %v4227, %v4303
        %s4307 = scalar_lea.vmem %s7, 64
        %v4308 = vld [vmem:[%s4307] sm:$0xff]
        %4309 = vrot.lane.b32.xlu0 %v3677, 118
        %v4310 = vpop.permute.xlu0 %4309
        %v4313 = vsel %vm2874, %v4308, 0
        %4315 = vmatprep.subr.mxu0 0.0
        %4316 = vmatpush1.msra.mxu0 %v4310
        %4317 = vmatprep.subr.mxu0 0.0
        %4318 = vmatpush1.msra.mxu0 0.0
        %4319 = vmatprep.subr.mxu0 0.0
        %4320 = vmatpush1.msra.mxu0 0.0
        %4321 = vmatprep.subr.mxu0 0.0
        %4322 = vmatpush1.msra.mxu0 0.0
        %4323 = vmatprep.subr.mxu0 0.0
        %4324 = vmatpush1.msra.mxu0 0.0
        %4325 = vmatprep.subr.mxu0 0.0
        %4326 = vmatpush1.msra.mxu0 0.0
        %4327 = vmatprep.subr.mxu0 0.0
        %4328 = vmatpush1.msra.mxu0 0.0
        %4329 = vmatprep.subr.mxu0 0.0
        %4330 = vmatpush1.msra.mxu0 0.0
        %4331 = vmatprep.subr.mxu0 0.0
        %4332 = vmatpush1.msra.mxu0 0.0
        %4333 = vmatprep.subr.mxu0 0.0
        %4334 = vmatpush1.msra.mxu0 0.0
        %4335 = vmatprep.subr.mxu0 0.0
        %4336 = vmatpush1.msra.mxu0 0.0
        %4337 = vmatprep.subr.mxu0 0.0
        %4338 = vmatpush1.msra.mxu0 0.0
        %4339 = vmatprep.subr.mxu0 0.0
        %4340 = vmatpush1.msra.mxu0 0.0
        %4341 = vmatprep.subr.mxu0 0.0
        %4342 = vmatpush1.msra.mxu0 0.0
        %4343 = vmatprep.subr.mxu0 0.0
        %4344 = vmatpush1.msra.mxu0 0.0
        %4345 = vmatprep.subr.mxu0 0.0
        %4346 = vmatpush1.msra.mxu0 0.0
        %4347 = vmatprep.subr.mxu0 0.0
        %4348 = vmatpush1.msra.mxu0 0.0
        %4349 = vmatprep.subr.mxu0 0.0
        %4350 = vmatpush1.msra.mxu0 0.0
        %4351 = vmatprep.subr.mxu0 0.0
        %4352 = vmatpush1.msra.mxu0 0.0
        %4353 = vmatprep.subr.mxu0 0.0
        %4354 = vmatpush1.msra.mxu0 0.0
        %4355 = vmatprep.subr.mxu0 0.0
        %4356 = vmatpush1.msra.mxu0 0.0
        %4357 = vmatprep.subr.mxu0 0.0
        %4358 = vmatpush1.msra.mxu0 0.0
        %4359 = vmatprep.subr.mxu0 0.0
        %4360 = vmatpush1.msra.mxu0 0.0
        %4361 = vmatprep.subr.mxu0 0.0
        %4362 = vmatpush1.msra.mxu0 0.0
        %4363 = vmatprep.subr.mxu0 0.0
        %4364 = vmatpush1.msra.mxu0 0.0
        %4365 = vmatprep.subr.mxu0 0.0
        %4366 = vmatpush1.msra.mxu0 0.0
        %4367 = vmatprep.subr.mxu0 0.0
        %4368 = vmatpush1.msra.mxu0 0.0
        %4369 = vmatprep.subr.mxu0 0.0
        %4370 = vmatpush1.msra.mxu0 0.0
        %4371 = vmatprep.subr.mxu0 0.0
        %4372 = vmatpush1.msra.mxu0 0.0
        %4373 = vmatprep.subr.mxu0 0.0
        %4374 = vmatpush1.msra.mxu0 0.0
        %4375 = vmatprep.subr.mxu0 0.0
        %4376 = vmatpush1.msra.mxu0 0.0
        %4377 = vmatprep.subr.mxu0 0.0
        %4378 = vmatpush1.msra.mxu0 0.0
        %4379 = vmatprep.mubr.f32.mxu0 0.0
        %4380 = vmatmul.mubr.f32.gmra.mrb[0].mxu0 %v4313
        %v4381 = vpop.f32.mrb[0].mxu0
        %v4382 = vadd.f32 0.0, %v4381
        %v4383 = vpop.f32.mrb[0].mxu0
        %4384 = vdwg.mxu0
        %v4385 = vadd.f32 %v4306, %v4382
        %v4386 = vld [vmem:[%s8] sm:$0xff]
        %4388 = vset.pattern.permute.xlu0 0
        %4389 = vperm.xlu0 %4388, %v4386
        %v4390 = vpop.permute.xlu0 %4389
        %v4392 = vadd.f32 %v4385, %v4390
        %v4393 = vmax.f32 %v4392, 0.0
        %v4394 = vld [vmem:[%s9] sm:$0x3f]
        %vm4395 = vcmask 48128
        %v4397 = vsel %vm4395, %v4393, 0
        %vm4399 = vcmask 1045504
        %v4401 = vsel %vm4399, %v4394, 0
        %4403 = vmatprep.subr.mxu0 0.0
        %4404 = vmatpush1.msra.mxu0 %v4401
        %4405 = vmatprep.subr.mxu0 0.0
        %4406 = vmatpush1.msra.mxu0 0.0
        %4407 = vmatprep.subr.mxu0 0.0
        %4408 = vmatpush1.msra.mxu0 0.0
        %4409 = vmatprep.subr.mxu0 0.0
        %4410 = vmatpush1.msra.mxu0 0.0
        %4411 = vmatprep.subr.mxu0 0.0
        %4412 = vmatpush1.msra.mxu0 0.0
        %4413 = vmatprep.subr.mxu0 0.0
        %4414 = vmatpush1.msra.mxu0 0.0
        %4415 = vmatprep.subr.mxu0 0.0
        %4416 = vmatpush1.msra.mxu0 0.0
        %4417 = vmatprep.subr.mxu0 0.0
        %4418 = vmatpush1.msra.mxu0 0.0
        %4419 = vmatprep.subr.mxu0 0.0
        %4420 = vmatpush1.msra.mxu0 0.0
        %4421 = vmatprep.subr.mxu0 0.0
        %4422 = vmatpush1.msra.mxu0 0.0
        %4423 = vmatprep.subr.mxu0 0.0
        %4424 = vmatpush1.msra.mxu0 0.0
        %4425 = vmatprep.subr.mxu0 0.0
        %4426 = vmatpush1.msra.mxu0 0.0
        %4427 = vmatprep.subr.mxu0 0.0
        %4428 = vmatpush1.msra.mxu0 0.0
        %4429 = vmatprep.subr.mxu0 0.0
        %4430 = vmatpush1.msra.mxu0 0.0
        %4431 = vmatprep.subr.mxu0 0.0
        %4432 = vmatpush1.msra.mxu0 0.0
        %4433 = vmatprep.subr.mxu0 0.0
        %4434 = vmatpush1.msra.mxu0 0.0
        %4435 = vmatprep.subr.mxu0 0.0
        %4436 = vmatpush1.msra.mxu0 0.0
        %4437 = vmatprep.subr.mxu0 0.0
        %4438 = vmatpush1.msra.mxu0 0.0
        %4439 = vmatprep.subr.mxu0 0.0
        %4440 = vmatpush1.msra.mxu0 0.0
        %4441 = vmatprep.subr.mxu0 0.0
        %4442 = vmatpush1.msra.mxu0 0.0
        %4443 = vmatprep.subr.mxu0 0.0
        %4444 = vmatpush1.msra.mxu0 0.0
        %4445 = vmatprep.subr.mxu0 0.0
        %4446 = vmatpush1.msra.mxu0 0.0
        %4447 = vmatprep.subr.mxu0 0.0
        %4448 = vmatpush1.msra.mxu0 0.0
        %4449 = vmatprep.subr.mxu0 0.0
        %4450 = vmatpush1.msra.mxu0 0.0
        %4451 = vmatprep.subr.mxu0 0.0
        %4452 = vmatpush1.msra.mxu0 0.0
        %4453 = vmatprep.subr.mxu0 0.0
        %4454 = vmatpush1.msra.mxu0 0.0
        %4455 = vmatprep.subr.mxu0 0.0
        %4456 = vmatpush1.msra.mxu0 0.0
        %4457 = vmatprep.subr.mxu0 0.0
        %4458 = vmatpush1.msra.mxu0 0.0
        %4459 = vmatprep.subr.mxu0 0.0
        %4460 = vmatpush1.msra.mxu0 0.0
        %4461 = vmatprep.subr.mxu0 0.0
        %4462 = vmatpush1.msra.mxu0 0.0
        %4463 = vmatprep.subr.mxu0 0.0
        %4464 = vmatpush1.msra.mxu0 0.0
        %4465 = vmatprep.subr.mxu0 0.0
        %4466 = vmatpush1.msra.mxu0 0.0
        %4467 = vmatprep.mubr.f32.mxu0 0.0
        %4468 = vmatmul.mubr.f32.gmra.mrb[0].mxu0 %v4397
        %v4469 = vpop.f32.mrb[0].mxu0
        %v4470 = vadd.f32 0.0, %v4469
        %v4471 = vpop.f32.mrb[0].mxu0
        %4472 = vdwg.mxu0
        %4473 = vst.msk [vmem:[%s375] sm:$0xff] %vm402, %v4470
        %p4474 = scmp.lt.s32.totalorder %s24, 1
        %s4475 = scalar_select %p4474, %s24, 1
        %s4476 = smul.addr %s4475, 8
        %s4477 = scalar_lea.vmem %s10, %s4476
        // Predicated region
        $region65: #{tpu_custom_call.1} parent=59 // pred_check
          %p4478 = pneg %p257
        $region66: #{tpu_custom_call.1} parent=59 // pred_check_branch
          %4480 = sbr.rel (%p4478) target = $region68
        $region67: #{tpu_custom_call.1} parent=59 // pred_region
          _
        $region68: #{tpu_custom_call.1} parent=59 // pred_fallthru
          _
      $region60: #{tpu_custom_call.1} parent=5 // pred_fallthru
        _
      %p4481 = scmp.le.s32.totalorder 2, %s19
      // Predicated region
      $region69: #{tpu_custom_call.1} parent=5 // pred_check
        %p4482 = pneg %p4481
      $region70: #{tpu_custom_call.1} parent=5 // pred_check_branch
        %4484 = sbr.rel (%p4482) target = $region72
      $region71: #{tpu_custom_call.1} parent=5 // pred_region
        %s4485 = ssub.s32 %s19, 2
        // Predicated region
        $region73: #{tpu_custom_call.1} parent=71 // pred_check
          %p4486 = pneg %p263
        $region74: #{tpu_custom_call.1} parent=71 // pred_check_branch
          %4488 = sbr.rel (%p4486) target = $region76
        $region75: #{tpu_custom_call.1} parent=71 // pred_region
          %p4489 = scmp.lt.s32.totalorder %s25, 1
          %s4490 = scalar_select %p4489, %s25, 1
          %s4491 = smul.addr %s4490, 8
          %s4492 = scalar_lea.vmem %s10, %s4491
        $region76: #{tpu_custom_call.1} parent=71 // pred_fallthru
          _
      $region72: #{tpu_custom_call.1} parent=5 // pred_fallthru
        _
    $region6: #{tpu_custom_call.1} parent=1 // loop_footer
      %s23 = sadd.s32 1, %s19
    $region7: #{tpu_custom_call.1} parent=1 // loop_footer_branch
      %18 = sbr.rel target = $region3
    $region8: #{tpu_custom_call.1} parent=1 // loop_exit
      _
    %4493 = vsyncpa [#allocation3], 1
    %s4494 = scalar_lea.sflag [#allocation3], 1
    %4495 = vsyncpa %s4494, 1

</llo_original>
